<compile_context>
chip_gen: v7x
topology: tpu7x:2x2x1
jax: 0.10.0
libtpu: 0.0.40
codegen_flags: <defaults>
</compile_context>

<pallas_src>
import functools
import math

import jax
import jax.numpy as jnp
from jax import lax
from jax.experimental import pallas as pl
from jax.experimental.pallas import tpu as pltpu

D = 32          # input_dim (model width)
H = 4           # num_heads
DH = D // H     # per-head dim
F = 64          # feature_dim (FFN hidden width)
LN_EPS = 1e-5
NEG_INF = -1e9
SUBLANE = 8     # f32 sublane tile


def _round_up(n, m):
    return (n + m - 1) // m * m


def _layer_norm(x, g, b):
    mu = jnp.mean(x, axis=-1, keepdims=True)
    var = jnp.mean(jnp.square(x - mu), axis=-1, keepdims=True)
    return (x - mu) * lax.rsqrt(var + LN_EPS) * g + b


# ---------------------------- Pallas kernel ----------------------------
def decoder_layer_kernel(x_ref, enc_ref, dkey_ref, ekey_ref, drow_ref,
                         wqkv_sa_ref, bqkv_sa_ref, wo_sa_ref, bo_sa_ref,
                         wq_ca_ref, bq_ca_ref, wkv_ca_ref, bkv_ca_ref,
                         wo_ca_ref, bo_ca_ref,
                         w1_ref, b1_ref, w2_ref, b2_ref,
                         lng_ref, lnb_ref,
                         o_ref, *, mxu_dtype):
    nb, _, sq = dkey_ref.shape            # (Bt, 1, S_pad)
    sk_enc = ekey_ref.shape[2]            # Se_pad
    rows = x_ref.shape[0]                 # Bt * S_pad

    def mm(a, w, b):
        # MXU matmul; activation cast once (no-op for f32), weights pre-cast
        # wrapper-side, f32 accumulate + f32 bias add.
        return jnp.dot(a.astype(mxu_dtype), w,
                       preferred_element_type=jnp.float32) + b

    def softmax_last(s):
        m = jnp.max(s, axis=-1, keepdims=True)
        e = jnp.exp(s - m)
        den = jnp.sum(e, axis=-1, keepdims=True)
        # approx=True would move the divide onto the otherwise-idle EUP slot, but its
        # accuracy loss would break the 1e-4 test tolerance -> keep exact.
        return e * pl.reciprocal(den, approx=False)

    def split_heads(t, ns):
        # (nb*ns, D) -> (H*nb, ns, DH): heads folded into the batched-matmul batch
        # dim (batch order = (head, b)); lane slices + major-dim reshapes only.
        parts = [t[:, h * DH:(h + 1) * DH].reshape(1, nb, ns, DH)
                 for h in range(H)]
        return jnp.concatenate(parts, axis=0).reshape(H * nb, ns, DH)

    def merge_heads(oh):
        # (H*nb, sq, DH) -> (nb*sq, D): recombine heads along lanes, in registers.
        return jnp.concatenate(
            [oh[h * nb:(h + 1) * nb].reshape(nb * sq, DH) for h in range(H)],
            axis=-1)

    def mha_core(q, k, v, sk, key_mask, causal, wo_ref, bo_ref):
        # q: (nb*sq, D)   k, v: (nb*sk, D)   key_mask: (nb, 1, sk) float {0,1}
        # cast once per attention (no-op for the default f32 path)
        qh = split_heads(q * (1.0 / math.sqrt(DH)), sq).astype(mxu_dtype)
        kh = split_heads(k, sk).astype(mxu_dtype)
        vh = split_heads(v, sk).astype(mxu_dtype)

        # key mask, replicated across heads to match the (head, b) batch order
        keym = jnp.broadcast_to(key_mask[None], (H, nb, 1, sk)).reshape(H * nb, 1, sk)
        keep = keym > 0.5                                        # (H*nb, 1, sk)
        if causal:
            row = lax.broadcasted_iota(jnp.int32, (sq, sk), 0)
            col = lax.broadcasted_iota(jnp.int32, (sq, sk), 1)
            keep = jnp.logical_and(keep, (col <= row)[None, :, :])  # (H*nb, sq, sk)

        # two batched matmuls per attention (contraction taken directly, no transpose)
        s = jnp.einsum('bqd,bkd->bqk', qh, kh,
                       preferred_element_type=jnp.float32)       # (H*nb, sq, sk) f32
        s = jnp.where(keep, s, NEG_INF)                          # single mask select
        p = softmax_last(s)                                      # f32 softmax
        oh = jnp.einsum('bqk,bkd->bqd', p.astype(mxu_dtype), vh,
                        preferred_element_type=jnp.float32)      # (H*nb, sq, DH)
        att = merge_heads(oh)                                    # (nb*sq, D) in regs
        return mm(att, wo_ref[...], bo_ref[...])                 # single Wo matmul

    x = x_ref[...]                                               # (rows, D)
    # hoist the query-position mask broadcast (reused 4x below)
    drow_b = jnp.broadcast_to(drow_ref[...], (rows, D))

    # --- masked causal self-attention + residual + LN1 (dropout = eval no-op) ---
    qkv = mm(x, wqkv_sa_ref[...], bqkv_sa_ref[...])              # fused Q|K|V
    a = mha_core(qkv[:, :D], qkv[:, D:2 * D], qkv[:, 2 * D:], sq,
                 dkey_ref[...], True, wo_sa_ref, bo_sa_ref)
    x = _layer_norm(a * drow_b + x, lng_ref[0], lnb_ref[0])

    # --- encoder (cross) attention + residual + LN2 ---
    q_c = mm(x, wq_ca_ref[...], bq_ca_ref[...])
    kv_c = mm(enc_ref[...], wkv_ca_ref[...], bkv_ca_ref[...])    # fused K|V
    a = mha_core(q_c, kv_c[:, :D], kv_c[:, D:], sk_enc,
                 ekey_ref[...], False, wo_ca_ref, bo_ca_ref)
    x = _layer_norm(a * drow_b + x, lng_ref[1], lnb_ref[1])

    # --- feed-forward + residual + LN3 ---
    hdn = jnp.maximum(mm(x, w1_ref[...], b1_ref[...]), 0.0)
    f = mm(hdn, w2_ref[...], b2_ref[...])
    x = _layer_norm(f * drow_b + x, lng_ref[2], lnb_ref[2])

    # final output masking
    o_ref[...] = (x * drow_b).astype(o_ref.dtype)


# ---------------------------- wrapper ----------------------------
def pack_params(raw, mxu_dtype=jnp.float32):
    """Wrapper-side weight packing: fuse Q|K|V (self-attn) and K|V (cross-attn).

    Weight MATRICES are pre-cast to mxu_dtype (halves DMA bytes / avoids in-kernel
    converts for the bf16 path); biases and LayerNorm params stay f32.
    """
    wd = mxu_dtype

    def row(b):
        return b.reshape(1, -1)

    return dict(
        wqkv_sa=jnp.concatenate([raw["sa_wq"], raw["sa_wk"], raw["sa_wv"]],
                                axis=1).astype(wd),
        bqkv_sa=jnp.concatenate([raw["sa_bq"], raw["sa_bk"], raw["sa_bv"]]).reshape(1, -1),
        wo_sa=raw["sa_wo"].astype(wd), bo_sa=row(raw["sa_bo"]),
        wq_ca=raw["ca_wq"].astype(wd), bq_ca=row(raw["ca_bq"]),
        wkv_ca=jnp.concatenate([raw["ca_wk"], raw["ca_wv"]], axis=1).astype(wd),
        bkv_ca=jnp.concatenate([raw["ca_bk"], raw["ca_bv"]]).reshape(1, -1),
        wo_ca=raw["ca_wo"].astype(wd), bo_ca=row(raw["ca_bo"]),
        w1=raw["w1"].astype(wd), b1=row(raw["b1"]),
        w2=raw["w2"].astype(wd), b2=row(raw["b2"]),
        lng=jnp.stack([raw["ln1_g"], raw["ln2_g"], raw["ln3_g"]]).reshape(3, 1, D),
        lnb=jnp.stack([raw["ln1_b"], raw["ln2_b"], raw["ln3_b"]]).reshape(3, 1, D),
    )


def transformer_decoder_layer(x, enc, dec_mask, enc_mask, p, mxu_dtype=jnp.float32):
    """mxu_dtype must match the dtype passed to pack_params."""
    B, S, d = x.shape
    Se = enc.shape[1]
    assert d == D
    S_p = _round_up(S, SUBLANE)
    Se_p = _round_up(Se, SUBLANE)

    # Pad sequence dims to sublane multiples: padded keys are masked out (mask=0),
    # padded query rows are sliced off after the call, so semantics are unchanged.
    x_p = jnp.pad(x.astype(jnp.float32), ((0, 0), (0, S_p - S), (0, 0)))
    enc_p = jnp.pad(enc.astype(jnp.float32), ((0, 0), (0, Se_p - Se), (0, 0)))
    dm = jnp.pad(dec_mask.astype(jnp.float32), ((0, 0), (0, S_p - S)))
    em = jnp.pad(enc_mask.astype(jnp.float32), ((0, 0), (0, Se_p - Se)))

    # Batch folded into the matmul M dimension (free wrapper-side reshapes).
    x2d = x_p.reshape(B * S_p, D)
    enc2d = enc_p.reshape(B * Se_p, D)
    dkey = dm.reshape(B, 1, S_p)       # self-attn key mask
    ekey = em.reshape(B, 1, Se_p)      # cross-attn key mask
    drow = dm.reshape(B * S_p, 1)      # query-position mask

    # Split into 2 grid steps only when each step gets enough M-rows to amortize the
    # fixed per-step cost (and to give each v7x TensorCore real work); otherwise one
    # step keeps all rows in a single set of matmuls (v5e/v6e single-TC, small B).
    MIN_ROWS_PER_STEP = 128
    num_steps = 2 if (B % 2 == 0 and (B // 2) * S_p >= MIN_ROWS_PER_STEP) else 1
    bt = B // num_steps

    def full(shape):
        return pl.BlockSpec(shape, lambda i, _n=len(shape): (0,) * _n)

    in_specs = [
        pl.BlockSpec((bt * S_p, D), lambda i: (i, 0)),      # x rows
        pl.BlockSpec((bt * Se_p, D), lambda i: (i, 0)),     # encoder rows
        pl.BlockSpec((bt, 1, S_p), lambda i: (i, 0, 0)),    # dec key mask
        pl.BlockSpec((bt, 1, Se_p), lambda i: (i, 0, 0)),   # enc key mask
        pl.BlockSpec((bt * S_p, 1), lambda i: (i, 0)),      # dec row mask
        full((D, 3 * D)), full((1, 3 * D)), full((D, D)), full((1, D)),   # self-attn
        full((D, D)), full((1, D)), full((D, 2 * D)), full((1, 2 * D)),
        full((D, D)), full((1, D)),                                       # cross-attn
        full((D, F)), full((1, F)), full((F, D)), full((1, D)),           # FFN
        full((3, 1, D)), full((3, 1, D)),                                 # LayerNorms
    ]

    semantics = ("parallel",) if num_steps > 1 else ("arbitrary",)

    out = pl.pallas_call(
        functools.partial(decoder_layer_kernel, mxu_dtype=mxu_dtype),
        out_shape=jax.ShapeDtypeStruct((B * S_p, D), jnp.float32),
        grid=(num_steps,),
        in_specs=in_specs,
        out_specs=pl.BlockSpec((bt * S_p, D), lambda i: (i, 0)),
        compiler_params=pltpu.CompilerParams(dimension_semantics=semantics),
    )(x2d, enc2d, dkey, ekey, drow,
      p["wqkv_sa"], p["bqkv_sa"], p["wo_sa"], p["bo_sa"],
      p["wq_ca"], p["bq_ca"], p["wkv_ca"], p["bkv_ca"], p["wo_ca"], p["bo_ca"],
      p["w1"], p["b1"], p["w2"], p["b2"],
      p["lng"], p["lnb"])

    return out.reshape(B, S_p, D)[:, :S, :]


# ---------------------------- pure-JAX reference ----------------------------
def ref_forward(x, enc, dec_mask, enc_mask, raw):
    """Mirror of the PyTorch module (eval mode), separate per-matrix weights."""
    P = lax.Precision.HIGHEST   # true-f32 reference matmuls for a tight comparison

    def mha(q_in, kv_in, key_mask, wq, bq, wk, bk, wv, bv, wo, bo, causal):
        q = jnp.dot(q_in, wq, precision=P) + bq
        k = jnp.dot(kv_in, wk, precision=P) + bk
        v = jnp.dot(kv_in, wv, precision=P) + bv
        sq, sk = q_in.shape[0], kv_in.shape[0]
        heads = []
        for h in range(H):
            lo = h * DH
            s = jnp.dot(q[:, lo:lo + DH], k[:, lo:lo + DH].T,
                        precision=P) / math.sqrt(DH)
            keep = jnp.broadcast_to(key_mask[None, :] > 0.5, (sq, sk))
            if causal:
                keep = keep & jnp.tril(jnp.ones((sq, sk), bool))
            s = jnp.where(keep, s, NEG_INF)
            s = s - jnp.max(s, axis=-1, keepdims=True)
            e = jnp.exp(s)
            p_attn = e / jnp.sum(e, axis=-1, keepdims=True)
            heads.append(jnp.dot(p_attn, v[:, lo:lo + DH], precision=P))
        return jnp.dot(jnp.concatenate(heads, axis=-1), wo, precision=P) + bo

    def one(xb, eb, dm, em):
        qm = dm[:, None]
        a = mha(xb, xb, dm, raw["sa_wq"], raw["sa_bq"], raw["sa_wk"], raw["sa_bk"],
                raw["sa_wv"], raw["sa_bv"], raw["sa_wo"], raw["sa_bo"], True)
        xb = _layer_norm(a * qm + xb, raw["ln1_g"], raw["ln1_b"])
        a = mha(xb, eb, em, raw["ca_wq"], raw["ca_bq"], raw["ca_wk"], raw["ca_bk"],
                raw["ca_wv"], raw["ca_bv"], raw["ca_wo"], raw["ca_bo"], False)
        xb = _layer_norm(a * qm + xb, raw["ln2_g"], raw["ln2_b"])
        hdn = jnp.maximum(jnp.dot(xb, raw["w1"], precision=P) + raw["b1"], 0.0)
        f = jnp.dot(hdn, raw["w2"], precision=P) + raw["b2"]
        xb = _layer_norm(f * qm + xb, raw["ln3_g"], raw["ln3_b"])
        return xb * qm

    return jax.vmap(one)(x, enc,
                         dec_mask.astype(jnp.float32), enc_mask.astype(jnp.float32))


if __name__ == "__main__":
    B, S, Se = 2, 8, 12
    key = jax.random.PRNGKey(0)
    ks = jax.random.split(key, 24)
    sc = 0.1

    def w(i, shape):
        return sc * jax.random.normal(ks[i], shape, jnp.float32)

    raw = dict(
        sa_wq=w(0, (D, D)), sa_bq=w(1, (D,)),
        sa_wk=w(2, (D, D)), sa_bk=w(3, (D,)),
        sa_wv=w(4, (D, D)), sa_bv=w(5, (D,)),
        sa_wo=w(6, (D, D)), sa_bo=w(7, (D,)),
        ca_wq=w(8, (D, D)), ca_bq=w(9, (D,)),
        ca_wk=w(10, (D, D)), ca_bk=w(11, (D,)),
        ca_wv=w(12, (D, D)), ca_bv=w(13, (D,)),
        ca_wo=w(14, (D, D)), ca_bo=w(15, (D,)),
        w1=w(16, (D, F)), b1=w(17, (F,)),
        w2=w(18, (F, D)), b2=w(19, (D,)),
        ln1_g=jnp.ones((D,), jnp.float32), ln1_b=jnp.zeros((D,), jnp.float32),
        ln2_g=jnp.ones((D,), jnp.float32), ln2_b=jnp.zeros((D,), jnp.float32),
        ln3_g=jnp.ones((D,), jnp.float32), ln3_b=jnp.zeros((D,), jnp.float32),
    )
    packed = pack_params(raw)   # default f32 path (meets the tight tolerance)

    x = jax.random.normal(ks[20], (B, S, D), jnp.float32)
    enc = jax.random.normal(ks[21], (B, Se, D), jnp.float32)
    dec_lens = jnp.array([S, S - 3])
    enc_lens = jnp.array([Se, Se - 4])
    dec_mask = (jnp.arange(S)[None, :] < dec_lens[:, None]).astype(jnp.float32)   # (B, S)
    enc_mask = (jnp.arange(Se)[None, :] < enc_lens[:, None]).astype(jnp.float32)  # (B, Se)

    out = jax.block_until_ready(
        transformer_decoder_layer(x, enc, dec_mask, enc_mask, packed))
    ref = jax.block_until_ready(ref_forward(x, enc, dec_mask, enc_mask, raw))

    assert out.shape == (B, S, D)
    err = float(jnp.max(jnp.abs(out - ref)))
    assert jnp.allclose(out, ref, atol=1e-4, rtol=1e-4), err
    print("KERNEL_OK")
</pallas_src>

<mosaic_0001>
module attributes {stable_mosaic.version = 11 : i64} {
  func.func @decoder_layer_kernel(%arg0: i32, %arg1: memref<16x32xf32, #tpu.memory_space<vmem>>, %arg2: memref<32x32xf32, #tpu.memory_space<vmem>>, %arg3: memref<2x1x8xf32, #tpu.memory_space<vmem>>, %arg4: memref<2x1x16xf32, #tpu.memory_space<vmem>>, %arg5: memref<16x1xf32, #tpu.memory_space<vmem>>, %arg6: memref<32x96xf32, #tpu.memory_space<vmem>>, %arg7: memref<1x96xf32, #tpu.memory_space<vmem>>, %arg8: memref<32x32xf32, #tpu.memory_space<vmem>>, %arg9: memref<1x32xf32, #tpu.memory_space<vmem>>, %arg10: memref<32x32xf32, #tpu.memory_space<vmem>>, %arg11: memref<1x32xf32, #tpu.memory_space<vmem>>, %arg12: memref<32x64xf32, #tpu.memory_space<vmem>>, %arg13: memref<1x64xf32, #tpu.memory_space<vmem>>, %arg14: memref<32x32xf32, #tpu.memory_space<vmem>>, %arg15: memref<1x32xf32, #tpu.memory_space<vmem>>, %arg16: memref<32x64xf32, #tpu.memory_space<vmem>>, %arg17: memref<1x64xf32, #tpu.memory_space<vmem>>, %arg18: memref<64x32xf32, #tpu.memory_space<vmem>>, %arg19: memref<1x32xf32, #tpu.memory_space<vmem>>, %arg20: memref<3x1x32xf32, #tpu.memory_space<vmem>>, %arg21: memref<3x1x32xf32, #tpu.memory_space<vmem>>, %arg22: memref<16x32xf32, #tpu.memory_space<vmem>>) attributes {dimension_semantics = [#tpu.dimension_semantics<arbitrary>], iteration_bounds = array<i64: 1>, scalar_prefetch = 0 : i64, scratch_operands = 0 : i64, tpu.core_type = #tpu.core_type<tc>, window_params = [{transform_indices = @transform_0, window_bounds = array<i64: 16, 32>}, {transform_indices = @transform_1, window_bounds = array<i64: 32, 32>}, {transform_indices = @transform_2, window_bounds = array<i64: 2, 1, 8>}, {transform_indices = @transform_3, window_bounds = array<i64: 2, 1, 16>}, {transform_indices = @transform_4, window_bounds = array<i64: 16, 1>}, {pipeline_mode = #tpu.pipeline_mode<synchronous>, transform_indices = @transform_5, window_bounds = array<i64: 32, 96>}, {pipeline_mode = #tpu.pipeline_mode<synchronous>, transform_indices = @transform_6, window_bounds = array<i64: 1, 96>}, {pipeline_mode = #tpu.pipeline_mode<synchronous>, transform_indices = @transform_7, window_bounds = array<i64: 32, 32>}, {pipeline_mode = #tpu.pipeline_mode<synchronous>, transform_indices = @transform_8, window_bounds = array<i64: 1, 32>}, {pipeline_mode = #tpu.pipeline_mode<synchronous>, transform_indices = @transform_9, window_bounds = array<i64: 32, 32>}, {pipeline_mode = #tpu.pipeline_mode<synchronous>, transform_indices = @transform_10, window_bounds = array<i64: 1, 32>}, {pipeline_mode = #tpu.pipeline_mode<synchronous>, transform_indices = @transform_11, window_bounds = array<i64: 32, 64>}, {pipeline_mode = #tpu.pipeline_mode<synchronous>, transform_indices = @transform_12, window_bounds = array<i64: 1, 64>}, {pipeline_mode = #tpu.pipeline_mode<synchronous>, transform_indices = @transform_13, window_bounds = array<i64: 32, 32>}, {pipeline_mode = #tpu.pipeline_mode<synchronous>, transform_indices = @transform_14, window_bounds = array<i64: 1, 32>}, {pipeline_mode = #tpu.pipeline_mode<synchronous>, transform_indices = @transform_15, window_bounds = array<i64: 32, 64>}, {pipeline_mode = #tpu.pipeline_mode<synchronous>, transform_indices = @transform_16, window_bounds = array<i64: 1, 64>}, {pipeline_mode = #tpu.pipeline_mode<synchronous>, transform_indices = @transform_17, window_bounds = array<i64: 64, 32>}, {pipeline_mode = #tpu.pipeline_mode<synchronous>, transform_indices = @transform_18, window_bounds = array<i64: 1, 32>}, {pipeline_mode = #tpu.pipeline_mode<synchronous>, transform_indices = @transform_19, window_bounds = array<i64: 3, 1, 32>}, {pipeline_mode = #tpu.pipeline_mode<synchronous>, transform_indices = @transform_20, window_bounds = array<i64: 3, 1, 32>}, {transform_indices = @transform_21, window_bounds = array<i64: 16, 32>}]} {
    %c0 = arith.constant 0 : index
    %c0_0 = arith.constant 0 : index
    %0 = vector.load %arg1[%c0, %c0_0] : memref<16x32xf32, #tpu.memory_space<vmem>>, vector<16x32xf32>
    %c0_1 = arith.constant 0 : index
    %c0_2 = arith.constant 0 : index
    %1 = vector.load %arg5[%c0_1, %c0_2] : memref<16x1xf32, #tpu.memory_space<vmem>>, vector<16x1xf32>
    %2 = vector.shape_cast %1 : vector<16x1xf32> to vector<16x1xf32>
    %3 = vector.broadcast %2 : vector<16x1xf32> to vector<16x32xf32>
    %c0_3 = arith.constant 0 : index
    %c0_4 = arith.constant 0 : index
    %4 = vector.load %arg6[%c0_3, %c0_4] : memref<32x96xf32, #tpu.memory_space<vmem>>, vector<32x96xf32>
    %c0_5 = arith.constant 0 : index
    %c0_6 = arith.constant 0 : index
    %5 = vector.load %arg7[%c0_5, %c0_6] : memref<1x96xf32, #tpu.memory_space<vmem>>, vector<1x96xf32>
    %cst = arith.constant dense<0.000000e+00> : vector<16x96xf32>
    %6 = tpu.matmul %0, %4, %cst {dimension_numbers = #tpu.dot_dimension_numbers<[1], [0], [0], [1], [0, 0, 1, 1], [], []>} : vector<16x32xf32>, vector<32x96xf32>, vector<16x96xf32> -> vector<16x96xf32>
    %7 = vector.broadcast %5 : vector<1x96xf32> to vector<16x96xf32>
    %8 = arith.addf %6, %7 : vector<16x96xf32>
    %9 = vector.extract_strided_slice %8 {offsets = [0, 0], sizes = [16, 32], strides = [1, 1]} : vector<16x96xf32> to vector<16x32xf32>
    %10 = vector.extract_strided_slice %8 {offsets = [0, 32], sizes = [16, 32], strides = [1, 1]} : vector<16x96xf32> to vector<16x32xf32>
    %11 = vector.extract_strided_slice %8 {offsets = [0, 64], sizes = [16, 32], strides = [1, 1]} : vector<16x96xf32> to vector<16x32xf32>
    %c0_7 = arith.constant 0 : index
    %c0_8 = arith.constant 0 : index
    %c0_9 = arith.constant 0 : index
    %12 = vector.load %arg3[%c0_7, %c0_8, %c0_9] : memref<2x1x8xf32, #tpu.memory_space<vmem>>, vector<2x1x8xf32>
    %cst_10 = arith.constant 0.353553385 : f32
    %13 = vector.broadcast %cst_10 : f32 to vector<16x32xf32>
    %14 = arith.mulf %9, %13 : vector<16x32xf32>
    %15 = vector.extract_strided_slice %14 {offsets = [0, 0], sizes = [16, 8], strides = [1, 1]} : vector<16x32xf32> to vector<16x8xf32>
    %16 = vector.shape_cast %15 : vector<16x8xf32> to vector<1x2x8x8xf32>
    %17 = vector.extract_strided_slice %14 {offsets = [0, 8], sizes = [16, 8], strides = [1, 1]} : vector<16x32xf32> to vector<16x8xf32>
    %18 = vector.shape_cast %17 : vector<16x8xf32> to vector<1x2x8x8xf32>
    %19 = vector.extract_strided_slice %14 {offsets = [0, 16], sizes = [16, 8], strides = [1, 1]} : vector<16x32xf32> to vector<16x8xf32>
    %20 = vector.shape_cast %19 : vector<16x8xf32> to vector<1x2x8x8xf32>
    %21 = vector.extract_strided_slice %14 {offsets = [0, 24], sizes = [16, 8], strides = [1, 1]} : vector<16x32xf32> to vector<16x8xf32>
    %22 = vector.shape_cast %21 : vector<16x8xf32> to vector<1x2x8x8xf32>
    %23 = tpu.concatenate %16, %18, %20, %22 in 0 : vector<1x2x8x8xf32>, vector<1x2x8x8xf32>, vector<1x2x8x8xf32>, vector<1x2x8x8xf32> -> vector<4x2x8x8xf32>
    %24 = vector.shape_cast %23 : vector<4x2x8x8xf32> to vector<8x8x8xf32>
    %25 = vector.extract_strided_slice %10 {offsets = [0, 0], sizes = [16, 8], strides = [1, 1]} : vector<16x32xf32> to vector<16x8xf32>
    %26 = vector.shape_cast %25 : vector<16x8xf32> to vector<1x2x8x8xf32>
    %27 = vector.extract_strided_slice %10 {offsets = [0, 8], sizes = [16, 8], strides = [1, 1]} : vector<16x32xf32> to vector<16x8xf32>
    %28 = vector.shape_cast %27 : vector<16x8xf32> to vector<1x2x8x8xf32>
    %29 = vector.extract_strided_slice %10 {offsets = [0, 16], sizes = [16, 8], strides = [1, 1]} : vector<16x32xf32> to vector<16x8xf32>
    %30 = vector.shape_cast %29 : vector<16x8xf32> to vector<1x2x8x8xf32>
    %31 = vector.extract_strided_slice %10 {offsets = [0, 24], sizes = [16, 8], strides = [1, 1]} : vector<16x32xf32> to vector<16x8xf32>
    %32 = vector.shape_cast %31 : vector<16x8xf32> to vector<1x2x8x8xf32>
    %33 = tpu.concatenate %26, %28, %30, %32 in 0 : vector<1x2x8x8xf32>, vector<1x2x8x8xf32>, vector<1x2x8x8xf32>, vector<1x2x8x8xf32> -> vector<4x2x8x8xf32>
    %34 = vector.shape_cast %33 : vector<4x2x8x8xf32> to vector<8x8x8xf32>
    %35 = vector.extract_strided_slice %11 {offsets = [0, 0], sizes = [16, 8], strides = [1, 1]} : vector<16x32xf32> to vector<16x8xf32>
    %36 = vector.shape_cast %35 : vector<16x8xf32> to vector<1x2x8x8xf32>
    %37 = vector.extract_strided_slice %11 {offsets = [0, 8], sizes = [16, 8], strides = [1, 1]} : vector<16x32xf32> to vector<16x8xf32>
    %38 = vector.shape_cast %37 : vector<16x8xf32> to vector<1x2x8x8xf32>
    %39 = vector.extract_strided_slice %11 {offsets = [0, 16], sizes = [16, 8], strides = [1, 1]} : vector<16x32xf32> to vector<16x8xf32>
    %40 = vector.shape_cast %39 : vector<16x8xf32> to vector<1x2x8x8xf32>
    %41 = vector.extract_strided_slice %11 {offsets = [0, 24], sizes = [16, 8], strides = [1, 1]} : vector<16x32xf32> to vector<16x8xf32>
    %42 = vector.shape_cast %41 : vector<16x8xf32> to vector<1x2x8x8xf32>
    %43 = tpu.concatenate %36, %38, %40, %42 in 0 : vector<1x2x8x8xf32>, vector<1x2x8x8xf32>, vector<1x2x8x8xf32>, vector<1x2x8x8xf32> -> vector<4x2x8x8xf32>
    %44 = vector.shape_cast %43 : vector<4x2x8x8xf32> to vector<8x8x8xf32>
    %45 = vector.shape_cast %12 : vector<2x1x8xf32> to vector<1x2x1x8xf32>
    %46 = vector.shape_cast %45 : vector<1x2x1x8xf32> to vector<1x2x1x8xf32>
    %47 = vector.broadcast %46 : vector<1x2x1x8xf32> to vector<4x2x1x8xf32>
    %48 = vector.shape_cast %47 : vector<4x2x1x8xf32> to vector<8x1x8xf32>
    %cst_11 = arith.constant 5.000000e-01 : f32
    %49 = vector.broadcast %cst_11 : f32 to vector<8x1x8xf32>
    %50 = arith.cmpf ogt, %48, %49 : vector<8x1x8xf32>
    %51 = tpu.iota {dimensions = array<i32: 0>} : vector<8x8xi32>
    %52 = tpu.iota {dimensions = array<i32: 1>} : vector<8x8xi32>
    %53 = arith.cmpi sle, %52, %51 : vector<8x8xi32>
    %54 = vector.shape_cast %53 : vector<8x8xi1> to vector<1x8x8xi1>
    %55 = vector.broadcast %50 : vector<8x1x8xi1> to vector<8x8x8xi1>
    %56 = vector.broadcast %54 : vector<1x8x8xi1> to vector<8x8x8xi1>
    %57 = arith.andi %55, %56 : vector<8x8x8xi1>
    "tpu.trace_start"() <{level = 10 : i32, message = "bqd,bkd->bqk"}> : () -> ()
    %cst_12 = arith.constant dense<0.000000e+00> : vector<8x8x8xf32>
    %58 = tpu.matmul %24, %34, %cst_12 {dimension_numbers = #tpu.dot_dimension_numbers<[2], [2], [1], [1], [0, 0, 0, 1, 1, 1], [0], [0]>} : vector<8x8x8xf32>, vector<8x8x8xf32>, vector<8x8x8xf32> -> vector<8x8x8xf32>
    %cst_13 = arith.constant -1.000000e+09 : f32
    "tpu.trace_stop"() : () -> ()
    %59 = vector.broadcast %cst_13 : f32 to vector<8x8x8xf32>
    %60 = arith.select %57, %58, %59 : vector<8x8x8xi1>, vector<8x8x8xf32>
    %cst_14 = arith.constant dense<0xFF800000> : vector<8x8xf32>
    %61 = vector.multi_reduction <maximumf>, %60, %cst_14 [2] : vector<8x8x8xf32> to vector<8x8xf32>
    %62 = vector.shape_cast %61 : vector<8x8xf32> to vector<8x8x1xf32>
    %63 = vector.broadcast %62 : vector<8x8x1xf32> to vector<8x8x8xf32>
    %64 = arith.subf %60, %63 : vector<8x8x8xf32>
    %65 = math.exp %64 : vector<8x8x8xf32>
    %cst_15 = arith.constant dense<0.000000e+00> : vector<8x8xf32>
    %66 = vector.multi_reduction <add>, %65, %cst_15 [2] : vector<8x8x8xf32> to vector<8x8xf32>
    %67 = vector.shape_cast %66 : vector<8x8xf32> to vector<8x8x1xf32>
    %68 = tpu.reciprocal %67 : vector<8x8x1xf32> -> vector<8x8x1xf32>
    %69 = vector.broadcast %68 : vector<8x8x1xf32> to vector<8x8x8xf32>
    %70 = arith.mulf %65, %69 : vector<8x8x8xf32>
    "tpu.trace_start"() <{level = 10 : i32, message = "bqk,bkd->bqd"}> : () -> ()
    %cst_16 = arith.constant dense<0.000000e+00> : vector<8x8x8xf32>
    %71 = tpu.matmul %70, %44, %cst_16 {dimension_numbers = #tpu.dot_dimension_numbers<[2], [1], [1], [2], [0, 0, 0, 1, 1, 2], [0], [0]>} : vector<8x8x8xf32>, vector<8x8x8xf32>, vector<8x8x8xf32> -> vector<8x8x8xf32>
    "tpu.trace_stop"() : () -> ()
    %72 = vector.extract_strided_slice %71 {offsets = [0, 0, 0], sizes = [2, 8, 8], strides = [1, 1, 1]} : vector<8x8x8xf32> to vector<2x8x8xf32>
    %73 = vector.shape_cast %72 : vector<2x8x8xf32> to vector<16x8xf32>
    %74 = vector.extract_strided_slice %71 {offsets = [2, 0, 0], sizes = [2, 8, 8], strides = [1, 1, 1]} : vector<8x8x8xf32> to vector<2x8x8xf32>
    %75 = vector.shape_cast %74 : vector<2x8x8xf32> to vector<16x8xf32>
    %76 = vector.extract_strided_slice %71 {offsets = [4, 0, 0], sizes = [2, 8, 8], strides = [1, 1, 1]} : vector<8x8x8xf32> to vector<2x8x8xf32>
    %77 = vector.shape_cast %76 : vector<2x8x8xf32> to vector<16x8xf32>
    %78 = vector.extract_strided_slice %71 {offsets = [6, 0, 0], sizes = [2, 8, 8], strides = [1, 1, 1]} : vector<8x8x8xf32> to vector<2x8x8xf32>
    %79 = vector.shape_cast %78 : vector<2x8x8xf32> to vector<16x8xf32>
    %80 = tpu.concatenate %73, %75, %77, %79 in 1 : vector<16x8xf32>, vector<16x8xf32>, vector<16x8xf32>, vector<16x8xf32> -> vector<16x32xf32>
    %c0_17 = arith.constant 0 : index
    %c0_18 = arith.constant 0 : index
    %81 = vector.load %arg8[%c0_17, %c0_18] : memref<32x32xf32, #tpu.memory_space<vmem>>, vector<32x32xf32>
    %c0_19 = arith.constant 0 : index
    %c0_20 = arith.constant 0 : index
    %82 = vector.load %arg9[%c0_19, %c0_20] : memref<1x32xf32, #tpu.memory_space<vmem>>, vector<1x32xf32>
    %cst_21 = arith.constant dense<0.000000e+00> : vector<16x32xf32>
    %83 = tpu.matmul %80, %81, %cst_21 {dimension_numbers = #tpu.dot_dimension_numbers<[1], [0], [0], [1], [0, 0, 1, 1], [], []>} : vector<16x32xf32>, vector<32x32xf32>, vector<16x32xf32> -> vector<16x32xf32>
    %84 = vector.broadcast %82 : vector<1x32xf32> to vector<16x32xf32>
    %85 = arith.addf %83, %84 : vector<16x32xf32>
    %86 = arith.mulf %85, %3 : vector<16x32xf32>
    %87 = arith.addf %86, %0 : vector<16x32xf32>
    %c0_22 = arith.constant 0 : index
    %c0_23 = arith.constant 0 : index
    %c0_24 = arith.constant 0 : index
    %88 = vector.load %arg20[%c0_22, %c0_23, %c0_24] : memref<3x1x32xf32, #tpu.memory_space<vmem>>, vector<1x1x32xf32>
    %89 = vector.shape_cast %88 : vector<1x1x32xf32> to vector<1x32xf32>
    %c0_25 = arith.constant 0 : index
    %c0_26 = arith.constant 0 : index
    %c0_27 = arith.constant 0 : index
    %90 = vector.load %arg21[%c0_25, %c0_26, %c0_27] : memref<3x1x32xf32, #tpu.memory_space<vmem>>, vector<1x1x32xf32>
    %91 = vector.shape_cast %90 : vector<1x1x32xf32> to vector<1x32xf32>
    %cst_28 = arith.constant dense<0.000000e+00> : vector<16xf32>
    %92 = vector.multi_reduction <add>, %87, %cst_28 [1] : vector<16x32xf32> to vector<16xf32>
    %93 = vector.shape_cast %92 : vector<16xf32> to vector<16x1xf32>
    %cst_29 = arith.constant 3.200000e+01 : f32
    %94 = vector.broadcast %cst_29 : f32 to vector<16x1xf32>
    %95 = arith.divf %93, %94 : vector<16x1xf32>
    %96 = vector.broadcast %95 : vector<16x1xf32> to vector<16x32xf32>
    %97 = arith.subf %87, %96 : vector<16x32xf32>
    %98 = arith.mulf %97, %97 : vector<16x32xf32>
    %cst_30 = arith.constant dense<0.000000e+00> : vector<16xf32>
    %99 = vector.multi_reduction <add>, %98, %cst_30 [1] : vector<16x32xf32> to vector<16xf32>
    %100 = vector.shape_cast %99 : vector<16xf32> to vector<16x1xf32>
    %cst_31 = arith.constant 3.200000e+01 : f32
    %101 = vector.broadcast %cst_31 : f32 to vector<16x1xf32>
    %102 = arith.divf %100, %101 : vector<16x1xf32>
    %103 = vector.broadcast %95 : vector<16x1xf32> to vector<16x32xf32>
    %104 = arith.subf %87, %103 : vector<16x32xf32>
    %cst_32 = arith.constant 9.99999974E-6 : f32
    %105 = vector.broadcast %cst_32 : f32 to vector<16x1xf32>
    %106 = arith.addf %102, %105 : vector<16x1xf32>
    %107 = math.rsqrt %106 : vector<16x1xf32>
    %108 = vector.broadcast %107 : vector<16x1xf32> to vector<16x32xf32>
    %109 = arith.mulf %104, %108 : vector<16x32xf32>
    %110 = vector.broadcast %89 : vector<1x32xf32> to vector<16x32xf32>
    %111 = arith.mulf %109, %110 : vector<16x32xf32>
    %112 = vector.broadcast %91 : vector<1x32xf32> to vector<16x32xf32>
    %113 = arith.addf %111, %112 : vector<16x32xf32>
    %c0_33 = arith.constant 0 : index
    %c0_34 = arith.constant 0 : index
    %114 = vector.load %arg10[%c0_33, %c0_34] : memref<32x32xf32, #tpu.memory_space<vmem>>, vector<32x32xf32>
    %c0_35 = arith.constant 0 : index
    %c0_36 = arith.constant 0 : index
    %115 = vector.load %arg11[%c0_35, %c0_36] : memref<1x32xf32, #tpu.memory_space<vmem>>, vector<1x32xf32>
    %cst_37 = arith.constant dense<0.000000e+00> : vector<16x32xf32>
    %116 = tpu.matmul %113, %114, %cst_37 {dimension_numbers = #tpu.dot_dimension_numbers<[1], [0], [0], [1], [0, 0, 1, 1], [], []>} : vector<16x32xf32>, vector<32x32xf32>, vector<16x32xf32> -> vector<16x32xf32>
    %117 = vector.broadcast %115 : vector<1x32xf32> to vector<16x32xf32>
    %118 = arith.addf %116, %117 : vector<16x32xf32>
    %c0_38 = arith.constant 0 : index
    %c0_39 = arith.constant 0 : index
    %119 = vector.load %arg2[%c0_38, %c0_39] : memref<32x32xf32, #tpu.memory_space<vmem>>, vector<32x32xf32>
    %c0_40 = arith.constant 0 : index
    %c0_41 = arith.constant 0 : index
    %120 = vector.load %arg12[%c0_40, %c0_41] : memref<32x64xf32, #tpu.memory_space<vmem>>, vector<32x64xf32>
    %c0_42 = arith.constant 0 : index
    %c0_43 = arith.constant 0 : index
    %121 = vector.load %arg13[%c0_42, %c0_43] : memref<1x64xf32, #tpu.memory_space<vmem>>, vector<1x64xf32>
    %cst_44 = arith.constant dense<0.000000e+00> : vector<32x64xf32>
    %122 = tpu.matmul %119, %120, %cst_44 {dimension_numbers = #tpu.dot_dimension_numbers<[1], [0], [0], [1], [0, 0, 1, 1], [], []>} : vector<32x32xf32>, vector<32x64xf32>, vector<32x64xf32> -> vector<32x64xf32>
    %123 = vector.broadcast %121 : vector<1x64xf32> to vector<32x64xf32>
    %124 = arith.addf %122, %123 : vector<32x64xf32>
    %125 = vector.extract_strided_slice %124 {offsets = [0, 0], sizes = [32, 32], strides = [1, 1]} : vector<32x64xf32> to vector<32x32xf32>
    %126 = vector.extract_strided_slice %124 {offsets = [0, 32], sizes = [32, 32], strides = [1, 1]} : vector<32x64xf32> to vector<32x32xf32>
    %c0_45 = arith.constant 0 : index
    %c0_46 = arith.constant 0 : index
    %c0_47 = arith.constant 0 : index
    %127 = vector.load %arg4[%c0_45, %c0_46, %c0_47] : memref<2x1x16xf32, #tpu.memory_space<vmem>>, vector<2x1x16xf32>
    %cst_48 = arith.constant 0.353553385 : f32
    %128 = vector.broadcast %cst_48 : f32 to vector<16x32xf32>
    %129 = arith.mulf %118, %128 : vector<16x32xf32>
    %130 = vector.extract_strided_slice %129 {offsets = [0, 0], sizes = [16, 8], strides = [1, 1]} : vector<16x32xf32> to vector<16x8xf32>
    %131 = vector.shape_cast %130 : vector<16x8xf32> to vector<1x2x8x8xf32>
    %132 = vector.extract_strided_slice %129 {offsets = [0, 8], sizes = [16, 8], strides = [1, 1]} : vector<16x32xf32> to vector<16x8xf32>
    %133 = vector.shape_cast %132 : vector<16x8xf32> to vector<1x2x8x8xf32>
    %134 = vector.extract_strided_slice %129 {offsets = [0, 16], sizes = [16, 8], strides = [1, 1]} : vector<16x32xf32> to vector<16x8xf32>
    %135 = vector.shape_cast %134 : vector<16x8xf32> to vector<1x2x8x8xf32>
    %136 = vector.extract_strided_slice %129 {offsets = [0, 24], sizes = [16, 8], strides = [1, 1]} : vector<16x32xf32> to vector<16x8xf32>
    %137 = vector.shape_cast %136 : vector<16x8xf32> to vector<1x2x8x8xf32>
    %138 = tpu.concatenate %131, %133, %135, %137 in 0 : vector<1x2x8x8xf32>, vector<1x2x8x8xf32>, vector<1x2x8x8xf32>, vector<1x2x8x8xf32> -> vector<4x2x8x8xf32>
    %139 = vector.shape_cast %138 : vector<4x2x8x8xf32> to vector<8x8x8xf32>
    %140 = vector.extract_strided_slice %125 {offsets = [0, 0], sizes = [32, 8], strides = [1, 1]} : vector<32x32xf32> to vector<32x8xf32>
    %141 = vector.shape_cast %140 : vector<32x8xf32> to vector<1x2x16x8xf32>
    %142 = vector.extract_strided_slice %125 {offsets = [0, 8], sizes = [32, 8], strides = [1, 1]} : vector<32x32xf32> to vector<32x8xf32>
    %143 = vector.shape_cast %142 : vector<32x8xf32> to vector<1x2x16x8xf32>
    %144 = vector.extract_strided_slice %125 {offsets = [0, 16], sizes = [32, 8], strides = [1, 1]} : vector<32x32xf32> to vector<32x8xf32>
    %145 = vector.shape_cast %144 : vector<32x8xf32> to vector<1x2x16x8xf32>
    %146 = vector.extract_strided_slice %125 {offsets = [0, 24], sizes = [32, 8], strides = [1, 1]} : vector<32x32xf32> to vector<32x8xf32>
    %147 = vector.shape_cast %146 : vector<32x8xf32> to vector<1x2x16x8xf32>
    %148 = tpu.concatenate %141, %143, %145, %147 in 0 : vector<1x2x16x8xf32>, vector<1x2x16x8xf32>, vector<1x2x16x8xf32>, vector<1x2x16x8xf32> -> vector<4x2x16x8xf32>
    %149 = vector.shape_cast %148 : vector<4x2x16x8xf32> to vector<8x16x8xf32>
    %150 = vector.extract_strided_slice %126 {offsets = [0, 0], sizes = [32, 8], strides = [1, 1]} : vector<32x32xf32> to vector<32x8xf32>
    %151 = vector.shape_cast %150 : vector<32x8xf32> to vector<1x2x16x8xf32>
    %152 = vector.extract_strided_slice %126 {offsets = [0, 8], sizes = [32, 8], strides = [1, 1]} : vector<32x32xf32> to vector<32x8xf32>
    %153 = vector.shape_cast %152 : vector<32x8xf32> to vector<1x2x16x8xf32>
    %154 = vector.extract_strided_slice %126 {offsets = [0, 16], sizes = [32, 8], strides = [1, 1]} : vector<32x32xf32> to vector<32x8xf32>
    %155 = vector.shape_cast %154 : vector<32x8xf32> to vector<1x2x16x8xf32>
    %156 = vector.extract_strided_slice %126 {offsets = [0, 24], sizes = [32, 8], strides = [1, 1]} : vector<32x32xf32> to vector<32x8xf32>
    %157 = vector.shape_cast %156 : vector<32x8xf32> to vector<1x2x16x8xf32>
    %158 = tpu.concatenate %151, %153, %155, %157 in 0 : vector<1x2x16x8xf32>, vector<1x2x16x8xf32>, vector<1x2x16x8xf32>, vector<1x2x16x8xf32> -> vector<4x2x16x8xf32>
    %159 = vector.shape_cast %158 : vector<4x2x16x8xf32> to vector<8x16x8xf32>
    %160 = vector.shape_cast %127 : vector<2x1x16xf32> to vector<1x2x1x16xf32>
    %161 = vector.shape_cast %160 : vector<1x2x1x16xf32> to vector<1x2x1x16xf32>
    %162 = vector.broadcast %161 : vector<1x2x1x16xf32> to vector<4x2x1x16xf32>
    %163 = vector.shape_cast %162 : vector<4x2x1x16xf32> to vector<8x1x16xf32>
    %cst_49 = arith.constant 5.000000e-01 : f32
    %164 = vector.broadcast %cst_49 : f32 to vector<8x1x16xf32>
    %165 = arith.cmpf ogt, %163, %164 : vector<8x1x16xf32>
    "tpu.trace_start"() <{level = 10 : i32, message = "bqd,bkd->bqk"}> : () -> ()
    %cst_50 = arith.constant dense<0.000000e+00> : vector<8x8x16xf32>
    %166 = tpu.matmul %139, %149, %cst_50 {dimension_numbers = #tpu.dot_dimension_numbers<[2], [2], [1], [1], [0, 0, 0, 1, 1, 1], [0], [0]>} : vector<8x8x8xf32>, vector<8x16x8xf32>, vector<8x8x16xf32> -> vector<8x8x16xf32>
    %cst_51 = arith.constant -1.000000e+09 : f32
    "tpu.trace_stop"() : () -> ()
    %167 = vector.shape_cast %165 : vector<8x1x16xi1> to vector<8x1x16xi1>
    %168 = vector.broadcast %167 : vector<8x1x16xi1> to vector<8x8x16xi1>
    %169 = vector.broadcast %cst_51 : f32 to vector<8x8x16xf32>
    %170 = arith.select %168, %166, %169 : vector<8x8x16xi1>, vector<8x8x16xf32>
    %cst_52 = arith.constant dense<0xFF800000> : vector<8x8xf32>
    %171 = vector.multi_reduction <maximumf>, %170, %cst_52 [2] : vector<8x8x16xf32> to vector<8x8xf32>
    %172 = vector.shape_cast %171 : vector<8x8xf32> to vector<8x8x1xf32>
    %173 = vector.broadcast %172 : vector<8x8x1xf32> to vector<8x8x16xf32>
    %174 = arith.subf %170, %173 : vector<8x8x16xf32>
    %175 = math.exp %174 : vector<8x8x16xf32>
    %cst_53 = arith.constant dense<0.000000e+00> : vector<8x8xf32>
    %176 = vector.multi_reduction <add>, %175, %cst_53 [2] : vector<8x8x16xf32> to vector<8x8xf32>
    %177 = vector.shape_cast %176 : vector<8x8xf32> to vector<8x8x1xf32>
    %178 = tpu.reciprocal %177 : vector<8x8x1xf32> -> vector<8x8x1xf32>
    %179 = vector.broadcast %178 : vector<8x8x1xf32> to vector<8x8x16xf32>
    %180 = arith.mulf %175, %179 : vector<8x8x16xf32>
    "tpu.trace_start"() <{level = 10 : i32, message = "bqk,bkd->bqd"}> : () -> ()
    %cst_54 = arith.constant dense<0.000000e+00> : vector<8x8x8xf32>
    %181 = tpu.matmul %180, %159, %cst_54 {dimension_numbers = #tpu.dot_dimension_numbers<[2], [1], [1], [2], [0, 0, 0, 1, 1, 2], [0], [0]>} : vector<8x8x16xf32>, vector<8x16x8xf32>, vector<8x8x8xf32> -> vector<8x8x8xf32>
    "tpu.trace_stop"() : () -> ()
    %182 = vector.extract_strided_slice %181 {offsets = [0, 0, 0], sizes = [2, 8, 8], strides = [1, 1, 1]} : vector<8x8x8xf32> to vector<2x8x8xf32>
    %183 = vector.shape_cast %182 : vector<2x8x8xf32> to vector<16x8xf32>
    %184 = vector.extract_strided_slice %181 {offsets = [2, 0, 0], sizes = [2, 8, 8], strides = [1, 1, 1]} : vector<8x8x8xf32> to vector<2x8x8xf32>
    %185 = vector.shape_cast %184 : vector<2x8x8xf32> to vector<16x8xf32>
    %186 = vector.extract_strided_slice %181 {offsets = [4, 0, 0], sizes = [2, 8, 8], strides = [1, 1, 1]} : vector<8x8x8xf32> to vector<2x8x8xf32>
    %187 = vector.shape_cast %186 : vector<2x8x8xf32> to vector<16x8xf32>
    %188 = vector.extract_strided_slice %181 {offsets = [6, 0, 0], sizes = [2, 8, 8], strides = [1, 1, 1]} : vector<8x8x8xf32> to vector<2x8x8xf32>
    %189 = vector.shape_cast %188 : vector<2x8x8xf32> to vector<16x8xf32>
    %190 = tpu.concatenate %183, %185, %187, %189 in 1 : vector<16x8xf32>, vector<16x8xf32>, vector<16x8xf32>, vector<16x8xf32> -> vector<16x32xf32>
    %c0_55 = arith.constant 0 : index
    %c0_56 = arith.constant 0 : index
    %191 = vector.load %arg14[%c0_55, %c0_56] : memref<32x32xf32, #tpu.memory_space<vmem>>, vector<32x32xf32>
    %c0_57 = arith.constant 0 : index
    %c0_58 = arith.constant 0 : index
    %192 = vector.load %arg15[%c0_57, %c0_58] : memref<1x32xf32, #tpu.memory_space<vmem>>, vector<1x32xf32>
    %cst_59 = arith.constant dense<0.000000e+00> : vector<16x32xf32>
    %193 = tpu.matmul %190, %191, %cst_59 {dimension_numbers = #tpu.dot_dimension_numbers<[1], [0], [0], [1], [0, 0, 1, 1], [], []>} : vector<16x32xf32>, vector<32x32xf32>, vector<16x32xf32> -> vector<16x32xf32>
    %194 = vector.broadcast %192 : vector<1x32xf32> to vector<16x32xf32>
    %195 = arith.addf %193, %194 : vector<16x32xf32>
    %196 = arith.mulf %195, %3 : vector<16x32xf32>
    %197 = arith.addf %196, %113 : vector<16x32xf32>
    %c1 = arith.constant 1 : index
    %c0_60 = arith.constant 0 : index
    %c0_61 = arith.constant 0 : index
    %198 = vector.load %arg20[%c1, %c0_60, %c0_61] : memref<3x1x32xf32, #tpu.memory_space<vmem>>, vector<1x1x32xf32>
    %199 = vector.shape_cast %198 : vector<1x1x32xf32> to vector<1x32xf32>
    %c1_62 = arith.constant 1 : index
    %c0_63 = arith.constant 0 : index
    %c0_64 = arith.constant 0 : index
    %200 = vector.load %arg21[%c1_62, %c0_63, %c0_64] : memref<3x1x32xf32, #tpu.memory_space<vmem>>, vector<1x1x32xf32>
    %201 = vector.shape_cast %200 : vector<1x1x32xf32> to vector<1x32xf32>
    %cst_65 = arith.constant dense<0.000000e+00> : vector<16xf32>
    %202 = vector.multi_reduction <add>, %197, %cst_65 [1] : vector<16x32xf32> to vector<16xf32>
    %203 = vector.shape_cast %202 : vector<16xf32> to vector<16x1xf32>
    %cst_66 = arith.constant 3.200000e+01 : f32
    %204 = vector.broadcast %cst_66 : f32 to vector<16x1xf32>
    %205 = arith.divf %203, %204 : vector<16x1xf32>
    %206 = vector.broadcast %205 : vector<16x1xf32> to vector<16x32xf32>
    %207 = arith.subf %197, %206 : vector<16x32xf32>
    %208 = arith.mulf %207, %207 : vector<16x32xf32>
    %cst_67 = arith.constant dense<0.000000e+00> : vector<16xf32>
    %209 = vector.multi_reduction <add>, %208, %cst_67 [1] : vector<16x32xf32> to vector<16xf32>
    %210 = vector.shape_cast %209 : vector<16xf32> to vector<16x1xf32>
    %cst_68 = arith.constant 3.200000e+01 : f32
    %211 = vector.broadcast %cst_68 : f32 to vector<16x1xf32>
    %212 = arith.divf %210, %211 : vector<16x1xf32>
    %213 = vector.broadcast %205 : vector<16x1xf32> to vector<16x32xf32>
    %214 = arith.subf %197, %213 : vector<16x32xf32>
    %cst_69 = arith.constant 9.99999974E-6 : f32
    %215 = vector.broadcast %cst_69 : f32 to vector<16x1xf32>
    %216 = arith.addf %212, %215 : vector<16x1xf32>
    %217 = math.rsqrt %216 : vector<16x1xf32>
    %218 = vector.broadcast %217 : vector<16x1xf32> to vector<16x32xf32>
    %219 = arith.mulf %214, %218 : vector<16x32xf32>
    %220 = vector.broadcast %199 : vector<1x32xf32> to vector<16x32xf32>
    %221 = arith.mulf %219, %220 : vector<16x32xf32>
    %222 = vector.broadcast %201 : vector<1x32xf32> to vector<16x32xf32>
    %223 = arith.addf %221, %222 : vector<16x32xf32>
    %c0_70 = arith.constant 0 : index
    %c0_71 = arith.constant 0 : index
    %224 = vector.load %arg16[%c0_70, %c0_71] : memref<32x64xf32, #tpu.memory_space<vmem>>, vector<32x64xf32>
    %c0_72 = arith.constant 0 : index
    %c0_73 = arith.constant 0 : index
    %225 = vector.load %arg17[%c0_72, %c0_73] : memref<1x64xf32, #tpu.memory_space<vmem>>, vector<1x64xf32>
    %cst_74 = arith.constant dense<0.000000e+00> : vector<16x64xf32>
    %226 = tpu.matmul %223, %224, %cst_74 {dimension_numbers = #tpu.dot_dimension_numbers<[1], [0], [0], [1], [0, 0, 1, 1], [], []>} : vector<16x32xf32>, vector<32x64xf32>, vector<16x64xf32> -> vector<16x64xf32>
    %227 = vector.broadcast %225 : vector<1x64xf32> to vector<16x64xf32>
    %228 = arith.addf %226, %227 : vector<16x64xf32>
    %cst_75 = arith.constant 0.000000e+00 : f32
    %229 = vector.broadcast %cst_75 : f32 to vector<16x64xf32>
    %230 = arith.maximumf %228, %229 : vector<16x64xf32>
    %c0_76 = arith.constant 0 : index
    %c0_77 = arith.constant 0 : index
    %231 = vector.load %arg18[%c0_76, %c0_77] : memref<64x32xf32, #tpu.memory_space<vmem>>, vector<64x32xf32>
    %c0_78 = arith.constant 0 : index
    %c0_79 = arith.constant 0 : index
    %232 = vector.load %arg19[%c0_78, %c0_79] : memref<1x32xf32, #tpu.memory_space<vmem>>, vector<1x32xf32>
    %cst_80 = arith.constant dense<0.000000e+00> : vector<16x32xf32>
    %233 = tpu.matmul %230, %231, %cst_80 {dimension_numbers = #tpu.dot_dimension_numbers<[1], [0], [0], [1], [0, 0, 1, 1], [], []>} : vector<16x64xf32>, vector<64x32xf32>, vector<16x32xf32> -> vector<16x32xf32>
    %234 = vector.broadcast %232 : vector<1x32xf32> to vector<16x32xf32>
    %235 = arith.addf %233, %234 : vector<16x32xf32>
    %236 = arith.mulf %235, %3 : vector<16x32xf32>
    %237 = arith.addf %236, %223 : vector<16x32xf32>
    %c2 = arith.constant 2 : index
    %c0_81 = arith.constant 0 : index
    %c0_82 = arith.constant 0 : index
    %238 = vector.load %arg20[%c2, %c0_81, %c0_82] : memref<3x1x32xf32, #tpu.memory_space<vmem>>, vector<1x1x32xf32>
    %239 = vector.shape_cast %238 : vector<1x1x32xf32> to vector<1x32xf32>
    %c2_83 = arith.constant 2 : index
    %c0_84 = arith.constant 0 : index
    %c0_85 = arith.constant 0 : index
    %240 = vector.load %arg21[%c2_83, %c0_84, %c0_85] : memref<3x1x32xf32, #tpu.memory_space<vmem>>, vector<1x1x32xf32>
    %241 = vector.shape_cast %240 : vector<1x1x32xf32> to vector<1x32xf32>
    %cst_86 = arith.constant dense<0.000000e+00> : vector<16xf32>
    %242 = vector.multi_reduction <add>, %237, %cst_86 [1] : vector<16x32xf32> to vector<16xf32>
    %243 = vector.shape_cast %242 : vector<16xf32> to vector<16x1xf32>
    %cst_87 = arith.constant 3.200000e+01 : f32
    %244 = vector.broadcast %cst_87 : f32 to vector<16x1xf32>
    %245 = arith.divf %243, %244 : vector<16x1xf32>
    %246 = vector.broadcast %245 : vector<16x1xf32> to vector<16x32xf32>
    %247 = arith.subf %237, %246 : vector<16x32xf32>
    %248 = arith.mulf %247, %247 : vector<16x32xf32>
    %cst_88 = arith.constant dense<0.000000e+00> : vector<16xf32>
    %249 = vector.multi_reduction <add>, %248, %cst_88 [1] : vector<16x32xf32> to vector<16xf32>
    %250 = vector.shape_cast %249 : vector<16xf32> to vector<16x1xf32>
    %cst_89 = arith.constant 3.200000e+01 : f32
    %251 = vector.broadcast %cst_89 : f32 to vector<16x1xf32>
    %252 = arith.divf %250, %251 : vector<16x1xf32>
    %253 = vector.broadcast %245 : vector<16x1xf32> to vector<16x32xf32>
    %254 = arith.subf %237, %253 : vector<16x32xf32>
    %cst_90 = arith.constant 9.99999974E-6 : f32
    %255 = vector.broadcast %cst_90 : f32 to vector<16x1xf32>
    %256 = arith.addf %252, %255 : vector<16x1xf32>
    %257 = math.rsqrt %256 : vector<16x1xf32>
    %258 = vector.broadcast %257 : vector<16x1xf32> to vector<16x32xf32>
    %259 = arith.mulf %254, %258 : vector<16x32xf32>
    %260 = vector.broadcast %239 : vector<1x32xf32> to vector<16x32xf32>
    %261 = arith.mulf %259, %260 : vector<16x32xf32>
    %262 = vector.broadcast %241 : vector<1x32xf32> to vector<16x32xf32>
    %263 = arith.addf %261, %262 : vector<16x32xf32>
    %264 = arith.mulf %263, %3 : vector<16x32xf32>
    %c0_91 = arith.constant 0 : index
    %c0_92 = arith.constant 0 : index
    %265 = vector.load %arg22[%c0_91, %c0_92] : memref<16x32xf32, #tpu.memory_space<vmem>>, vector<16x32xf32>
    tpu.vector_store %arg22[%c0_91, %c0_92], %264 {strides = array<i32>} : memref<16x32xf32, #tpu.memory_space<vmem>>, vector<16x32xf32>,
    return
  }
  func.func @transform_0(%arg0: i32) -> (i32, i32) {
    %c0_i32 = arith.constant 0 : i32
    %c0_i32_0 = arith.constant 0 : i32
    return %arg0, %c0_i32 : i32, i32
  }
  func.func @transform_1(%arg0: i32) -> (i32, i32) {
    %c0_i32 = arith.constant 0 : i32
    %c0_i32_0 = arith.constant 0 : i32
    return %arg0, %c0_i32 : i32, i32
  }
  func.func @transform_2(%arg0: i32) -> (i32, i32, i32) {
    %c0_i32 = arith.constant 0 : i32
    %c0_i32_0 = arith.constant 0 : i32
    %c0_i32_1 = arith.constant 0 : i32
    return %arg0, %c0_i32, %c0_i32_0 : i32, i32, i32
  }
  func.func @transform_3(%arg0: i32) -> (i32, i32, i32) {
    %c0_i32 = arith.constant 0 : i32
    %c0_i32_0 = arith.constant 0 : i32
    %c0_i32_1 = arith.constant 0 : i32
    return %arg0, %c0_i32, %c0_i32_0 : i32, i32, i32
  }
  func.func @transform_4(%arg0: i32) -> (i32, i32) {
    %c0_i32 = arith.constant 0 : i32
    %c0_i32_0 = arith.constant 0 : i32
    return %arg0, %c0_i32 : i32, i32
  }
  func.func @transform_5(%arg0: i32) -> (i32, i32) {
    %c0_i32 = arith.constant 0 : i32
    %c0_i32_0 = arith.constant 0 : i32
    %c0_i32_1 = arith.constant 0 : i32
    return %c0_i32, %c0_i32_0 : i32, i32
  }
  func.func @transform_6(%arg0: i32) -> (i32, i32) {
    %c0_i32 = arith.constant 0 : i32
    %c0_i32_0 = arith.constant 0 : i32
    %c0_i32_1 = arith.constant 0 : i32
    return %c0_i32, %c0_i32_0 : i32, i32
  }
  func.func @transform_7(%arg0: i32) -> (i32, i32) {
    %c0_i32 = arith.constant 0 : i32
    %c0_i32_0 = arith.constant 0 : i32
    %c0_i32_1 = arith.constant 0 : i32
    return %c0_i32, %c0_i32_0 : i32, i32
  }
  func.func @transform_8(%arg0: i32) -> (i32, i32) {
    %c0_i32 = arith.constant 0 : i32
    %c0_i32_0 = arith.constant 0 : i32
    %c0_i32_1 = arith.constant 0 : i32
    return %c0_i32, %c0_i32_0 : i32, i32
  }
  func.func @transform_9(%arg0: i32) -> (i32, i32) {
    %c0_i32 = arith.constant 0 : i32
    %c0_i32_0 = arith.constant 0 : i32
    %c0_i32_1 = arith.constant 0 : i32
    return %c0_i32, %c0_i32_0 : i32, i32
  }
  func.func @transform_10(%arg0: i32) -> (i32, i32) {
    %c0_i32 = arith.constant 0 : i32
    %c0_i32_0 = arith.constant 0 : i32
    %c0_i32_1 = arith.constant 0 : i32
    return %c0_i32, %c0_i32_0 : i32, i32
  }
  func.func @transform_11(%arg0: i32) -> (i32, i32) {
    %c0_i32 = arith.constant 0 : i32
    %c0_i32_0 = arith.constant 0 : i32
    %c0_i32_1 = arith.constant 0 : i32
    return %c0_i32, %c0_i32_0 : i32, i32
  }
  func.func @transform_12(%arg0: i32) -> (i32, i32) {
    %c0_i32 = arith.constant 0 : i32
    %c0_i32_0 = arith.constant 0 : i32
    %c0_i32_1 = arith.constant 0 : i32
    return %c0_i32, %c0_i32_0 : i32, i32
  }
  func.func @transform_13(%arg0: i32) -> (i32, i32) {
    %c0_i32 = arith.constant 0 : i32
    %c0_i32_0 = arith.constant 0 : i32
    %c0_i32_1 = arith.constant 0 : i32
    return %c0_i32, %c0_i32_0 : i32, i32
  }
  func.func @transform_14(%arg0: i32) -> (i32, i32) {
    %c0_i32 = arith.constant 0 : i32
    %c0_i32_0 = arith.constant 0 : i32
    %c0_i32_1 = arith.constant 0 : i32
    return %c0_i32, %c0_i32_0 : i32, i32
  }
  func.func @transform_15(%arg0: i32) -> (i32, i32) {
    %c0_i32 = arith.constant 0 : i32
    %c0_i32_0 = arith.constant 0 : i32
    %c0_i32_1 = arith.constant 0 : i32
    return %c0_i32, %c0_i32_0 : i32, i32
  }
  func.func @transform_16(%arg0: i32) -> (i32, i32) {
    %c0_i32 = arith.constant 0 : i32
    %c0_i32_0 = arith.constant 0 : i32
    %c0_i32_1 = arith.constant 0 : i32
    return %c0_i32, %c0_i32_0 : i32, i32
  }
  func.func @transform_17(%arg0: i32) -> (i32, i32) {
    %c0_i32 = arith.constant 0 : i32
    %c0_i32_0 = arith.constant 0 : i32
    %c0_i32_1 = arith.constant 0 : i32
    return %c0_i32, %c0_i32_0 : i32, i32
  }
  func.func @transform_18(%arg0: i32) -> (i32, i32) {
    %c0_i32 = arith.constant 0 : i32
    %c0_i32_0 = arith.constant 0 : i32
    %c0_i32_1 = arith.constant 0 : i32
    return %c0_i32, %c0_i32_0 : i32, i32
  }
  func.func @transform_19(%arg0: i32) -> (i32, i32, i32) {
    %c0_i32 = arith.constant 0 : i32
    %c0_i32_0 = arith.constant 0 : i32
    %c0_i32_1 = arith.constant 0 : i32
    %c0_i32_2 = arith.constant 0 : i32
    return %c0_i32, %c0_i32_0, %c0_i32_1 : i32, i32, i32
  }
  func.func @transform_20(%arg0: i32) -> (i32, i32, i32) {
    %c0_i32 = arith.constant 0 : i32
    %c0_i32_0 = arith.constant 0 : i32
    %c0_i32_1 = arith.constant 0 : i32
    %c0_i32_2 = arith.constant 0 : i32
    return %c0_i32, %c0_i32_0, %c0_i32_1 : i32, i32, i32
  }
  func.func @transform_21(%arg0: i32) -> (i32, i32) {
    %c0_i32 = arith.constant 0 : i32
    %c0_i32_0 = arith.constant 0 : i32
    return %arg0, %c0_i32 : i32, i32
  }
}

</mosaic_0001>

<llo_original>
// kernel: tpu_custom_call.1
$region0: #{tpu_custom_call.1}
  #allocation0 [shape = 'u32[]', space=smem, size = 0x4, offset = 0x4, fixed_abs, tag = 'smem constant byte address 0x4 - core index']
  #allocation1 [shape = 'u32[144,128]{1,0:T(1,128)}', space=vmem, size = 0x12000, scoped, tag = 'internal scratch']
  %s0 = inlined_call_operand.hbm [shape: f32[16,32], index: 0, kind: input, shape index: {}]
  %s1 = inlined_call_operand.vmem [shape: f32[32,32], index: 1, kind: input, shape index: {}]
  %s2 = inlined_call_operand.vmem [shape: f32[2,1,8], index: 2, kind: input, shape index: {}]
  %s3 = inlined_call_operand.hbm [shape: f32[2,1,16], index: 3, kind: input, shape index: {}]
  %s4 = inlined_call_operand.vmem [shape: f32[16,1], index: 4, kind: input, shape index: {}]
  %s5 = inlined_call_operand.vmem [shape: f32[32,96], index: 5, kind: input, shape index: {}]
  %s6 = inlined_call_operand.hbm [shape: f32[1,96], index: 6, kind: input, shape index: {}]
  %s7 = inlined_call_operand.vmem [shape: f32[32,32], index: 7, kind: input, shape index: {}]
  %s8 = inlined_call_operand.hbm [shape: f32[1,32], index: 8, kind: input, shape index: {}]
  %s9 = inlined_call_operand.hbm [shape: f32[32,32], index: 9, kind: input, shape index: {}]
  %s10 = inlined_call_operand.hbm [shape: f32[1,32], index: 10, kind: input, shape index: {}]
  %s11 = inlined_call_operand.hbm [shape: f32[32,64], index: 11, kind: input, shape index: {}]
  %s12 = inlined_call_operand.hbm [shape: f32[1,64], index: 12, kind: input, shape index: {}]
  %s13 = inlined_call_operand.vmem [shape: f32[32,32], index: 13, kind: input, shape index: {}]
  %s14 = inlined_call_operand.hbm [shape: f32[1,32], index: 14, kind: input, shape index: {}]
  %s15 = inlined_call_operand.hbm [shape: f32[32,64], index: 15, kind: input, shape index: {}]
  %s16 = inlined_call_operand.vmem [shape: f32[1,64], index: 16, kind: input, shape index: {}]
  %s17 = inlined_call_operand.vmem [shape: f32[64,32], index: 17, kind: input, shape index: {}]
  %s18 = inlined_call_operand.vmem [shape: f32[1,32], index: 18, kind: input, shape index: {}]
  %s19 = inlined_call_operand.vmem [shape: f32[3,1,32], index: 19, kind: input, shape index: {}]
  %s20 = inlined_call_operand.vmem [shape: f32[3,1,32], index: 20, kind: input, shape index: {}]
  %s21 = inlined_call_operand.hbm [shape: f32[16,32], index: 21, kind: output, shape index: {}]
  %s22 = sld [smem:[#allocation0]]
  $region134: #{tpu_custom_call.1} parent=0
    _
  %s24 = ssub.s32 1, %s22
  %s25 = scalar_select 0, %s24, %s22
  $region1: #{tpu_custom_call.1} parent=0
    #allocation2 [shape = 'u8[8192]{0}', space=vmem, size = 0x2000, scoped, tag = 'input window, operand 0, single buffered']
    #allocation3 [shape = 's32[1]{0}', space=sflag, size = 0x4, scoped, tag = 'scoped memory for tpu_custom_call.1']
    #allocation4 [shape = 's32[1]{0}', space=sflag, size = 0x4, scoped, tag = 'scoped memory for tpu_custom_call.1']
    #allocation5 [shape = 'u8[1024]{0}', space=vmem, size = 0x400, scoped, tag = 'input window, operand 3, single buffered']
    #allocation6 [shape = 's32[1]{0}', space=sflag, size = 0x4, scoped, tag = 'scoped memory for tpu_custom_call.1']
    #allocation7 [shape = 'u8[512]{0}', space=vmem, size = 0x400, scoped, tag = 'input window, operand 6, single buffered']
    #allocation8 [shape = 'u8[512]{0}', space=vmem, size = 0x400, scoped, tag = 'input window, operand 8, single buffered']
    #allocation9 [shape = 's32[1]{0}', space=sflag, size = 0x4, scoped, tag = 'scoped memory for tpu_custom_call.1']
    #allocation10 [shape = 'u8[16384]{0}', space=vmem, size = 0x4000, scoped, tag = 'input window, operand 9, single buffered']
    #allocation11 [shape = 'u8[512]{0}', space=vmem, size = 0x400, scoped, tag = 'input window, operand 10, single buffered']
    #allocation12 [shape = 's32[1]{0}', space=sflag, size = 0x4, scoped, tag = 'scoped memory for tpu_custom_call.1']
    #allocation13 [shape = 'u8[16384]{0}', space=vmem, size = 0x4000, scoped, tag = 'input window, operand 11, single buffered']
    #allocation14 [shape = 'u8[512]{0}', space=vmem, size = 0x400, scoped, tag = 'input window, operand 12, single buffered']
    #allocation15 [shape = 's32[1]{0}', space=sflag, size = 0x4, scoped, tag = 'scoped memory for tpu_custom_call.1']
    #allocation16 [shape = 'u8[512]{0}', space=vmem, size = 0x400, scoped, tag = 'input window, operand 14, single buffered']
    #allocation17 [shape = 'u8[16384]{0}', space=vmem, size = 0x4000, scoped, tag = 'input window, operand 15, single buffered']
    #allocation18 [shape = 's32[1]{0}', space=sflag, size = 0x4, scoped, tag = 'scoped memory for tpu_custom_call.1']
    #allocation19 [shape = 'u8[8192]{0}', space=vmem, size = 0x2000, scoped, tag = 'output window, operand 0, single buffered']
    %26 = vsyncpa [#allocation3], 0
    %27 = vsyncpa [#allocation6], 0
    %28 = vsyncpa [#allocation9], 0
    %29 = vsyncpa [#allocation12], 0
    %30 = vsyncpa [#allocation15], 0
    %31 = vsyncpa [#allocation18], 0
    %32 = vsyncpa [#allocation4], 0
    // Predicated region
    $region2: #{tpu_custom_call.1} parent=1 // pred_check
      _
    $region3: #{tpu_custom_call.1} parent=1 // pred_check_branch
      %34 = sbr.rel (0) target = $region5
    $region4: #{tpu_custom_call.1} parent=1 // pred_region
      %s36 = ssub.s32 256, 256
      %37 = vsyncadd [#allocation3], %s36
      %s38 = sshll.u32 [#allocation2], 4
      %s39 = int_to_ptr.vmem [resolvable:$true] %s38
      %44 = dma.hbm_to_vmem [thread:$0]  %s0, 256, %s39, [#allocation3], 128, 128, 8
    $region5: #{tpu_custom_call.1} parent=1 // pred_fallthru
      _
    // Predicated region
    $region6: #{tpu_custom_call.1} parent=1 // pred_check
      _
    $region7: #{tpu_custom_call.1} parent=1 // pred_check_branch
      %46 = sbr.rel (0) target = $region9
    $region8: #{tpu_custom_call.1} parent=1 // pred_region
      _
    $region9: #{tpu_custom_call.1} parent=1 // pred_fallthru
      _
    // Predicated region
    $region10: #{tpu_custom_call.1} parent=1 // pred_check
      _
    $region11: #{tpu_custom_call.1} parent=1 // pred_check_branch
      %48 = sbr.rel (0) target = $region13
    $region12: #{tpu_custom_call.1} parent=1 // pred_region
      _
    $region13: #{tpu_custom_call.1} parent=1 // pred_fallthru
      _
    // Predicated region
    $region14: #{tpu_custom_call.1} parent=1 // pred_check
      _
    $region15: #{tpu_custom_call.1} parent=1 // pred_check_branch
      %50 = sbr.rel (0) target = $region17
    $region16: #{tpu_custom_call.1} parent=1 // pred_region
      %s52 = ssub.s32 32, 32
      %53 = vsyncadd [#allocation6], %s52
      %s54 = sshll.u32 [#allocation5], 4
      %s55 = int_to_ptr.vmem [resolvable:$true] %s54
      %60 = dma.hbm_to_vmem [thread:$0]  %s3, 32, %s55, [#allocation6], 16, 16, 1
    $region17: #{tpu_custom_call.1} parent=1 // pred_fallthru
      _
    // Predicated region
    $region18: #{tpu_custom_call.1} parent=1 // pred_check
      _
    $region19: #{tpu_custom_call.1} parent=1 // pred_check_branch
      %62 = sbr.rel (0) target = $region21
    $region20: #{tpu_custom_call.1} parent=1 // pred_region
      _
    $region21: #{tpu_custom_call.1} parent=1 // pred_fallthru
      _
    // Predicated region
    $region22: #{tpu_custom_call.1} parent=1 // pred_check
      _
    $region23: #{tpu_custom_call.1} parent=1 // pred_check_branch
      %64 = sbr.rel (0) target = $region25
    $region24: #{tpu_custom_call.1} parent=1 // pred_region
      _
    $region25: #{tpu_custom_call.1} parent=1 // pred_fallthru
      _
    // Predicated region
    $region26: #{tpu_custom_call.1} parent=1 // pred_check
      _
    $region27: #{tpu_custom_call.1} parent=1 // pred_check_branch
      %66 = sbr.rel (0) target = $region29
    $region28: #{tpu_custom_call.1} parent=1 // pred_region
      %s68 = ssub.s32 16, 16
      %69 = vsyncadd [#allocation6], %s68
      %s71 = sshll.u32 [#allocation7], 4
      %s72 = int_to_ptr.vmem [resolvable:$true] %s71
      %74 = dma.hbm_to_vmem [thread:$0]  %s6, 16, %s72, [#allocation6]
    $region29: #{tpu_custom_call.1} parent=1 // pred_fallthru
      _
    // Predicated region
    $region30: #{tpu_custom_call.1} parent=1 // pred_check
      _
    $region31: #{tpu_custom_call.1} parent=1 // pred_check_branch
      %76 = sbr.rel (0) target = $region33
    $region32: #{tpu_custom_call.1} parent=1 // pred_region
      _
    $region33: #{tpu_custom_call.1} parent=1 // pred_fallthru
      _
    // Predicated region
    $region34: #{tpu_custom_call.1} parent=1 // pred_check
      _
    $region35: #{tpu_custom_call.1} parent=1 // pred_check_branch
      %78 = sbr.rel (0) target = $region37
    $region36: #{tpu_custom_call.1} parent=1 // pred_region
      %s80 = ssub.s32 16, 16
      %81 = vsyncadd [#allocation9], %s80
      %s83 = sshll.u32 [#allocation8], 4
      %s84 = int_to_ptr.vmem [resolvable:$true] %s83
      %86 = dma.hbm_to_vmem [thread:$0]  %s8, 16, %s84, [#allocation9]
    $region37: #{tpu_custom_call.1} parent=1 // pred_fallthru
      _
    // Predicated region
    $region38: #{tpu_custom_call.1} parent=1 // pred_check
      _
    $region39: #{tpu_custom_call.1} parent=1 // pred_check_branch
      %88 = sbr.rel (0) target = $region41
    $region40: #{tpu_custom_call.1} parent=1 // pred_region
      %s90 = ssub.s32 512, 512
      %91 = vsyncadd [#allocation9], %s90
      %s92 = sshll.u32 [#allocation10], 4
      %s93 = int_to_ptr.vmem [resolvable:$true] %s92
      %98 = dma.hbm_to_vmem [thread:$0]  %s9, 512, %s93, [#allocation9], 128, 128, 8
    $region41: #{tpu_custom_call.1} parent=1 // pred_fallthru
      _
    // Predicated region
    $region42: #{tpu_custom_call.1} parent=1 // pred_check
      _
    $region43: #{tpu_custom_call.1} parent=1 // pred_check_branch
      %100 = sbr.rel (0) target = $region45
    $region44: #{tpu_custom_call.1} parent=1 // pred_region
      %s102 = ssub.s32 16, 16
      %103 = vsyncadd [#allocation12], %s102
      %s105 = sshll.u32 [#allocation11], 4
      %s106 = int_to_ptr.vmem [resolvable:$true] %s105
      %108 = dma.hbm_to_vmem [thread:$0]  %s10, 16, %s106, [#allocation12]
    $region45: #{tpu_custom_call.1} parent=1 // pred_fallthru
      _
    // Predicated region
    $region46: #{tpu_custom_call.1} parent=1 // pred_check
      _
    $region47: #{tpu_custom_call.1} parent=1 // pred_check_branch
      %110 = sbr.rel (0) target = $region49
    $region48: #{tpu_custom_call.1} parent=1 // pred_region
      %s112 = ssub.s32 512, 512
      %113 = vsyncadd [#allocation12], %s112
      %s114 = sshll.u32 [#allocation13], 4
      %s115 = int_to_ptr.vmem [resolvable:$true] %s114
      %120 = dma.hbm_to_vmem [thread:$0]  %s11, 512, %s115, [#allocation12], 128, 128, 8
    $region49: #{tpu_custom_call.1} parent=1 // pred_fallthru
      _
    // Predicated region
    $region50: #{tpu_custom_call.1} parent=1 // pred_check
      _
    $region51: #{tpu_custom_call.1} parent=1 // pred_check_branch
      %122 = sbr.rel (0) target = $region53
    $region52: #{tpu_custom_call.1} parent=1 // pred_region
      %s124 = ssub.s32 16, 16
      %125 = vsyncadd [#allocation15], %s124
      %s127 = sshll.u32 [#allocation14], 4
      %s128 = int_to_ptr.vmem [resolvable:$true] %s127
      %130 = dma.hbm_to_vmem [thread:$0]  %s12, 16, %s128, [#allocation15]
    $region53: #{tpu_custom_call.1} parent=1 // pred_fallthru
      _
    // Predicated region
    $region54: #{tpu_custom_call.1} parent=1 // pred_check
      _
    $region55: #{tpu_custom_call.1} parent=1 // pred_check_branch
      %132 = sbr.rel (0) target = $region57
    $region56: #{tpu_custom_call.1} parent=1 // pred_region
      _
    $region57: #{tpu_custom_call.1} parent=1 // pred_fallthru
      _
    // Predicated region
    $region58: #{tpu_custom_call.1} parent=1 // pred_check
      _
    $region59: #{tpu_custom_call.1} parent=1 // pred_check_branch
      %134 = sbr.rel (0) target = $region61
    $region60: #{tpu_custom_call.1} parent=1 // pred_region
      %s136 = ssub.s32 16, 16
      %137 = vsyncadd [#allocation15], %s136
      %s139 = sshll.u32 [#allocation16], 4
      %s140 = int_to_ptr.vmem [resolvable:$true] %s139
      %142 = dma.hbm_to_vmem [thread:$0]  %s14, 16, %s140, [#allocation15]
    $region61: #{tpu_custom_call.1} parent=1 // pred_fallthru
      _
    // Predicated region
    $region62: #{tpu_custom_call.1} parent=1 // pred_check
      _
    $region63: #{tpu_custom_call.1} parent=1 // pred_check_branch
      %144 = sbr.rel (0) target = $region65
    $region64: #{tpu_custom_call.1} parent=1 // pred_region
      %s146 = ssub.s32 512, 512
      %147 = vsyncadd [#allocation18], %s146
      %s148 = sshll.u32 [#allocation17], 4
      %s149 = int_to_ptr.vmem [resolvable:$true] %s148
      %154 = dma.hbm_to_vmem [thread:$0]  %s15, 512, %s149, [#allocation18], 128, 128, 8
    $region65: #{tpu_custom_call.1} parent=1 // pred_fallthru
      _
    // Predicated region
    $region66: #{tpu_custom_call.1} parent=1 // pred_check
      _
    $region67: #{tpu_custom_call.1} parent=1 // pred_check_branch
      %156 = sbr.rel (0) target = $region69
    $region68: #{tpu_custom_call.1} parent=1 // pred_region
      _
    $region69: #{tpu_custom_call.1} parent=1 // pred_fallthru
      _
    // Predicated region
    $region70: #{tpu_custom_call.1} parent=1 // pred_check
      _
    $region71: #{tpu_custom_call.1} parent=1 // pred_check_branch
      %158 = sbr.rel (0) target = $region73
    $region72: #{tpu_custom_call.1} parent=1 // pred_region
      _
    $region73: #{tpu_custom_call.1} parent=1 // pred_fallthru
      _
    // Predicated region
    $region74: #{tpu_custom_call.1} parent=1 // pred_check
      _
    $region75: #{tpu_custom_call.1} parent=1 // pred_check_branch
      %160 = sbr.rel (0) target = $region77
    $region76: #{tpu_custom_call.1} parent=1 // pred_region
      _
    $region77: #{tpu_custom_call.1} parent=1 // pred_fallthru
      _
    // Predicated region
    $region78: #{tpu_custom_call.1} parent=1 // pred_check
      _
    $region79: #{tpu_custom_call.1} parent=1 // pred_check_branch
      %162 = sbr.rel (0) target = $region81
    $region80: #{tpu_custom_call.1} parent=1 // pred_region
      _
    $region81: #{tpu_custom_call.1} parent=1 // pred_fallthru
      _
    // Predicated region
    $region82: #{tpu_custom_call.1} parent=1 // pred_check
      _
    $region83: #{tpu_custom_call.1} parent=1 // pred_check_branch
      %164 = sbr.rel (0) target = $region85
    $region84: #{tpu_custom_call.1} parent=1 // pred_region
      _
    $region85: #{tpu_custom_call.1} parent=1 // pred_fallthru
      _
    // Predicated region
    $region86: #{tpu_custom_call.1} parent=1 // pred_check
      _
    $region87: #{tpu_custom_call.1} parent=1 // pred_check_branch
      %166 = sbr.rel (0) target = $region89
    $region88: #{tpu_custom_call.1} parent=1 // pred_region
      %167 = dma.done [#allocation3], 256
    $region89: #{tpu_custom_call.1} parent=1 // pred_fallthru
      _
    // Predicated region
    $region90: #{tpu_custom_call.1} parent=1 // pred_check
      _
    $region91: #{tpu_custom_call.1} parent=1 // pred_check_branch
      %169 = sbr.rel (0) target = $region93
    $region92: #{tpu_custom_call.1} parent=1 // pred_region
      %170 = dma.done [#allocation6], 32
    $region93: #{tpu_custom_call.1} parent=1 // pred_fallthru
      _
    // Predicated region
    $region94: #{tpu_custom_call.1} parent=1 // pred_check
      _
    $region95: #{tpu_custom_call.1} parent=1 // pred_check_branch
      %172 = sbr.rel (0) target = $region97
    $region96: #{tpu_custom_call.1} parent=1 // pred_region
      %173 = dma.done [#allocation6], 16
    $region97: #{tpu_custom_call.1} parent=1 // pred_fallthru
      _
    // Predicated region
    $region98: #{tpu_custom_call.1} parent=1 // pred_check
      _
    $region99: #{tpu_custom_call.1} parent=1 // pred_check_branch
      %175 = sbr.rel (0) target = $region101
    $region100: #{tpu_custom_call.1} parent=1 // pred_region
      %176 = dma.done [#allocation9], 16
    $region101: #{tpu_custom_call.1} parent=1 // pred_fallthru
      _
    // Predicated region
    $region102: #{tpu_custom_call.1} parent=1 // pred_check
      _
    $region103: #{tpu_custom_call.1} parent=1 // pred_check_branch
      %178 = sbr.rel (0) target = $region105
    $region104: #{tpu_custom_call.1} parent=1 // pred_region
      %179 = dma.done [#allocation9], 512
    $region105: #{tpu_custom_call.1} parent=1 // pred_fallthru
      _
    // Predicated region
    $region106: #{tpu_custom_call.1} parent=1 // pred_check
      _
    $region107: #{tpu_custom_call.1} parent=1 // pred_check_branch
      %181 = sbr.rel (0) target = $region109
    $region108: #{tpu_custom_call.1} parent=1 // pred_region
      %182 = dma.done [#allocation12], 16
    $region109: #{tpu_custom_call.1} parent=1 // pred_fallthru
      _
    // Predicated region
    $region110: #{tpu_custom_call.1} parent=1 // pred_check
      _
    $region111: #{tpu_custom_call.1} parent=1 // pred_check_branch
      %184 = sbr.rel (0) target = $region113
    $region112: #{tpu_custom_call.1} parent=1 // pred_region
      %185 = dma.done [#allocation12], 512
    $region113: #{tpu_custom_call.1} parent=1 // pred_fallthru
      _
    // Predicated region
    $region114: #{tpu_custom_call.1} parent=1 // pred_check
      _
    $region115: #{tpu_custom_call.1} parent=1 // pred_check_branch
      %187 = sbr.rel (0) target = $region117
    $region116: #{tpu_custom_call.1} parent=1 // pred_region
      %188 = dma.done [#allocation15], 16
    $region117: #{tpu_custom_call.1} parent=1 // pred_fallthru
      _
    // Predicated region
    $region118: #{tpu_custom_call.1} parent=1 // pred_check
      _
    $region119: #{tpu_custom_call.1} parent=1 // pred_check_branch
      %190 = sbr.rel (0) target = $region121
    $region120: #{tpu_custom_call.1} parent=1 // pred_region
      %191 = dma.done [#allocation15], 16
    $region121: #{tpu_custom_call.1} parent=1 // pred_fallthru
      _
    // Predicated region
    $region122: #{tpu_custom_call.1} parent=1 // pred_check
      _
    $region123: #{tpu_custom_call.1} parent=1 // pred_check_branch
      %193 = sbr.rel (0) target = $region125
    $region124: #{tpu_custom_call.1} parent=1 // pred_region
      %194 = dma.done [#allocation18], 512
    $region125: #{tpu_custom_call.1} parent=1 // pred_fallthru
      _
    %v195 = vld [vmem:[#allocation2] sm:$0xff]
    %v196 = vld [vmem:[#allocation2 + $0x8] sm:$0xff]
    %v197 = vld [vmem:[%s4] sm:$0xff]
    %v198 = vld [vmem:[%s4 + $0x8] sm:$0xff]
    %200 = vset.pattern.permute.xlu0 0
    %201 = vperm.xlu0 %200, %v197
    %v202 = vpop.permute.xlu0 %201
    %205 = vset.pattern.permute.xlu0 0
    %206 = vperm.xlu0 %205, %v198
    %v207 = vpop.permute.xlu0 %206
    %v209 = vld [vmem:[%s5] sm:$0xff]
    %v210 = vld [vmem:[%s5 + $0x8] sm:$0xff]
    %v211 = vld [vmem:[%s5 + $0x10] sm:$0xff]
    %v212 = vld [vmem:[%s5 + $0x18] sm:$0xff]
    %v213 = vld [vmem:[#allocation7] sm:$0x1]
    %v215 = vlaneseq
    %v216 = vshrl.u32 %v215, 7
    %v217 = vsub.s32 0, %v216
    %v218 = vrot.slane %v213, %v217
    %vm220 = vcmask 261120
    %v222 = vsel %vm220, %v195, 0
    %v225 = vsel %vm220, %v196, 0
    %227 = vmatprep.subr.mxu0 0.0
    %228 = vmatpush1.msra.mxu0 %v209
    %229 = vmatprep.subr.mxu0 0.0
    %230 = vmatpush1.msra.mxu0 %v210
    %231 = vmatprep.subr.mxu0 0.0
    %232 = vmatpush1.msra.mxu0 %v211
    %233 = vmatprep.subr.mxu0 0.0
    %234 = vmatpush1.msra.mxu0 %v212
    %235 = vmatprep.subr.mxu0 0.0
    %236 = vmatpush1.msra.mxu0 0.0
    %237 = vmatprep.subr.mxu0 0.0
    %238 = vmatpush1.msra.mxu0 0.0
    %239 = vmatprep.subr.mxu0 0.0
    %240 = vmatpush1.msra.mxu0 0.0
    %241 = vmatprep.subr.mxu0 0.0
    %242 = vmatpush1.msra.mxu0 0.0
    %243 = vmatprep.subr.mxu0 0.0
    %244 = vmatpush1.msra.mxu0 0.0
    %245 = vmatprep.subr.mxu0 0.0
    %246 = vmatpush1.msra.mxu0 0.0
    %247 = vmatprep.subr.mxu0 0.0
    %248 = vmatpush1.msra.mxu0 0.0
    %249 = vmatprep.subr.mxu0 0.0
    %250 = vmatpush1.msra.mxu0 0.0
    %251 = vmatprep.subr.mxu0 0.0
    %252 = vmatpush1.msra.mxu0 0.0
    %253 = vmatprep.subr.mxu0 0.0
    %254 = vmatpush1.msra.mxu0 0.0
    %255 = vmatprep.subr.mxu0 0.0
    %256 = vmatpush1.msra.mxu0 0.0
    %257 = vmatprep.subr.mxu0 0.0
    %258 = vmatpush1.msra.mxu0 0.0
    %259 = vmatprep.subr.mxu0 0.0
    %260 = vmatpush1.msra.mxu0 0.0
    %261 = vmatprep.subr.mxu0 0.0
    %262 = vmatpush1.msra.mxu0 0.0
    %263 = vmatprep.subr.mxu0 0.0
    %264 = vmatpush1.msra.mxu0 0.0
    %265 = vmatprep.subr.mxu0 0.0
    %266 = vmatpush1.msra.mxu0 0.0
    %267 = vmatprep.subr.mxu0 0.0
    %268 = vmatpush1.msra.mxu0 0.0
    %269 = vmatprep.subr.mxu0 0.0
    %270 = vmatpush1.msra.mxu0 0.0
    %271 = vmatprep.subr.mxu0 0.0
    %272 = vmatpush1.msra.mxu0 0.0
    %273 = vmatprep.subr.mxu0 0.0
    %274 = vmatpush1.msra.mxu0 0.0
    %275 = vmatprep.subr.mxu0 0.0
    %276 = vmatpush1.msra.mxu0 0.0
    %277 = vmatprep.subr.mxu0 0.0
    %278 = vmatpush1.msra.mxu0 0.0
    %279 = vmatprep.subr.mxu0 0.0
    %280 = vmatpush1.msra.mxu0 0.0
    %281 = vmatprep.subr.mxu0 0.0
    %282 = vmatpush1.msra.mxu0 0.0
    %283 = vmatprep.subr.mxu0 0.0
    %284 = vmatpush1.msra.mxu0 0.0
    %285 = vmatprep.subr.mxu0 0.0
    %286 = vmatpush1.msra.mxu0 0.0
    %287 = vmatprep.subr.mxu0 0.0
    %288 = vmatpush1.msra.mxu0 0.0
    %289 = vmatprep.subr.mxu0 0.0
    %290 = vmatpush1.msra.mxu0 0.0
    %291 = vmatprep.mubr.f32.mxu0 0.0
    %292 = vmatmul.mubr.f32.gmra.mrb[0].mxu0 %v222
    %v293 = vpop.f32.mrb[0].mxu0
    %v294 = vadd.f32 %v218, %v293
    %v295 = vpop.f32.mrb[0].mxu0
    %296 = vmatprep.mubr.f32.mxu0 0.0
    %297 = vmatmul.mubr.f32.gmra.mrb[0].mxu0 %v225
    %v298 = vpop.f32.mrb[0].mxu0
    %v299 = vadd.f32 %v218, %v298
    %v300 = vpop.f32.mrb[0].mxu0
    %301 = vdwg.mxu0
    %v302 = vld [vmem:[%s2] sm:$0x1]
    %v303 = vld [vmem:[%s2 + $0x1] sm:$0x1]
    %v304 = vmul.f32 %v294, 0.35355338
    %v305 = vmul.f32 %v299, 0.35355338
    %308 = vrot.lane.b32.xlu0 %v304, 120
    %v309 = vpop.permute.xlu0 %308
    %310 = vrot.lane.b32.xlu0 %v305, 120
    %v311 = vpop.permute.xlu0 %310
    %312 = vrot.lane.b32.xlu0 %v304, 112
    %v313 = vpop.permute.xlu0 %312
    %314 = vrot.lane.b32.xlu0 %v305, 112
    %v315 = vpop.permute.xlu0 %314
    %316 = vrot.lane.b32.xlu0 %v304, 104
    %v317 = vpop.permute.xlu0 %316
    %318 = vrot.lane.b32.xlu0 %v305, 104
    %v319 = vpop.permute.xlu0 %318
    %322 = vrot.lane.b32.xlu0 %v294, 120
    %v323 = vpop.permute.xlu0 %322
    %324 = vrot.lane.b32.xlu0 %v299, 120
    %v325 = vpop.permute.xlu0 %324
    %326 = vrot.lane.b32.xlu0 %v294, 112
    %v327 = vpop.permute.xlu0 %326
    %328 = vrot.lane.b32.xlu0 %v299, 112
    %v329 = vpop.permute.xlu0 %328
    %330 = vrot.lane.b32.xlu0 %v294, 104
    %v331 = vpop.permute.xlu0 %330
    %332 = vrot.lane.b32.xlu0 %v299, 104
    %v333 = vpop.permute.xlu0 %332
    %vm334 = vcmp.gt.f32.partialorder %v302, 0.5
    %vm335 = vcmp.gt.f32.partialorder %v303, 0.5
    %v336 = vlaneseq
    %v337 = vshrl.u32 %v336, 7
    %v338 = vlaneseq
    %v339 = vand.u32 %v338, 127
    %vm340 = vcmp.le.s32.totalorder %v339, %v337
    %v341 = vsel %vm334, 1, 0
    %v342 = vsel %vm335, 1, 0
    %v343 = vlaneseq
    %v344 = vshrl.u32 %v343, 7
    %v345 = vsub.s32 0, %v344
    %v346 = vrot.slane %v341, %v345
    %v347 = vlaneseq
    %v348 = vshrl.u32 %v347, 7
    %v349 = vsub.s32 0, %v348
    %v350 = vrot.slane %v342, %v349
    %vm351 = vcmp.eq.s32.totalorder %v346, 1
    %vm352 = vcmp.eq.s32.totalorder %v350, 1
    %v353 = vsel %vm340, 1, 0
    %vm354 = vcmp.eq.s32.totalorder %v353, 1
    %vm355 = vmand %vm351, %vm354
    %vm356 = vmand %vm352, %vm354
    %357 = vrot.lane.b32.xlu0 %v294, 96
    %v358 = vpop.permute.xlu0 %357
    %vm359 = vcmask 64512
    %v360 = vsel %vm359, %v304, 0
    %v362 = vsel %vm359, %v358, 0
    %364 = vmatprep.subr.mxu0 0.0
    %365 = vmatpush1.xpose.msra.mxu0 %v362
    %366 = vmatprep.subr.mxu0 0.0
    %367 = vmatpush1.xpose.msra.mxu0 0.0
    %368 = vmatprep.subr.mxu0 0.0
    %369 = vmatpush1.xpose.msra.mxu0 0.0
    %370 = vmatprep.subr.mxu0 0.0
    %371 = vmatpush1.xpose.msra.mxu0 0.0
    %372 = vmatprep.subr.mxu0 0.0
    %373 = vmatpush1.xpose.msra.mxu0 0.0
    %374 = vmatprep.subr.mxu0 0.0
    %375 = vmatpush1.xpose.msra.mxu0 0.0
    %376 = vmatprep.subr.mxu0 0.0
    %377 = vmatpush1.xpose.msra.mxu0 0.0
    %378 = vmatprep.subr.mxu0 0.0
    %379 = vmatpush1.xpose.msra.mxu0 0.0
    %380 = vmatprep.subr.mxu0 0.0
    %381 = vmatpush1.xpose.msra.mxu0 0.0
    %382 = vmatprep.subr.mxu0 0.0
    %383 = vmatpush1.xpose.msra.mxu0 0.0
    %384 = vmatprep.subr.mxu0 0.0
    %385 = vmatpush1.xpose.msra.mxu0 0.0
    %386 = vmatprep.subr.mxu0 0.0
    %387 = vmatpush1.xpose.msra.mxu0 0.0
    %388 = vmatprep.subr.mxu0 0.0
    %389 = vmatpush1.xpose.msra.mxu0 0.0
    %390 = vmatprep.subr.mxu0 0.0
    %391 = vmatpush1.xpose.msra.mxu0 0.0
    %392 = vmatprep.subr.mxu0 0.0
    %393 = vmatpush1.xpose.msra.mxu0 0.0
    %394 = vmatprep.subr.mxu0 0.0
    %395 = vmatpush1.xpose.msra.mxu0 0.0
    %396 = vmatprep.subr.mxu0 0.0
    %397 = vmatpush1.xpose.msra.mxu0 0.0
    %398 = vmatprep.subr.mxu0 0.0
    %399 = vmatpush1.xpose.msra.mxu0 0.0
    %400 = vmatprep.subr.mxu0 0.0
    %401 = vmatpush1.xpose.msra.mxu0 0.0
    %402 = vmatprep.subr.mxu0 0.0
    %403 = vmatpush1.xpose.msra.mxu0 0.0
    %404 = vmatprep.subr.mxu0 0.0
    %405 = vmatpush1.xpose.msra.mxu0 0.0
    %406 = vmatprep.subr.mxu0 0.0
    %407 = vmatpush1.xpose.msra.mxu0 0.0
    %408 = vmatprep.subr.mxu0 0.0
    %409 = vmatpush1.xpose.msra.mxu0 0.0
    %410 = vmatprep.subr.mxu0 0.0
    %411 = vmatpush1.xpose.msra.mxu0 0.0
    %412 = vmatprep.subr.mxu0 0.0
    %413 = vmatpush1.xpose.msra.mxu0 0.0
    %414 = vmatprep.subr.mxu0 0.0
    %415 = vmatpush1.xpose.msra.mxu0 0.0
    %416 = vmatprep.subr.mxu0 0.0
    %417 = vmatpush1.xpose.msra.mxu0 0.0
    %418 = vmatprep.subr.mxu0 0.0
    %419 = vmatpush1.xpose.msra.mxu0 0.0
    %420 = vmatprep.subr.mxu0 0.0
    %421 = vmatpush1.xpose.msra.mxu0 0.0
    %422 = vmatprep.subr.mxu0 0.0
    %423 = vmatpush1.xpose.msra.mxu0 0.0
    %424 = vmatprep.subr.mxu0 0.0
    %425 = vmatpush1.xpose.msra.mxu0 0.0
    %426 = vmatprep.subr.mxu0 0.0
    %427 = vmatpush1.xpose.msra.mxu0 0.0
    %428 = vmatprep.mubr.f32.mxu0 0.0
    %429 = vmatmul.mubr.f32.gmra.mrb[0].mxu0 %v360
    %v430 = vpop.f32.mrb[0].mxu0
    %v431 = vadd.f32 0.0, %v430
    %v432 = vpop.f32.mrb[0].mxu0
    %433 = vdwg.mxu0
    %434 = vrot.lane.b32.xlu0 %v299, 96
    %v435 = vpop.permute.xlu0 %434
    %v436 = vsel %vm359, %v305, 0
    %v438 = vsel %vm359, %v435, 0
    %440 = vmatprep.subr.mxu0 0.0
    %441 = vmatpush1.xpose.msra.mxu0 %v438
    %442 = vmatprep.subr.mxu0 0.0
    %443 = vmatpush1.xpose.msra.mxu0 0.0
    %444 = vmatprep.subr.mxu0 0.0
    %445 = vmatpush1.xpose.msra.mxu0 0.0
    %446 = vmatprep.subr.mxu0 0.0
    %447 = vmatpush1.xpose.msra.mxu0 0.0
    %448 = vmatprep.subr.mxu0 0.0
    %449 = vmatpush1.xpose.msra.mxu0 0.0
    %450 = vmatprep.subr.mxu0 0.0
    %451 = vmatpush1.xpose.msra.mxu0 0.0
    %452 = vmatprep.subr.mxu0 0.0
    %453 = vmatpush1.xpose.msra.mxu0 0.0
    %454 = vmatprep.subr.mxu0 0.0
    %455 = vmatpush1.xpose.msra.mxu0 0.0
    %456 = vmatprep.subr.mxu0 0.0
    %457 = vmatpush1.xpose.msra.mxu0 0.0
    %458 = vmatprep.subr.mxu0 0.0
    %459 = vmatpush1.xpose.msra.mxu0 0.0
    %460 = vmatprep.subr.mxu0 0.0
    %461 = vmatpush1.xpose.msra.mxu0 0.0
    %462 = vmatprep.subr.mxu0 0.0
    %463 = vmatpush1.xpose.msra.mxu0 0.0
    %464 = vmatprep.subr.mxu0 0.0
    %465 = vmatpush1.xpose.msra.mxu0 0.0
    %466 = vmatprep.subr.mxu0 0.0
    %467 = vmatpush1.xpose.msra.mxu0 0.0
    %468 = vmatprep.subr.mxu0 0.0
    %469 = vmatpush1.xpose.msra.mxu0 0.0
    %470 = vmatprep.subr.mxu0 0.0
    %471 = vmatpush1.xpose.msra.mxu0 0.0
    %472 = vmatprep.subr.mxu0 0.0
    %473 = vmatpush1.xpose.msra.mxu0 0.0
    %474 = vmatprep.subr.mxu0 0.0
    %475 = vmatpush1.xpose.msra.mxu0 0.0
    %476 = vmatprep.subr.mxu0 0.0
    %477 = vmatpush1.xpose.msra.mxu0 0.0
    %478 = vmatprep.subr.mxu0 0.0
    %479 = vmatpush1.xpose.msra.mxu0 0.0
    %480 = vmatprep.subr.mxu0 0.0
    %481 = vmatpush1.xpose.msra.mxu0 0.0
    %482 = vmatprep.subr.mxu0 0.0
    %483 = vmatpush1.xpose.msra.mxu0 0.0
    %484 = vmatprep.subr.mxu0 0.0
    %485 = vmatpush1.xpose.msra.mxu0 0.0
    %486 = vmatprep.subr.mxu0 0.0
    %487 = vmatpush1.xpose.msra.mxu0 0.0
    %488 = vmatprep.subr.mxu0 0.0
    %489 = vmatpush1.xpose.msra.mxu0 0.0
    %490 = vmatprep.subr.mxu0 0.0
    %491 = vmatpush1.xpose.msra.mxu0 0.0
    %492 = vmatprep.subr.mxu0 0.0
    %493 = vmatpush1.xpose.msra.mxu0 0.0
    %494 = vmatprep.subr.mxu0 0.0
    %495 = vmatpush1.xpose.msra.mxu0 0.0
    %496 = vmatprep.subr.mxu0 0.0
    %497 = vmatpush1.xpose.msra.mxu0 0.0
    %498 = vmatprep.subr.mxu0 0.0
    %499 = vmatpush1.xpose.msra.mxu0 0.0
    %500 = vmatprep.subr.mxu0 0.0
    %501 = vmatpush1.xpose.msra.mxu0 0.0
    %502 = vmatprep.subr.mxu0 0.0
    %503 = vmatpush1.xpose.msra.mxu0 0.0
    %504 = vmatprep.mubr.f32.mxu0 0.0
    %505 = vmatmul.mubr.f32.gmra.mrb[0].mxu0 %v436
    %v506 = vpop.f32.mrb[0].mxu0
    %v507 = vadd.f32 0.0, %v506
    %v508 = vpop.f32.mrb[0].mxu0
    %509 = vdwg.mxu0
    %510 = vrot.lane.b32.xlu0 %v323, 96
    %v511 = vpop.permute.xlu0 %510
    %v512 = vsel %vm359, %v309, 0
    %v514 = vsel %vm359, %v511, 0
    %516 = vmatprep.subr.mxu0 0.0
    %517 = vmatpush1.xpose.msra.mxu0 %v514
    %518 = vmatprep.subr.mxu0 0.0
    %519 = vmatpush1.xpose.msra.mxu0 0.0
    %520 = vmatprep.subr.mxu0 0.0
    %521 = vmatpush1.xpose.msra.mxu0 0.0
    %522 = vmatprep.subr.mxu0 0.0
    %523 = vmatpush1.xpose.msra.mxu0 0.0
    %524 = vmatprep.subr.mxu0 0.0
    %525 = vmatpush1.xpose.msra.mxu0 0.0
    %526 = vmatprep.subr.mxu0 0.0
    %527 = vmatpush1.xpose.msra.mxu0 0.0
    %528 = vmatprep.subr.mxu0 0.0
    %529 = vmatpush1.xpose.msra.mxu0 0.0
    %530 = vmatprep.subr.mxu0 0.0
    %531 = vmatpush1.xpose.msra.mxu0 0.0
    %532 = vmatprep.subr.mxu0 0.0
    %533 = vmatpush1.xpose.msra.mxu0 0.0
    %534 = vmatprep.subr.mxu0 0.0
    %535 = vmatpush1.xpose.msra.mxu0 0.0
    %536 = vmatprep.subr.mxu0 0.0
    %537 = vmatpush1.xpose.msra.mxu0 0.0
    %538 = vmatprep.subr.mxu0 0.0
    %539 = vmatpush1.xpose.msra.mxu0 0.0
    %540 = vmatprep.subr.mxu0 0.0
    %541 = vmatpush1.xpose.msra.mxu0 0.0
    %542 = vmatprep.subr.mxu0 0.0
    %543 = vmatpush1.xpose.msra.mxu0 0.0
    %544 = vmatprep.subr.mxu0 0.0
    %545 = vmatpush1.xpose.msra.mxu0 0.0
    %546 = vmatprep.subr.mxu0 0.0
    %547 = vmatpush1.xpose.msra.mxu0 0.0
    %548 = vmatprep.subr.mxu0 0.0
    %549 = vmatpush1.xpose.msra.mxu0 0.0
    %550 = vmatprep.subr.mxu0 0.0
    %551 = vmatpush1.xpose.msra.mxu0 0.0
    %552 = vmatprep.subr.mxu0 0.0
    %553 = vmatpush1.xpose.msra.mxu0 0.0
    %554 = vmatprep.subr.mxu0 0.0
    %555 = vmatpush1.xpose.msra.mxu0 0.0
    %556 = vmatprep.subr.mxu0 0.0
    %557 = vmatpush1.xpose.msra.mxu0 0.0
    %558 = vmatprep.subr.mxu0 0.0
    %559 = vmatpush1.xpose.msra.mxu0 0.0
    %560 = vmatprep.subr.mxu0 0.0
    %561 = vmatpush1.xpose.msra.mxu0 0.0
    %562 = vmatprep.subr.mxu0 0.0
    %563 = vmatpush1.xpose.msra.mxu0 0.0
    %564 = vmatprep.subr.mxu0 0.0
    %565 = vmatpush1.xpose.msra.mxu0 0.0
    %566 = vmatprep.subr.mxu0 0.0
    %567 = vmatpush1.xpose.msra.mxu0 0.0
    %568 = vmatprep.subr.mxu0 0.0
    %569 = vmatpush1.xpose.msra.mxu0 0.0
    %570 = vmatprep.subr.mxu0 0.0
    %571 = vmatpush1.xpose.msra.mxu0 0.0
    %572 = vmatprep.subr.mxu0 0.0
    %573 = vmatpush1.xpose.msra.mxu0 0.0
    %574 = vmatprep.subr.mxu0 0.0
    %575 = vmatpush1.xpose.msra.mxu0 0.0
    %576 = vmatprep.subr.mxu0 0.0
    %577 = vmatpush1.xpose.msra.mxu0 0.0
    %578 = vmatprep.subr.mxu0 0.0
    %579 = vmatpush1.xpose.msra.mxu0 0.0
    %580 = vmatprep.mubr.f32.mxu0 0.0
    %581 = vmatmul.mubr.f32.gmra.mrb[0].mxu0 %v512
    %v582 = vpop.f32.mrb[0].mxu0
    %v583 = vadd.f32 0.0, %v582
    %v584 = vpop.f32.mrb[0].mxu0
    %585 = vdwg.mxu0
    %586 = vrot.lane.b32.xlu0 %v325, 96
    %v587 = vpop.permute.xlu0 %586
    %v588 = vsel %vm359, %v311, 0
    %v590 = vsel %vm359, %v587, 0
    %592 = vmatprep.subr.mxu0 0.0
    %593 = vmatpush1.xpose.msra.mxu0 %v590
    %594 = vmatprep.subr.mxu0 0.0
    %595 = vmatpush1.xpose.msra.mxu0 0.0
    %596 = vmatprep.subr.mxu0 0.0
    %597 = vmatpush1.xpose.msra.mxu0 0.0
    %598 = vmatprep.subr.mxu0 0.0
    %599 = vmatpush1.xpose.msra.mxu0 0.0
    %600 = vmatprep.subr.mxu0 0.0
    %601 = vmatpush1.xpose.msra.mxu0 0.0
    %602 = vmatprep.subr.mxu0 0.0
    %603 = vmatpush1.xpose.msra.mxu0 0.0
    %604 = vmatprep.subr.mxu0 0.0
    %605 = vmatpush1.xpose.msra.mxu0 0.0
    %606 = vmatprep.subr.mxu0 0.0
    %607 = vmatpush1.xpose.msra.mxu0 0.0
    %608 = vmatprep.subr.mxu0 0.0
    %609 = vmatpush1.xpose.msra.mxu0 0.0
    %610 = vmatprep.subr.mxu0 0.0
    %611 = vmatpush1.xpose.msra.mxu0 0.0
    %612 = vmatprep.subr.mxu0 0.0
    %613 = vmatpush1.xpose.msra.mxu0 0.0
    %614 = vmatprep.subr.mxu0 0.0
    %615 = vmatpush1.xpose.msra.mxu0 0.0
    %616 = vmatprep.subr.mxu0 0.0
    %617 = vmatpush1.xpose.msra.mxu0 0.0
    %618 = vmatprep.subr.mxu0 0.0
    %619 = vmatpush1.xpose.msra.mxu0 0.0
    %620 = vmatprep.subr.mxu0 0.0
    %621 = vmatpush1.xpose.msra.mxu0 0.0
    %622 = vmatprep.subr.mxu0 0.0
    %623 = vmatpush1.xpose.msra.mxu0 0.0
    %624 = vmatprep.subr.mxu0 0.0
    %625 = vmatpush1.xpose.msra.mxu0 0.0
    %626 = vmatprep.subr.mxu0 0.0
    %627 = vmatpush1.xpose.msra.mxu0 0.0
    %628 = vmatprep.subr.mxu0 0.0
    %629 = vmatpush1.xpose.msra.mxu0 0.0
    %630 = vmatprep.subr.mxu0 0.0
    %631 = vmatpush1.xpose.msra.mxu0 0.0
    %632 = vmatprep.subr.mxu0 0.0
    %633 = vmatpush1.xpose.msra.mxu0 0.0
    %634 = vmatprep.subr.mxu0 0.0
    %635 = vmatpush1.xpose.msra.mxu0 0.0
    %636 = vmatprep.subr.mxu0 0.0
    %637 = vmatpush1.xpose.msra.mxu0 0.0
    %638 = vmatprep.subr.mxu0 0.0
    %639 = vmatpush1.xpose.msra.mxu0 0.0
    %640 = vmatprep.subr.mxu0 0.0
    %641 = vmatpush1.xpose.msra.mxu0 0.0
    %642 = vmatprep.subr.mxu0 0.0
    %643 = vmatpush1.xpose.msra.mxu0 0.0
    %644 = vmatprep.subr.mxu0 0.0
    %645 = vmatpush1.xpose.msra.mxu0 0.0
    %646 = vmatprep.subr.mxu0 0.0
    %647 = vmatpush1.xpose.msra.mxu0 0.0
    %648 = vmatprep.subr.mxu0 0.0
    %649 = vmatpush1.xpose.msra.mxu0 0.0
    %650 = vmatprep.subr.mxu0 0.0
    %651 = vmatpush1.xpose.msra.mxu0 0.0
    %652 = vmatprep.subr.mxu0 0.0
    %653 = vmatpush1.xpose.msra.mxu0 0.0
    %654 = vmatprep.subr.mxu0 0.0
    %655 = vmatpush1.xpose.msra.mxu0 0.0
    %656 = vmatprep.mubr.f32.mxu0 0.0
    %657 = vmatmul.mubr.f32.gmra.mrb[0].mxu0 %v588
    %v658 = vpop.f32.mrb[0].mxu0
    %v659 = vadd.f32 0.0, %v658
    %v660 = vpop.f32.mrb[0].mxu0
    %661 = vdwg.mxu0
    %662 = vrot.lane.b32.xlu0 %v327, 96
    %v663 = vpop.permute.xlu0 %662
    %v664 = vsel %vm359, %v313, 0
    %v666 = vsel %vm359, %v663, 0
    %668 = vmatprep.subr.mxu0 0.0
    %669 = vmatpush1.xpose.msra.mxu0 %v666
    %670 = vmatprep.subr.mxu0 0.0
    %671 = vmatpush1.xpose.msra.mxu0 0.0
    %672 = vmatprep.subr.mxu0 0.0
    %673 = vmatpush1.xpose.msra.mxu0 0.0
    %674 = vmatprep.subr.mxu0 0.0
    %675 = vmatpush1.xpose.msra.mxu0 0.0
    %676 = vmatprep.subr.mxu0 0.0
    %677 = vmatpush1.xpose.msra.mxu0 0.0
    %678 = vmatprep.subr.mxu0 0.0
    %679 = vmatpush1.xpose.msra.mxu0 0.0
    %680 = vmatprep.subr.mxu0 0.0
    %681 = vmatpush1.xpose.msra.mxu0 0.0
    %682 = vmatprep.subr.mxu0 0.0
    %683 = vmatpush1.xpose.msra.mxu0 0.0
    %684 = vmatprep.subr.mxu0 0.0
    %685 = vmatpush1.xpose.msra.mxu0 0.0
    %686 = vmatprep.subr.mxu0 0.0
    %687 = vmatpush1.xpose.msra.mxu0 0.0
    %688 = vmatprep.subr.mxu0 0.0
    %689 = vmatpush1.xpose.msra.mxu0 0.0
    %690 = vmatprep.subr.mxu0 0.0
    %691 = vmatpush1.xpose.msra.mxu0 0.0
    %692 = vmatprep.subr.mxu0 0.0
    %693 = vmatpush1.xpose.msra.mxu0 0.0
    %694 = vmatprep.subr.mxu0 0.0
    %695 = vmatpush1.xpose.msra.mxu0 0.0
    %696 = vmatprep.subr.mxu0 0.0
    %697 = vmatpush1.xpose.msra.mxu0 0.0
    %698 = vmatprep.subr.mxu0 0.0
    %699 = vmatpush1.xpose.msra.mxu0 0.0
    %700 = vmatprep.subr.mxu0 0.0
    %701 = vmatpush1.xpose.msra.mxu0 0.0
    %702 = vmatprep.subr.mxu0 0.0
    %703 = vmatpush1.xpose.msra.mxu0 0.0
    %704 = vmatprep.subr.mxu0 0.0
    %705 = vmatpush1.xpose.msra.mxu0 0.0
    %706 = vmatprep.subr.mxu0 0.0
    %707 = vmatpush1.xpose.msra.mxu0 0.0
    %708 = vmatprep.subr.mxu0 0.0
    %709 = vmatpush1.xpose.msra.mxu0 0.0
    %710 = vmatprep.subr.mxu0 0.0
    %711 = vmatpush1.xpose.msra.mxu0 0.0
    %712 = vmatprep.subr.mxu0 0.0
    %713 = vmatpush1.xpose.msra.mxu0 0.0
    %714 = vmatprep.subr.mxu0 0.0
    %715 = vmatpush1.xpose.msra.mxu0 0.0
    %716 = vmatprep.subr.mxu0 0.0
    %717 = vmatpush1.xpose.msra.mxu0 0.0
    %718 = vmatprep.subr.mxu0 0.0
    %719 = vmatpush1.xpose.msra.mxu0 0.0
    %720 = vmatprep.subr.mxu0 0.0
    %721 = vmatpush1.xpose.msra.mxu0 0.0
    %722 = vmatprep.subr.mxu0 0.0
    %723 = vmatpush1.xpose.msra.mxu0 0.0
    %724 = vmatprep.subr.mxu0 0.0
    %725 = vmatpush1.xpose.msra.mxu0 0.0
    %726 = vmatprep.subr.mxu0 0.0
    %727 = vmatpush1.xpose.msra.mxu0 0.0
    %728 = vmatprep.subr.mxu0 0.0
    %729 = vmatpush1.xpose.msra.mxu0 0.0
    %730 = vmatprep.subr.mxu0 0.0
    %731 = vmatpush1.xpose.msra.mxu0 0.0
    %732 = vmatprep.mubr.f32.mxu0 0.0
    %733 = vmatmul.mubr.f32.gmra.mrb[0].mxu0 %v664
    %v734 = vpop.f32.mrb[0].mxu0
    %v735 = vadd.f32 0.0, %v734
    %v736 = vpop.f32.mrb[0].mxu0
    %737 = vdwg.mxu0
    %738 = vrot.lane.b32.xlu0 %v329, 96
    %v739 = vpop.permute.xlu0 %738
    %v740 = vsel %vm359, %v315, 0
    %v742 = vsel %vm359, %v739, 0
    %744 = vmatprep.subr.mxu0 0.0
    %745 = vmatpush1.xpose.msra.mxu0 %v742
    %746 = vmatprep.subr.mxu0 0.0
    %747 = vmatpush1.xpose.msra.mxu0 0.0
    %748 = vmatprep.subr.mxu0 0.0
    %749 = vmatpush1.xpose.msra.mxu0 0.0
    %750 = vmatprep.subr.mxu0 0.0
    %751 = vmatpush1.xpose.msra.mxu0 0.0
    %752 = vmatprep.subr.mxu0 0.0
    %753 = vmatpush1.xpose.msra.mxu0 0.0
    %754 = vmatprep.subr.mxu0 0.0
    %755 = vmatpush1.xpose.msra.mxu0 0.0
    %756 = vmatprep.subr.mxu0 0.0
    %757 = vmatpush1.xpose.msra.mxu0 0.0
    %758 = vmatprep.subr.mxu0 0.0
    %759 = vmatpush1.xpose.msra.mxu0 0.0
    %760 = vmatprep.subr.mxu0 0.0
    %761 = vmatpush1.xpose.msra.mxu0 0.0
    %762 = vmatprep.subr.mxu0 0.0
    %763 = vmatpush1.xpose.msra.mxu0 0.0
    %764 = vmatprep.subr.mxu0 0.0
    %765 = vmatpush1.xpose.msra.mxu0 0.0
    %766 = vmatprep.subr.mxu0 0.0
    %767 = vmatpush1.xpose.msra.mxu0 0.0
    %768 = vmatprep.subr.mxu0 0.0
    %769 = vmatpush1.xpose.msra.mxu0 0.0
    %770 = vmatprep.subr.mxu0 0.0
    %771 = vmatpush1.xpose.msra.mxu0 0.0
    %772 = vmatprep.subr.mxu0 0.0
    %773 = vmatpush1.xpose.msra.mxu0 0.0
    %774 = vmatprep.subr.mxu0 0.0
    %775 = vmatpush1.xpose.msra.mxu0 0.0
    %776 = vmatprep.subr.mxu0 0.0
    %777 = vmatpush1.xpose.msra.mxu0 0.0
    %778 = vmatprep.subr.mxu0 0.0
    %779 = vmatpush1.xpose.msra.mxu0 0.0
    %780 = vmatprep.subr.mxu0 0.0
    %781 = vmatpush1.xpose.msra.mxu0 0.0
    %782 = vmatprep.subr.mxu0 0.0
    %783 = vmatpush1.xpose.msra.mxu0 0.0
    %784 = vmatprep.subr.mxu0 0.0
    %785 = vmatpush1.xpose.msra.mxu0 0.0
    %786 = vmatprep.subr.mxu0 0.0
    %787 = vmatpush1.xpose.msra.mxu0 0.0
    %788 = vmatprep.subr.mxu0 0.0
    %789 = vmatpush1.xpose.msra.mxu0 0.0
    %790 = vmatprep.subr.mxu0 0.0
    %791 = vmatpush1.xpose.msra.mxu0 0.0
    %792 = vmatprep.subr.mxu0 0.0
    %793 = vmatpush1.xpose.msra.mxu0 0.0
    %794 = vmatprep.subr.mxu0 0.0
    %795 = vmatpush1.xpose.msra.mxu0 0.0
    %796 = vmatprep.subr.mxu0 0.0
    %797 = vmatpush1.xpose.msra.mxu0 0.0
    %798 = vmatprep.subr.mxu0 0.0
    %799 = vmatpush1.xpose.msra.mxu0 0.0
    %800 = vmatprep.subr.mxu0 0.0
    %801 = vmatpush1.xpose.msra.mxu0 0.0
    %802 = vmatprep.subr.mxu0 0.0
    %803 = vmatpush1.xpose.msra.mxu0 0.0
    %804 = vmatprep.subr.mxu0 0.0
    %805 = vmatpush1.xpose.msra.mxu0 0.0
    %806 = vmatprep.subr.mxu0 0.0
    %807 = vmatpush1.xpose.msra.mxu0 0.0
    %808 = vmatprep.mubr.f32.mxu0 0.0
    %809 = vmatmul.mubr.f32.gmra.mrb[0].mxu0 %v740
    %v810 = vpop.f32.mrb[0].mxu0
    %v811 = vadd.f32 0.0, %v810
    %v812 = vpop.f32.mrb[0].mxu0
    %813 = vdwg.mxu0
    %814 = vrot.lane.b32.xlu0 %v331, 96
    %v815 = vpop.permute.xlu0 %814
    %v816 = vsel %vm359, %v317, 0
    %v818 = vsel %vm359, %v815, 0
    %820 = vmatprep.subr.mxu0 0.0
    %821 = vmatpush1.xpose.msra.mxu0 %v818
    %822 = vmatprep.subr.mxu0 0.0
    %823 = vmatpush1.xpose.msra.mxu0 0.0
    %824 = vmatprep.subr.mxu0 0.0
    %825 = vmatpush1.xpose.msra.mxu0 0.0
    %826 = vmatprep.subr.mxu0 0.0
    %827 = vmatpush1.xpose.msra.mxu0 0.0
    %828 = vmatprep.subr.mxu0 0.0
    %829 = vmatpush1.xpose.msra.mxu0 0.0
    %830 = vmatprep.subr.mxu0 0.0
    %831 = vmatpush1.xpose.msra.mxu0 0.0
    %832 = vmatprep.subr.mxu0 0.0
    %833 = vmatpush1.xpose.msra.mxu0 0.0
    %834 = vmatprep.subr.mxu0 0.0
    %835 = vmatpush1.xpose.msra.mxu0 0.0
    %836 = vmatprep.subr.mxu0 0.0
    %837 = vmatpush1.xpose.msra.mxu0 0.0
    %838 = vmatprep.subr.mxu0 0.0
    %839 = vmatpush1.xpose.msra.mxu0 0.0
    %840 = vmatprep.subr.mxu0 0.0
    %841 = vmatpush1.xpose.msra.mxu0 0.0
    %842 = vmatprep.subr.mxu0 0.0
    %843 = vmatpush1.xpose.msra.mxu0 0.0
    %844 = vmatprep.subr.mxu0 0.0
    %845 = vmatpush1.xpose.msra.mxu0 0.0
    %846 = vmatprep.subr.mxu0 0.0
    %847 = vmatpush1.xpose.msra.mxu0 0.0
    %848 = vmatprep.subr.mxu0 0.0
    %849 = vmatpush1.xpose.msra.mxu0 0.0
    %850 = vmatprep.subr.mxu0 0.0
    %851 = vmatpush1.xpose.msra.mxu0 0.0
    %852 = vmatprep.subr.mxu0 0.0
    %853 = vmatpush1.xpose.msra.mxu0 0.0
    %854 = vmatprep.subr.mxu0 0.0
    %855 = vmatpush1.xpose.msra.mxu0 0.0
    %856 = vmatprep.subr.mxu0 0.0
    %857 = vmatpush1.xpose.msra.mxu0 0.0
    %858 = vmatprep.subr.mxu0 0.0
    %859 = vmatpush1.xpose.msra.mxu0 0.0
    %860 = vmatprep.subr.mxu0 0.0
    %861 = vmatpush1.xpose.msra.mxu0 0.0
    %862 = vmatprep.subr.mxu0 0.0
    %863 = vmatpush1.xpose.msra.mxu0 0.0
    %864 = vmatprep.subr.mxu0 0.0
    %865 = vmatpush1.xpose.msra.mxu0 0.0
    %866 = vmatprep.subr.mxu0 0.0
    %867 = vmatpush1.xpose.msra.mxu0 0.0
    %868 = vmatprep.subr.mxu0 0.0
    %869 = vmatpush1.xpose.msra.mxu0 0.0
    %870 = vmatprep.subr.mxu0 0.0
    %871 = vmatpush1.xpose.msra.mxu0 0.0
    %872 = vmatprep.subr.mxu0 0.0
    %873 = vmatpush1.xpose.msra.mxu0 0.0
    %874 = vmatprep.subr.mxu0 0.0
    %875 = vmatpush1.xpose.msra.mxu0 0.0
    %876 = vmatprep.subr.mxu0 0.0
    %877 = vmatpush1.xpose.msra.mxu0 0.0
    %878 = vmatprep.subr.mxu0 0.0
    %879 = vmatpush1.xpose.msra.mxu0 0.0
    %880 = vmatprep.subr.mxu0 0.0
    %881 = vmatpush1.xpose.msra.mxu0 0.0
    %882 = vmatprep.subr.mxu0 0.0
    %883 = vmatpush1.xpose.msra.mxu0 0.0
    %884 = vmatprep.mubr.f32.mxu0 0.0
    %885 = vmatmul.mubr.f32.gmra.mrb[0].mxu0 %v816
    %v886 = vpop.f32.mrb[0].mxu0
    %v887 = vadd.f32 0.0, %v886
    %v888 = vpop.f32.mrb[0].mxu0
    %889 = vdwg.mxu0
    %890 = vrot.lane.b32.xlu0 %v333, 96
    %v891 = vpop.permute.xlu0 %890
    %v892 = vsel %vm359, %v319, 0
    %v894 = vsel %vm359, %v891, 0
    %896 = vmatprep.subr.mxu0 0.0
    %897 = vmatpush1.xpose.msra.mxu0 %v894
    %898 = vmatprep.subr.mxu0 0.0
    %899 = vmatpush1.xpose.msra.mxu0 0.0
    %900 = vmatprep.subr.mxu0 0.0
    %901 = vmatpush1.xpose.msra.mxu0 0.0
    %902 = vmatprep.subr.mxu0 0.0
    %903 = vmatpush1.xpose.msra.mxu0 0.0
    %904 = vmatprep.subr.mxu0 0.0
    %905 = vmatpush1.xpose.msra.mxu0 0.0
    %906 = vmatprep.subr.mxu0 0.0
    %907 = vmatpush1.xpose.msra.mxu0 0.0
    %908 = vmatprep.subr.mxu0 0.0
    %909 = vmatpush1.xpose.msra.mxu0 0.0
    %910 = vmatprep.subr.mxu0 0.0
    %911 = vmatpush1.xpose.msra.mxu0 0.0
    %912 = vmatprep.subr.mxu0 0.0
    %913 = vmatpush1.xpose.msra.mxu0 0.0
    %914 = vmatprep.subr.mxu0 0.0
    %915 = vmatpush1.xpose.msra.mxu0 0.0
    %916 = vmatprep.subr.mxu0 0.0
    %917 = vmatpush1.xpose.msra.mxu0 0.0
    %918 = vmatprep.subr.mxu0 0.0
    %919 = vmatpush1.xpose.msra.mxu0 0.0
    %920 = vmatprep.subr.mxu0 0.0
    %921 = vmatpush1.xpose.msra.mxu0 0.0
    %922 = vmatprep.subr.mxu0 0.0
    %923 = vmatpush1.xpose.msra.mxu0 0.0
    %924 = vmatprep.subr.mxu0 0.0
    %925 = vmatpush1.xpose.msra.mxu0 0.0
    %926 = vmatprep.subr.mxu0 0.0
    %927 = vmatpush1.xpose.msra.mxu0 0.0
    %928 = vmatprep.subr.mxu0 0.0
    %929 = vmatpush1.xpose.msra.mxu0 0.0
    %930 = vmatprep.subr.mxu0 0.0
    %931 = vmatpush1.xpose.msra.mxu0 0.0
    %932 = vmatprep.subr.mxu0 0.0
    %933 = vmatpush1.xpose.msra.mxu0 0.0
    %934 = vmatprep.subr.mxu0 0.0
    %935 = vmatpush1.xpose.msra.mxu0 0.0
    %936 = vmatprep.subr.mxu0 0.0
    %937 = vmatpush1.xpose.msra.mxu0 0.0
    %938 = vmatprep.subr.mxu0 0.0
    %939 = vmatpush1.xpose.msra.mxu0 0.0
    %940 = vmatprep.subr.mxu0 0.0
    %941 = vmatpush1.xpose.msra.mxu0 0.0
    %942 = vmatprep.subr.mxu0 0.0
    %943 = vmatpush1.xpose.msra.mxu0 0.0
    %944 = vmatprep.subr.mxu0 0.0
    %945 = vmatpush1.xpose.msra.mxu0 0.0
    %946 = vmatprep.subr.mxu0 0.0
    %947 = vmatpush1.xpose.msra.mxu0 0.0
    %948 = vmatprep.subr.mxu0 0.0
    %949 = vmatpush1.xpose.msra.mxu0 0.0
    %950 = vmatprep.subr.mxu0 0.0
    %951 = vmatpush1.xpose.msra.mxu0 0.0
    %952 = vmatprep.subr.mxu0 0.0
    %953 = vmatpush1.xpose.msra.mxu0 0.0
    %954 = vmatprep.subr.mxu0 0.0
    %955 = vmatpush1.xpose.msra.mxu0 0.0
    %956 = vmatprep.subr.mxu0 0.0
    %957 = vmatpush1.xpose.msra.mxu0 0.0
    %958 = vmatprep.subr.mxu0 0.0
    %959 = vmatpush1.xpose.msra.mxu0 0.0
    %960 = vmatprep.mubr.f32.mxu0 0.0
    %961 = vmatmul.mubr.f32.gmra.mrb[0].mxu0 %v892
    %v962 = vpop.f32.mrb[0].mxu0
    %v963 = vadd.f32 0.0, %v962
    %v964 = vpop.f32.mrb[0].mxu0
    %965 = vdwg.mxu0
    %v966 = vsel %vm355, %v431, -1e+09
    %v967 = vsel %vm356, %v507, -1e+09
    %v968 = vsel %vm355, %v583, -1e+09
    %v969 = vsel %vm356, %v659, -1e+09
    %v970 = vsel %vm355, %v735, -1e+09
    %v971 = vsel %vm356, %v811, -1e+09
    %v972 = vsel %vm355, %v887, -1e+09
    %v973 = vsel %vm356, %v963, -1e+09
    %v974 = vsel %vm359, %v966, -inf
    %975 = vmax.xlane.f32.xlu0 %v974
    %v976 = vpop.xlane.xlu0 %975
    %v977 = vsel %vm359, %v967, -inf
    %978 = vmax.xlane.f32.xlu0 %v977
    %v979 = vpop.xlane.xlu0 %978
    %v980 = vsel %vm359, %v968, -inf
    %981 = vmax.xlane.f32.xlu0 %v980
    %v982 = vpop.xlane.xlu0 %981
    %v983 = vsel %vm359, %v969, -inf
    %984 = vmax.xlane.f32.xlu0 %v983
    %v985 = vpop.xlane.xlu0 %984
    %v986 = vsel %vm359, %v970, -inf
    %987 = vmax.xlane.f32.xlu0 %v986
    %v988 = vpop.xlane.xlu0 %987
    %v989 = vsel %vm359, %v971, -inf
    %990 = vmax.xlane.f32.xlu0 %v989
    %v991 = vpop.xlane.xlu0 %990
    %v992 = vsel %vm359, %v972, -inf
    %993 = vmax.xlane.f32.xlu0 %v992
    %v994 = vpop.xlane.xlu0 %993
    %v995 = vsel %vm359, %v973, -inf
    %996 = vmax.xlane.f32.xlu0 %v995
    %v997 = vpop.xlane.xlu0 %996
    %v998 = vsub.f32 %v966, %v976
    %v999 = vsub.f32 %v967, %v979
    %v1000 = vsub.f32 %v968, %v982
    %v1001 = vsub.f32 %v969, %v985
    %v1002 = vsub.f32 %v970, %v988
    %v1003 = vsub.f32 %v971, %v991
    %v1004 = vsub.f32 %v972, %v994
    %v1005 = vsub.f32 %v973, %v997
    %v1006 = vmul.f32 %v998, 1.442695
    %v1007 = vpow.pop %v1006
    %v1008 = vmul.f32 %v999, 1.442695
    %v1009 = vpow.pop %v1008
    %v1010 = vmul.f32 %v1000, 1.442695
    %v1011 = vpow.pop %v1010
    %v1012 = vmul.f32 %v1001, 1.442695
    %v1013 = vpow.pop %v1012
    %v1014 = vmul.f32 %v1002, 1.442695
    %v1015 = vpow.pop %v1014
    %v1016 = vmul.f32 %v1003, 1.442695
    %v1017 = vpow.pop %v1016
    %v1018 = vmul.f32 %v1004, 1.442695
    %v1019 = vpow.pop %v1018
    %v1020 = vmul.f32 %v1005, 1.442695
    %v1021 = vpow.pop %v1020
    %v1022 = vsel %vm359, %v1007, 0.0
    %1023 = vadd.xlane.f32.xlu0 %v1022
    %v1024 = vpop.xlane.xlu0 %1023
    %v1025 = vsel %vm359, %v1009, 0.0
    %1026 = vadd.xlane.f32.xlu0 %v1025
    %v1027 = vpop.xlane.xlu0 %1026
    %v1028 = vsel %vm359, %v1011, 0.0
    %1029 = vadd.xlane.f32.xlu0 %v1028
    %v1030 = vpop.xlane.xlu0 %1029
    %v1031 = vsel %vm359, %v1013, 0.0
    %1032 = vadd.xlane.f32.xlu0 %v1031
    %v1033 = vpop.xlane.xlu0 %1032
    %v1034 = vsel %vm359, %v1015, 0.0
    %1035 = vadd.xlane.f32.xlu0 %v1034
    %v1036 = vpop.xlane.xlu0 %1035
    %v1037 = vsel %vm359, %v1017, 0.0
    %1038 = vadd.xlane.f32.xlu0 %v1037
    %v1039 = vpop.xlane.xlu0 %1038
    %v1040 = vsel %vm359, %v1019, 0.0
    %1041 = vadd.xlane.f32.xlu0 %v1040
    %v1042 = vpop.xlane.xlu0 %1041
    %v1043 = vsel %vm359, %v1021, 0.0
    %1044 = vadd.xlane.f32.xlu0 %v1043
    %v1045 = vpop.xlane.xlu0 %1044
    %v1046 = vrcp.pop %v1024
    %v1047 = vrcp.pop %v1027
    %v1048 = vrcp.pop %v1030
    %v1049 = vrcp.pop %v1033
    %v1050 = vrcp.pop %v1036
    %v1051 = vrcp.pop %v1039
    %v1052 = vrcp.pop %v1042
    %v1053 = vrcp.pop %v1045
    %v1054 = vmul.f32 %v1007, %v1046
    %v1055 = vmul.f32 %v1009, %v1047
    %v1056 = vmul.f32 %v1011, %v1048
    %v1057 = vmul.f32 %v1013, %v1049
    %v1058 = vmul.f32 %v1015, %v1050
    %v1059 = vmul.f32 %v1017, %v1051
    %v1060 = vmul.f32 %v1019, %v1052
    %v1061 = vmul.f32 %v1021, %v1053
    %1062 = vrot.lane.b32.xlu0 %v294, 64
    %v1063 = vpop.permute.xlu0 %1062
    %v1066 = vsel %vm359, %v1054, 0
    %1068 = vmatprep.subr.mxu0 0.0
    %1069 = vmatpush1.msra.mxu0 %v1063
    %1070 = vmatprep.subr.mxu0 0.0
    %1071 = vmatpush1.msra.mxu0 0.0
    %1072 = vmatprep.subr.mxu0 0.0
    %1073 = vmatpush1.msra.mxu0 0.0
    %1074 = vmatprep.subr.mxu0 0.0
    %1075 = vmatpush1.msra.mxu0 0.0
    %1076 = vmatprep.subr.mxu0 0.0
    %1077 = vmatpush1.msra.mxu0 0.0
    %1078 = vmatprep.subr.mxu0 0.0
    %1079 = vmatpush1.msra.mxu0 0.0
    %1080 = vmatprep.subr.mxu0 0.0
    %1081 = vmatpush1.msra.mxu0 0.0
    %1082 = vmatprep.subr.mxu0 0.0
    %1083 = vmatpush1.msra.mxu0 0.0
    %1084 = vmatprep.subr.mxu0 0.0
    %1085 = vmatpush1.msra.mxu0 0.0
    %1086 = vmatprep.subr.mxu0 0.0
    %1087 = vmatpush1.msra.mxu0 0.0
    %1088 = vmatprep.subr.mxu0 0.0
    %1089 = vmatpush1.msra.mxu0 0.0
    %1090 = vmatprep.subr.mxu0 0.0
    %1091 = vmatpush1.msra.mxu0 0.0
    %1092 = vmatprep.subr.mxu0 0.0
    %1093 = vmatpush1.msra.mxu0 0.0
    %1094 = vmatprep.subr.mxu0 0.0
    %1095 = vmatpush1.msra.mxu0 0.0
    %1096 = vmatprep.subr.mxu0 0.0
    %1097 = vmatpush1.msra.mxu0 0.0
    %1098 = vmatprep.subr.mxu0 0.0
    %1099 = vmatpush1.msra.mxu0 0.0
    %1100 = vmatprep.subr.mxu0 0.0
    %1101 = vmatpush1.msra.mxu0 0.0
    %1102 = vmatprep.subr.mxu0 0.0
    %1103 = vmatpush1.msra.mxu0 0.0
    %1104 = vmatprep.subr.mxu0 0.0
    %1105 = vmatpush1.msra.mxu0 0.0
    %1106 = vmatprep.subr.mxu0 0.0
    %1107 = vmatpush1.msra.mxu0 0.0
    %1108 = vmatprep.subr.mxu0 0.0
    %1109 = vmatpush1.msra.mxu0 0.0
    %1110 = vmatprep.subr.mxu0 0.0
    %1111 = vmatpush1.msra.mxu0 0.0
    %1112 = vmatprep.subr.mxu0 0.0
    %1113 = vmatpush1.msra.mxu0 0.0
    %1114 = vmatprep.subr.mxu0 0.0
    %1115 = vmatpush1.msra.mxu0 0.0
    %1116 = vmatprep.subr.mxu0 0.0
    %1117 = vmatpush1.msra.mxu0 0.0
    %1118 = vmatprep.subr.mxu0 0.0
    %1119 = vmatpush1.msra.mxu0 0.0
    %1120 = vmatprep.subr.mxu0 0.0
    %1121 = vmatpush1.msra.mxu0 0.0
    %1122 = vmatprep.subr.mxu0 0.0
    %1123 = vmatpush1.msra.mxu0 0.0
    %1124 = vmatprep.subr.mxu0 0.0
    %1125 = vmatpush1.msra.mxu0 0.0
    %1126 = vmatprep.subr.mxu0 0.0
    %1127 = vmatpush1.msra.mxu0 0.0
    %1128 = vmatprep.subr.mxu0 0.0
    %1129 = vmatpush1.msra.mxu0 0.0
    %1130 = vmatprep.subr.mxu0 0.0
    %1131 = vmatpush1.msra.mxu0 0.0
    %1132 = vmatprep.mubr.f32.mxu0 0.0
    %1133 = vmatmul.mubr.f32.gmra.mrb[0].mxu0 %v1066
    %v1134 = vpop.f32.mrb[0].mxu0
    %v1135 = vadd.f32 0.0, %v1134
    %v1136 = vpop.f32.mrb[0].mxu0
    %1137 = vdwg.mxu0
    %1138 = vrot.lane.b32.xlu0 %v299, 64
    %v1139 = vpop.permute.xlu0 %1138
    %v1142 = vsel %vm359, %v1055, 0
    %1144 = vmatprep.subr.mxu0 0.0
    %1145 = vmatpush1.msra.mxu0 %v1139
    %1146 = vmatprep.subr.mxu0 0.0
    %1147 = vmatpush1.msra.mxu0 0.0
    %1148 = vmatprep.subr.mxu0 0.0
    %1149 = vmatpush1.msra.mxu0 0.0
    %1150 = vmatprep.subr.mxu0 0.0
    %1151 = vmatpush1.msra.mxu0 0.0
    %1152 = vmatprep.subr.mxu0 0.0
    %1153 = vmatpush1.msra.mxu0 0.0
    %1154 = vmatprep.subr.mxu0 0.0
    %1155 = vmatpush1.msra.mxu0 0.0
    %1156 = vmatprep.subr.mxu0 0.0
    %1157 = vmatpush1.msra.mxu0 0.0
    %1158 = vmatprep.subr.mxu0 0.0
    %1159 = vmatpush1.msra.mxu0 0.0
    %1160 = vmatprep.subr.mxu0 0.0
    %1161 = vmatpush1.msra.mxu0 0.0
    %1162 = vmatprep.subr.mxu0 0.0
    %1163 = vmatpush1.msra.mxu0 0.0
    %1164 = vmatprep.subr.mxu0 0.0
    %1165 = vmatpush1.msra.mxu0 0.0
    %1166 = vmatprep.subr.mxu0 0.0
    %1167 = vmatpush1.msra.mxu0 0.0
    %1168 = vmatprep.subr.mxu0 0.0
    %1169 = vmatpush1.msra.mxu0 0.0
    %1170 = vmatprep.subr.mxu0 0.0
    %1171 = vmatpush1.msra.mxu0 0.0
    %1172 = vmatprep.subr.mxu0 0.0
    %1173 = vmatpush1.msra.mxu0 0.0
    %1174 = vmatprep.subr.mxu0 0.0
    %1175 = vmatpush1.msra.mxu0 0.0
    %1176 = vmatprep.subr.mxu0 0.0
    %1177 = vmatpush1.msra.mxu0 0.0
    %1178 = vmatprep.subr.mxu0 0.0
    %1179 = vmatpush1.msra.mxu0 0.0
    %1180 = vmatprep.subr.mxu0 0.0
    %1181 = vmatpush1.msra.mxu0 0.0
    %1182 = vmatprep.subr.mxu0 0.0
    %1183 = vmatpush1.msra.mxu0 0.0
    %1184 = vmatprep.subr.mxu0 0.0
    %1185 = vmatpush1.msra.mxu0 0.0
    %1186 = vmatprep.subr.mxu0 0.0
    %1187 = vmatpush1.msra.mxu0 0.0
    %1188 = vmatprep.subr.mxu0 0.0
    %1189 = vmatpush1.msra.mxu0 0.0
    %1190 = vmatprep.subr.mxu0 0.0
    %1191 = vmatpush1.msra.mxu0 0.0
    %1192 = vmatprep.subr.mxu0 0.0
    %1193 = vmatpush1.msra.mxu0 0.0
    %1194 = vmatprep.subr.mxu0 0.0
    %1195 = vmatpush1.msra.mxu0 0.0
    %1196 = vmatprep.subr.mxu0 0.0
    %1197 = vmatpush1.msra.mxu0 0.0
    %1198 = vmatprep.subr.mxu0 0.0
    %1199 = vmatpush1.msra.mxu0 0.0
    %1200 = vmatprep.subr.mxu0 0.0
    %1201 = vmatpush1.msra.mxu0 0.0
    %1202 = vmatprep.subr.mxu0 0.0
    %1203 = vmatpush1.msra.mxu0 0.0
    %1204 = vmatprep.subr.mxu0 0.0
    %1205 = vmatpush1.msra.mxu0 0.0
    %1206 = vmatprep.subr.mxu0 0.0
    %1207 = vmatpush1.msra.mxu0 0.0
    %1208 = vmatprep.mubr.f32.mxu0 0.0
    %1209 = vmatmul.mubr.f32.gmra.mrb[0].mxu0 %v1142
    %v1210 = vpop.f32.mrb[0].mxu0
    %v1211 = vadd.f32 0.0, %v1210
    %v1212 = vpop.f32.mrb[0].mxu0
    %1213 = vdwg.mxu0
    %1214 = vrot.lane.b32.xlu0 %v323, 64
    %v1215 = vpop.permute.xlu0 %1214
    %v1218 = vsel %vm359, %v1056, 0
    %1220 = vmatprep.subr.mxu0 0.0
    %1221 = vmatpush1.msra.mxu0 %v1215
    %1222 = vmatprep.subr.mxu0 0.0
    %1223 = vmatpush1.msra.mxu0 0.0
    %1224 = vmatprep.subr.mxu0 0.0
    %1225 = vmatpush1.msra.mxu0 0.0
    %1226 = vmatprep.subr.mxu0 0.0
    %1227 = vmatpush1.msra.mxu0 0.0
    %1228 = vmatprep.subr.mxu0 0.0
    %1229 = vmatpush1.msra.mxu0 0.0
    %1230 = vmatprep.subr.mxu0 0.0
    %1231 = vmatpush1.msra.mxu0 0.0
    %1232 = vmatprep.subr.mxu0 0.0
    %1233 = vmatpush1.msra.mxu0 0.0
    %1234 = vmatprep.subr.mxu0 0.0
    %1235 = vmatpush1.msra.mxu0 0.0
    %1236 = vmatprep.subr.mxu0 0.0
    %1237 = vmatpush1.msra.mxu0 0.0
    %1238 = vmatprep.subr.mxu0 0.0
    %1239 = vmatpush1.msra.mxu0 0.0
    %1240 = vmatprep.subr.mxu0 0.0
    %1241 = vmatpush1.msra.mxu0 0.0
    %1242 = vmatprep.subr.mxu0 0.0
    %1243 = vmatpush1.msra.mxu0 0.0
    %1244 = vmatprep.subr.mxu0 0.0
    %1245 = vmatpush1.msra.mxu0 0.0
    %1246 = vmatprep.subr.mxu0 0.0
    %1247 = vmatpush1.msra.mxu0 0.0
    %1248 = vmatprep.subr.mxu0 0.0
    %1249 = vmatpush1.msra.mxu0 0.0
    %1250 = vmatprep.subr.mxu0 0.0
    %1251 = vmatpush1.msra.mxu0 0.0
    %1252 = vmatprep.subr.mxu0 0.0
    %1253 = vmatpush1.msra.mxu0 0.0
    %1254 = vmatprep.subr.mxu0 0.0
    %1255 = vmatpush1.msra.mxu0 0.0
    %1256 = vmatprep.subr.mxu0 0.0
    %1257 = vmatpush1.msra.mxu0 0.0
    %1258 = vmatprep.subr.mxu0 0.0
    %1259 = vmatpush1.msra.mxu0 0.0
    %1260 = vmatprep.subr.mxu0 0.0
    %1261 = vmatpush1.msra.mxu0 0.0
    %1262 = vmatprep.subr.mxu0 0.0
    %1263 = vmatpush1.msra.mxu0 0.0
    %1264 = vmatprep.subr.mxu0 0.0
    %1265 = vmatpush1.msra.mxu0 0.0
    %1266 = vmatprep.subr.mxu0 0.0
    %1267 = vmatpush1.msra.mxu0 0.0
    %1268 = vmatprep.subr.mxu0 0.0
    %1269 = vmatpush1.msra.mxu0 0.0
    %1270 = vmatprep.subr.mxu0 0.0
    %1271 = vmatpush1.msra.mxu0 0.0
    %1272 = vmatprep.subr.mxu0 0.0
    %1273 = vmatpush1.msra.mxu0 0.0
    %1274 = vmatprep.subr.mxu0 0.0
    %1275 = vmatpush1.msra.mxu0 0.0
    %1276 = vmatprep.subr.mxu0 0.0
    %1277 = vmatpush1.msra.mxu0 0.0
    %1278 = vmatprep.subr.mxu0 0.0
    %1279 = vmatpush1.msra.mxu0 0.0
    %1280 = vmatprep.subr.mxu0 0.0
    %1281 = vmatpush1.msra.mxu0 0.0
    %1282 = vmatprep.subr.mxu0 0.0
    %1283 = vmatpush1.msra.mxu0 0.0
    %1284 = vmatprep.mubr.f32.mxu0 0.0
    %1285 = vmatmul.mubr.f32.gmra.mrb[0].mxu0 %v1218
    %v1286 = vpop.f32.mrb[0].mxu0
    %v1287 = vadd.f32 0.0, %v1286
    %v1288 = vpop.f32.mrb[0].mxu0
    %1289 = vdwg.mxu0
    %1290 = vrot.lane.b32.xlu0 %v325, 64
    %v1291 = vpop.permute.xlu0 %1290
    %v1294 = vsel %vm359, %v1057, 0
    %1296 = vmatprep.subr.mxu0 0.0
    %1297 = vmatpush1.msra.mxu0 %v1291
    %1298 = vmatprep.subr.mxu0 0.0
    %1299 = vmatpush1.msra.mxu0 0.0
    %1300 = vmatprep.subr.mxu0 0.0
    %1301 = vmatpush1.msra.mxu0 0.0
    %1302 = vmatprep.subr.mxu0 0.0
    %1303 = vmatpush1.msra.mxu0 0.0
    %1304 = vmatprep.subr.mxu0 0.0
    %1305 = vmatpush1.msra.mxu0 0.0
    %1306 = vmatprep.subr.mxu0 0.0
    %1307 = vmatpush1.msra.mxu0 0.0
    %1308 = vmatprep.subr.mxu0 0.0
    %1309 = vmatpush1.msra.mxu0 0.0
    %1310 = vmatprep.subr.mxu0 0.0
    %1311 = vmatpush1.msra.mxu0 0.0
    %1312 = vmatprep.subr.mxu0 0.0
    %1313 = vmatpush1.msra.mxu0 0.0
    %1314 = vmatprep.subr.mxu0 0.0
    %1315 = vmatpush1.msra.mxu0 0.0
    %1316 = vmatprep.subr.mxu0 0.0
    %1317 = vmatpush1.msra.mxu0 0.0
    %1318 = vmatprep.subr.mxu0 0.0
    %1319 = vmatpush1.msra.mxu0 0.0
    %1320 = vmatprep.subr.mxu0 0.0
    %1321 = vmatpush1.msra.mxu0 0.0
    %1322 = vmatprep.subr.mxu0 0.0
    %1323 = vmatpush1.msra.mxu0 0.0
    %1324 = vmatprep.subr.mxu0 0.0
    %1325 = vmatpush1.msra.mxu0 0.0
    %1326 = vmatprep.subr.mxu0 0.0
    %1327 = vmatpush1.msra.mxu0 0.0
    %1328 = vmatprep.subr.mxu0 0.0
    %1329 = vmatpush1.msra.mxu0 0.0
    %1330 = vmatprep.subr.mxu0 0.0
    %1331 = vmatpush1.msra.mxu0 0.0
    %1332 = vmatprep.subr.mxu0 0.0
    %1333 = vmatpush1.msra.mxu0 0.0
    %1334 = vmatprep.subr.mxu0 0.0
    %1335 = vmatpush1.msra.mxu0 0.0
    %1336 = vmatprep.subr.mxu0 0.0
    %1337 = vmatpush1.msra.mxu0 0.0
    %1338 = vmatprep.subr.mxu0 0.0
    %1339 = vmatpush1.msra.mxu0 0.0
    %1340 = vmatprep.subr.mxu0 0.0
    %1341 = vmatpush1.msra.mxu0 0.0
    %1342 = vmatprep.subr.mxu0 0.0
    %1343 = vmatpush1.msra.mxu0 0.0
    %1344 = vmatprep.subr.mxu0 0.0
    %1345 = vmatpush1.msra.mxu0 0.0
    %1346 = vmatprep.subr.mxu0 0.0
    %1347 = vmatpush1.msra.mxu0 0.0
    %1348 = vmatprep.subr.mxu0 0.0
    %1349 = vmatpush1.msra.mxu0 0.0
    %1350 = vmatprep.subr.mxu0 0.0
    %1351 = vmatpush1.msra.mxu0 0.0
    %1352 = vmatprep.subr.mxu0 0.0
    %1353 = vmatpush1.msra.mxu0 0.0
    %1354 = vmatprep.subr.mxu0 0.0
    %1355 = vmatpush1.msra.mxu0 0.0
    %1356 = vmatprep.subr.mxu0 0.0
    %1357 = vmatpush1.msra.mxu0 0.0
    %1358 = vmatprep.subr.mxu0 0.0
    %1359 = vmatpush1.msra.mxu0 0.0
    %1360 = vmatprep.mubr.f32.mxu0 0.0
    %1361 = vmatmul.mubr.f32.gmra.mrb[0].mxu0 %v1294
    %v1362 = vpop.f32.mrb[0].mxu0
    %v1363 = vadd.f32 0.0, %v1362
    %v1364 = vpop.f32.mrb[0].mxu0
    %1365 = vdwg.mxu0
    %1366 = vrot.lane.b32.xlu0 %v327, 64
    %v1367 = vpop.permute.xlu0 %1366
    %v1370 = vsel %vm359, %v1058, 0
    %1372 = vmatprep.subr.mxu0 0.0
    %1373 = vmatpush1.msra.mxu0 %v1367
    %1374 = vmatprep.subr.mxu0 0.0
    %1375 = vmatpush1.msra.mxu0 0.0
    %1376 = vmatprep.subr.mxu0 0.0
    %1377 = vmatpush1.msra.mxu0 0.0
    %1378 = vmatprep.subr.mxu0 0.0
    %1379 = vmatpush1.msra.mxu0 0.0
    %1380 = vmatprep.subr.mxu0 0.0
    %1381 = vmatpush1.msra.mxu0 0.0
    %1382 = vmatprep.subr.mxu0 0.0
    %1383 = vmatpush1.msra.mxu0 0.0
    %1384 = vmatprep.subr.mxu0 0.0
    %1385 = vmatpush1.msra.mxu0 0.0
    %1386 = vmatprep.subr.mxu0 0.0
    %1387 = vmatpush1.msra.mxu0 0.0
    %1388 = vmatprep.subr.mxu0 0.0
    %1389 = vmatpush1.msra.mxu0 0.0
    %1390 = vmatprep.subr.mxu0 0.0
    %1391 = vmatpush1.msra.mxu0 0.0
    %1392 = vmatprep.subr.mxu0 0.0
    %1393 = vmatpush1.msra.mxu0 0.0
    %1394 = vmatprep.subr.mxu0 0.0
    %1395 = vmatpush1.msra.mxu0 0.0
    %1396 = vmatprep.subr.mxu0 0.0
    %1397 = vmatpush1.msra.mxu0 0.0
    %1398 = vmatprep.subr.mxu0 0.0
    %1399 = vmatpush1.msra.mxu0 0.0
    %1400 = vmatprep.subr.mxu0 0.0
    %1401 = vmatpush1.msra.mxu0 0.0
    %1402 = vmatprep.subr.mxu0 0.0
    %1403 = vmatpush1.msra.mxu0 0.0
    %1404 = vmatprep.subr.mxu0 0.0
    %1405 = vmatpush1.msra.mxu0 0.0
    %1406 = vmatprep.subr.mxu0 0.0
    %1407 = vmatpush1.msra.mxu0 0.0
    %1408 = vmatprep.subr.mxu0 0.0
    %1409 = vmatpush1.msra.mxu0 0.0
    %1410 = vmatprep.subr.mxu0 0.0
    %1411 = vmatpush1.msra.mxu0 0.0
    %1412 = vmatprep.subr.mxu0 0.0
    %1413 = vmatpush1.msra.mxu0 0.0
    %1414 = vmatprep.subr.mxu0 0.0
    %1415 = vmatpush1.msra.mxu0 0.0
    %1416 = vmatprep.subr.mxu0 0.0
    %1417 = vmatpush1.msra.mxu0 0.0
    %1418 = vmatprep.subr.mxu0 0.0
    %1419 = vmatpush1.msra.mxu0 0.0
    %1420 = vmatprep.subr.mxu0 0.0
    %1421 = vmatpush1.msra.mxu0 0.0
    %1422 = vmatprep.subr.mxu0 0.0
    %1423 = vmatpush1.msra.mxu0 0.0
    %1424 = vmatprep.subr.mxu0 0.0
    %1425 = vmatpush1.msra.mxu0 0.0
    %1426 = vmatprep.subr.mxu0 0.0
    %1427 = vmatpush1.msra.mxu0 0.0
    %1428 = vmatprep.subr.mxu0 0.0
    %1429 = vmatpush1.msra.mxu0 0.0
    %1430 = vmatprep.subr.mxu0 0.0
    %1431 = vmatpush1.msra.mxu0 0.0
    %1432 = vmatprep.subr.mxu0 0.0
    %1433 = vmatpush1.msra.mxu0 0.0
    %1434 = vmatprep.subr.mxu0 0.0
    %1435 = vmatpush1.msra.mxu0 0.0
    %1436 = vmatprep.mubr.f32.mxu0 0.0
    %1437 = vmatmul.mubr.f32.gmra.mrb[0].mxu0 %v1370
    %v1438 = vpop.f32.mrb[0].mxu0
    %v1439 = vadd.f32 0.0, %v1438
    %v1440 = vpop.f32.mrb[0].mxu0
    %1441 = vdwg.mxu0
    %1442 = vrot.lane.b32.xlu0 %v329, 64
    %v1443 = vpop.permute.xlu0 %1442
    %v1446 = vsel %vm359, %v1059, 0
    %1448 = vmatprep.subr.mxu0 0.0
    %1449 = vmatpush1.msra.mxu0 %v1443
    %1450 = vmatprep.subr.mxu0 0.0
    %1451 = vmatpush1.msra.mxu0 0.0
    %1452 = vmatprep.subr.mxu0 0.0
    %1453 = vmatpush1.msra.mxu0 0.0
    %1454 = vmatprep.subr.mxu0 0.0
    %1455 = vmatpush1.msra.mxu0 0.0
    %1456 = vmatprep.subr.mxu0 0.0
    %1457 = vmatpush1.msra.mxu0 0.0
    %1458 = vmatprep.subr.mxu0 0.0
    %1459 = vmatpush1.msra.mxu0 0.0
    %1460 = vmatprep.subr.mxu0 0.0
    %1461 = vmatpush1.msra.mxu0 0.0
    %1462 = vmatprep.subr.mxu0 0.0
    %1463 = vmatpush1.msra.mxu0 0.0
    %1464 = vmatprep.subr.mxu0 0.0
    %1465 = vmatpush1.msra.mxu0 0.0
    %1466 = vmatprep.subr.mxu0 0.0
    %1467 = vmatpush1.msra.mxu0 0.0
    %1468 = vmatprep.subr.mxu0 0.0
    %1469 = vmatpush1.msra.mxu0 0.0
    %1470 = vmatprep.subr.mxu0 0.0
    %1471 = vmatpush1.msra.mxu0 0.0
    %1472 = vmatprep.subr.mxu0 0.0
    %1473 = vmatpush1.msra.mxu0 0.0
    %1474 = vmatprep.subr.mxu0 0.0
    %1475 = vmatpush1.msra.mxu0 0.0
    %1476 = vmatprep.subr.mxu0 0.0
    %1477 = vmatpush1.msra.mxu0 0.0
    %1478 = vmatprep.subr.mxu0 0.0
    %1479 = vmatpush1.msra.mxu0 0.0
    %1480 = vmatprep.subr.mxu0 0.0
    %1481 = vmatpush1.msra.mxu0 0.0
    %1482 = vmatprep.subr.mxu0 0.0
    %1483 = vmatpush1.msra.mxu0 0.0
    %1484 = vmatprep.subr.mxu0 0.0
    %1485 = vmatpush1.msra.mxu0 0.0
    %1486 = vmatprep.subr.mxu0 0.0
    %1487 = vmatpush1.msra.mxu0 0.0
    %1488 = vmatprep.subr.mxu0 0.0
    %1489 = vmatpush1.msra.mxu0 0.0
    %1490 = vmatprep.subr.mxu0 0.0
    %1491 = vmatpush1.msra.mxu0 0.0
    %1492 = vmatprep.subr.mxu0 0.0
    %1493 = vmatpush1.msra.mxu0 0.0
    %1494 = vmatprep.subr.mxu0 0.0
    %1495 = vmatpush1.msra.mxu0 0.0
    %1496 = vmatprep.subr.mxu0 0.0
    %1497 = vmatpush1.msra.mxu0 0.0
    %1498 = vmatprep.subr.mxu0 0.0
    %1499 = vmatpush1.msra.mxu0 0.0
    %1500 = vmatprep.subr.mxu0 0.0
    %1501 = vmatpush1.msra.mxu0 0.0
    %1502 = vmatprep.subr.mxu0 0.0
    %1503 = vmatpush1.msra.mxu0 0.0
    %1504 = vmatprep.subr.mxu0 0.0
    %1505 = vmatpush1.msra.mxu0 0.0
    %1506 = vmatprep.subr.mxu0 0.0
    %1507 = vmatpush1.msra.mxu0 0.0
    %1508 = vmatprep.subr.mxu0 0.0
    %1509 = vmatpush1.msra.mxu0 0.0
    %1510 = vmatprep.subr.mxu0 0.0
    %1511 = vmatpush1.msra.mxu0 0.0
    %1512 = vmatprep.mubr.f32.mxu0 0.0
    %1513 = vmatmul.mubr.f32.gmra.mrb[0].mxu0 %v1446
    %v1514 = vpop.f32.mrb[0].mxu0
    %v1515 = vadd.f32 0.0, %v1514
    %v1516 = vpop.f32.mrb[0].mxu0
    %1517 = vdwg.mxu0
    %1518 = vrot.lane.b32.xlu0 %v331, 64
    %v1519 = vpop.permute.xlu0 %1518
    %v1522 = vsel %vm359, %v1060, 0
    %1524 = vmatprep.subr.mxu0 0.0
    %1525 = vmatpush1.msra.mxu0 %v1519
    %1526 = vmatprep.subr.mxu0 0.0
    %1527 = vmatpush1.msra.mxu0 0.0
    %1528 = vmatprep.subr.mxu0 0.0
    %1529 = vmatpush1.msra.mxu0 0.0
    %1530 = vmatprep.subr.mxu0 0.0
    %1531 = vmatpush1.msra.mxu0 0.0
    %1532 = vmatprep.subr.mxu0 0.0
    %1533 = vmatpush1.msra.mxu0 0.0
    %1534 = vmatprep.subr.mxu0 0.0
    %1535 = vmatpush1.msra.mxu0 0.0
    %1536 = vmatprep.subr.mxu0 0.0
    %1537 = vmatpush1.msra.mxu0 0.0
    %1538 = vmatprep.subr.mxu0 0.0
    %1539 = vmatpush1.msra.mxu0 0.0
    %1540 = vmatprep.subr.mxu0 0.0
    %1541 = vmatpush1.msra.mxu0 0.0
    %1542 = vmatprep.subr.mxu0 0.0
    %1543 = vmatpush1.msra.mxu0 0.0
    %1544 = vmatprep.subr.mxu0 0.0
    %1545 = vmatpush1.msra.mxu0 0.0
    %1546 = vmatprep.subr.mxu0 0.0
    %1547 = vmatpush1.msra.mxu0 0.0
    %1548 = vmatprep.subr.mxu0 0.0
    %1549 = vmatpush1.msra.mxu0 0.0
    %1550 = vmatprep.subr.mxu0 0.0
    %1551 = vmatpush1.msra.mxu0 0.0
    %1552 = vmatprep.subr.mxu0 0.0
    %1553 = vmatpush1.msra.mxu0 0.0
    %1554 = vmatprep.subr.mxu0 0.0
    %1555 = vmatpush1.msra.mxu0 0.0
    %1556 = vmatprep.subr.mxu0 0.0
    %1557 = vmatpush1.msra.mxu0 0.0
    %1558 = vmatprep.subr.mxu0 0.0
    %1559 = vmatpush1.msra.mxu0 0.0
    %1560 = vmatprep.subr.mxu0 0.0
    %1561 = vmatpush1.msra.mxu0 0.0
    %1562 = vmatprep.subr.mxu0 0.0
    %1563 = vmatpush1.msra.mxu0 0.0
    %1564 = vmatprep.subr.mxu0 0.0
    %1565 = vmatpush1.msra.mxu0 0.0
    %1566 = vmatprep.subr.mxu0 0.0
    %1567 = vmatpush1.msra.mxu0 0.0
    %1568 = vmatprep.subr.mxu0 0.0
    %1569 = vmatpush1.msra.mxu0 0.0
    %1570 = vmatprep.subr.mxu0 0.0
    %1571 = vmatpush1.msra.mxu0 0.0
    %1572 = vmatprep.subr.mxu0 0.0
    %1573 = vmatpush1.msra.mxu0 0.0
    %1574 = vmatprep.subr.mxu0 0.0
    %1575 = vmatpush1.msra.mxu0 0.0
    %1576 = vmatprep.subr.mxu0 0.0
    %1577 = vmatpush1.msra.mxu0 0.0
    %1578 = vmatprep.subr.mxu0 0.0
    %1579 = vmatpush1.msra.mxu0 0.0
    %1580 = vmatprep.subr.mxu0 0.0
    %1581 = vmatpush1.msra.mxu0 0.0
    %1582 = vmatprep.subr.mxu0 0.0
    %1583 = vmatpush1.msra.mxu0 0.0
    %1584 = vmatprep.subr.mxu0 0.0
    %1585 = vmatpush1.msra.mxu0 0.0
    %1586 = vmatprep.subr.mxu0 0.0
    %1587 = vmatpush1.msra.mxu0 0.0
    %1588 = vmatprep.mubr.f32.mxu0 0.0
    %1589 = vmatmul.mubr.f32.gmra.mrb[0].mxu0 %v1522
    %v1590 = vpop.f32.mrb[0].mxu0
    %v1591 = vadd.f32 0.0, %v1590
    %v1592 = vpop.f32.mrb[0].mxu0
    %1593 = vdwg.mxu0
    %1594 = vrot.lane.b32.xlu0 %v333, 64
    %v1595 = vpop.permute.xlu0 %1594
    %v1598 = vsel %vm359, %v1061, 0
    %1600 = vmatprep.subr.mxu0 0.0
    %1601 = vmatpush1.msra.mxu0 %v1595
    %1602 = vmatprep.subr.mxu0 0.0
    %1603 = vmatpush1.msra.mxu0 0.0
    %1604 = vmatprep.subr.mxu0 0.0
    %1605 = vmatpush1.msra.mxu0 0.0
    %1606 = vmatprep.subr.mxu0 0.0
    %1607 = vmatpush1.msra.mxu0 0.0
    %1608 = vmatprep.subr.mxu0 0.0
    %1609 = vmatpush1.msra.mxu0 0.0
    %1610 = vmatprep.subr.mxu0 0.0
    %1611 = vmatpush1.msra.mxu0 0.0
    %1612 = vmatprep.subr.mxu0 0.0
    %1613 = vmatpush1.msra.mxu0 0.0
    %1614 = vmatprep.subr.mxu0 0.0
    %1615 = vmatpush1.msra.mxu0 0.0
    %1616 = vmatprep.subr.mxu0 0.0
    %1617 = vmatpush1.msra.mxu0 0.0
    %1618 = vmatprep.subr.mxu0 0.0
    %1619 = vmatpush1.msra.mxu0 0.0
    %1620 = vmatprep.subr.mxu0 0.0
    %1621 = vmatpush1.msra.mxu0 0.0
    %1622 = vmatprep.subr.mxu0 0.0
    %1623 = vmatpush1.msra.mxu0 0.0
    %1624 = vmatprep.subr.mxu0 0.0
    %1625 = vmatpush1.msra.mxu0 0.0
    %1626 = vmatprep.subr.mxu0 0.0
    %1627 = vmatpush1.msra.mxu0 0.0
    %1628 = vmatprep.subr.mxu0 0.0
    %1629 = vmatpush1.msra.mxu0 0.0
    %1630 = vmatprep.subr.mxu0 0.0
    %1631 = vmatpush1.msra.mxu0 0.0
    %1632 = vmatprep.subr.mxu0 0.0
    %1633 = vmatpush1.msra.mxu0 0.0
    %1634 = vmatprep.subr.mxu0 0.0
    %1635 = vmatpush1.msra.mxu0 0.0
    %1636 = vmatprep.subr.mxu0 0.0
    %1637 = vmatpush1.msra.mxu0 0.0
    %1638 = vmatprep.subr.mxu0 0.0
    %1639 = vmatpush1.msra.mxu0 0.0
    %1640 = vmatprep.subr.mxu0 0.0
    %1641 = vmatpush1.msra.mxu0 0.0
    %1642 = vmatprep.subr.mxu0 0.0
    %1643 = vmatpush1.msra.mxu0 0.0
    %1644 = vmatprep.subr.mxu0 0.0
    %1645 = vmatpush1.msra.mxu0 0.0
    %1646 = vmatprep.subr.mxu0 0.0
    %1647 = vmatpush1.msra.mxu0 0.0
    %1648 = vmatprep.subr.mxu0 0.0
    %1649 = vmatpush1.msra.mxu0 0.0
    %1650 = vmatprep.subr.mxu0 0.0
    %1651 = vmatpush1.msra.mxu0 0.0
    %1652 = vmatprep.subr.mxu0 0.0
    %1653 = vmatpush1.msra.mxu0 0.0
    %1654 = vmatprep.subr.mxu0 0.0
    %1655 = vmatpush1.msra.mxu0 0.0
    %1656 = vmatprep.subr.mxu0 0.0
    %1657 = vmatpush1.msra.mxu0 0.0
    %1658 = vmatprep.subr.mxu0 0.0
    %1659 = vmatpush1.msra.mxu0 0.0
    %1660 = vmatprep.subr.mxu0 0.0
    %1661 = vmatpush1.msra.mxu0 0.0
    %1662 = vmatprep.subr.mxu0 0.0
    %1663 = vmatpush1.msra.mxu0 0.0
    %1664 = vmatprep.mubr.f32.mxu0 0.0
    %1665 = vmatmul.mubr.f32.gmra.mrb[0].mxu0 %v1598
    %v1666 = vpop.f32.mrb[0].mxu0
    %v1667 = vadd.f32 0.0, %v1666
    %v1668 = vpop.f32.mrb[0].mxu0
    %1669 = vdwg.mxu0
    %1672 = vrot.lane.b32.xlu0 %v1287, 8
    %v1673 = vpop.permute.xlu0 %1672
    %1674 = vrot.lane.b32.xlu0 %v1363, 8
    %v1675 = vpop.permute.xlu0 %1674
    %1680 = vrot.lane.b32.xlu0 %v1439, 16
    %v1681 = vpop.permute.xlu0 %1680
    %1682 = vrot.lane.b32.xlu0 %v1515, 16
    %v1683 = vpop.permute.xlu0 %1682
    %1688 = vrot.lane.b32.xlu0 %v1591, 24
    %v1689 = vpop.permute.xlu0 %1688
    %1690 = vrot.lane.b32.xlu0 %v1667, 24
    %v1691 = vpop.permute.xlu0 %1690
    %v1694 = vsel %vm359, %v1135, %v1673
    %v1695 = vsel %vm359, %v1211, %v1675
    %vm1696 = vcmask 130048
    %v1697 = vsel %vm1696, %v1694, %v1681
    %v1698 = vsel %vm1696, %v1695, %v1683
    %vm1699 = vcmask 195584
    %v1700 = vsel %vm1699, %v1697, %v1689
    %v1701 = vsel %vm1699, %v1698, %v1691
    %v1702 = vld [vmem:[%s7] sm:$0xff]
    %v1703 = vld [vmem:[%s7 + $0x8] sm:$0xff]
    %v1704 = vld [vmem:[%s7 + $0x10] sm:$0xff]
    %v1705 = vld [vmem:[%s7 + $0x18] sm:$0xff]
    %v1706 = vld [vmem:[#allocation8] sm:$0x1]
    %v1708 = vlaneseq
    %v1709 = vshrl.u32 %v1708, 7
    %v1710 = vsub.s32 0, %v1709
    %v1711 = vrot.slane %v1706, %v1710
    %v1714 = vsel %vm220, %v1700, 0
    %v1717 = vsel %vm220, %v1701, 0
    %1719 = vmatprep.subr.mxu0 0.0
    %1720 = vmatpush1.msra.mxu0 %v1702
    %1721 = vmatprep.subr.mxu0 0.0
    %1722 = vmatpush1.msra.mxu0 %v1703
    %1723 = vmatprep.subr.mxu0 0.0
    %1724 = vmatpush1.msra.mxu0 %v1704
    %1725 = vmatprep.subr.mxu0 0.0
    %1726 = vmatpush1.msra.mxu0 %v1705
    %1727 = vmatprep.subr.mxu0 0.0
    %1728 = vmatpush1.msra.mxu0 0.0
    %1729 = vmatprep.subr.mxu0 0.0
    %1730 = vmatpush1.msra.mxu0 0.0
    %1731 = vmatprep.subr.mxu0 0.0
    %1732 = vmatpush1.msra.mxu0 0.0
    %1733 = vmatprep.subr.mxu0 0.0
    %1734 = vmatpush1.msra.mxu0 0.0
    %1735 = vmatprep.subr.mxu0 0.0
    %1736 = vmatpush1.msra.mxu0 0.0
    %1737 = vmatprep.subr.mxu0 0.0
    %1738 = vmatpush1.msra.mxu0 0.0
    %1739 = vmatprep.subr.mxu0 0.0
    %1740 = vmatpush1.msra.mxu0 0.0
    %1741 = vmatprep.subr.mxu0 0.0
    %1742 = vmatpush1.msra.mxu0 0.0
    %1743 = vmatprep.subr.mxu0 0.0
    %1744 = vmatpush1.msra.mxu0 0.0
    %1745 = vmatprep.subr.mxu0 0.0
    %1746 = vmatpush1.msra.mxu0 0.0
    %1747 = vmatprep.subr.mxu0 0.0
    %1748 = vmatpush1.msra.mxu0 0.0
    %1749 = vmatprep.subr.mxu0 0.0
    %1750 = vmatpush1.msra.mxu0 0.0
    %1751 = vmatprep.subr.mxu0 0.0
    %1752 = vmatpush1.msra.mxu0 0.0
    %1753 = vmatprep.subr.mxu0 0.0
    %1754 = vmatpush1.msra.mxu0 0.0
    %1755 = vmatprep.subr.mxu0 0.0
    %1756 = vmatpush1.msra.mxu0 0.0
    %1757 = vmatprep.subr.mxu0 0.0
    %1758 = vmatpush1.msra.mxu0 0.0
    %1759 = vmatprep.subr.mxu0 0.0
    %1760 = vmatpush1.msra.mxu0 0.0
    %1761 = vmatprep.subr.mxu0 0.0
    %1762 = vmatpush1.msra.mxu0 0.0
    %1763 = vmatprep.subr.mxu0 0.0
    %1764 = vmatpush1.msra.mxu0 0.0
    %1765 = vmatprep.subr.mxu0 0.0
    %1766 = vmatpush1.msra.mxu0 0.0
    %1767 = vmatprep.subr.mxu0 0.0
    %1768 = vmatpush1.msra.mxu0 0.0
    %1769 = vmatprep.subr.mxu0 0.0
    %1770 = vmatpush1.msra.mxu0 0.0
    %1771 = vmatprep.subr.mxu0 0.0
    %1772 = vmatpush1.msra.mxu0 0.0
    %1773 = vmatprep.subr.mxu0 0.0
    %1774 = vmatpush1.msra.mxu0 0.0
    %1775 = vmatprep.subr.mxu0 0.0
    %1776 = vmatpush1.msra.mxu0 0.0
    %1777 = vmatprep.subr.mxu0 0.0
    %1778 = vmatpush1.msra.mxu0 0.0
    %1779 = vmatprep.subr.mxu0 0.0
    %1780 = vmatpush1.msra.mxu0 0.0
    %1781 = vmatprep.subr.mxu0 0.0
    %1782 = vmatpush1.msra.mxu0 0.0
    %1783 = vmatprep.mubr.f32.mxu0 0.0
    %1784 = vmatmul.mubr.f32.gmra.mrb[0].mxu0 %v1714
    %v1785 = vpop.f32.mrb[0].mxu0
    %v1786 = vadd.f32 %v1711, %v1785
    %v1787 = vpop.f32.mrb[0].mxu0
    %1788 = vmatprep.mubr.f32.mxu0 0.0
    %1789 = vmatmul.mubr.f32.gmra.mrb[0].mxu0 %v1717
    %v1790 = vpop.f32.mrb[0].mxu0
    %v1791 = vadd.f32 %v1711, %v1790
    %v1792 = vpop.f32.mrb[0].mxu0
    %1793 = vdwg.mxu0
    %v1794 = vmul.f32 %v1786, %v202
    %v1795 = vmul.f32 %v1791, %v207
    %v1796 = vadd.f32 %v1794, %v195
    %v1797 = vadd.f32 %v1795, %v196
    %v1798 = vld [vmem:[%s19] sm:$0x1]
    %v1799 = vld [vmem:[%s20] sm:$0x1]
    %v1800 = vsel %vm220, %v1796, 0.0
    %1801 = vadd.xlane.f32.xlu0 %v1800
    %v1802 = vpop.xlane.xlu0 %1801
    %v1803 = vsel %vm220, %v1797, 0.0
    %1804 = vadd.xlane.f32.xlu0 %v1803
    %v1805 = vpop.xlane.xlu0 %1804
    %v1806 = vrcp.pop 32.0
    %v1807 = vmul.f32 %v1802, %v1806
    %v1808 = vmul.f32 %v1805, %v1806
    %v1809 = vsub.f32 %v1796, %v1807
    %v1810 = vsub.f32 %v1797, %v1808
    %v1811 = vmul.f32 %v1809, %v1809
    %v1812 = vmul.f32 %v1810, %v1810
    %v1813 = vsel %vm220, %v1811, 0.0
    %1814 = vadd.xlane.f32.xlu0 %v1813
    %v1815 = vpop.xlane.xlu0 %1814
    %v1816 = vsel %vm220, %v1812, 0.0
    %1817 = vadd.xlane.f32.xlu0 %v1816
    %v1818 = vpop.xlane.xlu0 %1817
    %v1819 = vmul.f32 %v1815, %v1806
    %v1820 = vmul.f32 %v1818, %v1806
    %v1821 = vadd.f32 %v1819, 1e-05
    %v1822 = vadd.f32 %v1820, 1e-05
    %v1823 = vrsqrt.pop %v1821
    %v1824 = vrsqrt.pop %v1822
    %v1825 = vmul.f32 %v1809, %v1823
    %v1826 = vmul.f32 %v1810, %v1824
    %v1828 = vlaneseq
    %v1829 = vshrl.u32 %v1828, 7
    %v1830 = vsub.s32 0, %v1829
    %v1831 = vrot.slane %v1798, %v1830
    %v1833 = vmul.f32 %v1825, %v1831
    %v1834 = vmul.f32 %v1826, %v1831
    %v1836 = vlaneseq
    %v1837 = vshrl.u32 %v1836, 7
    %v1838 = vsub.s32 0, %v1837
    %v1839 = vrot.slane %v1799, %v1838
    %v1841 = vadd.f32 %v1833, %v1839
    %v1842 = vadd.f32 %v1834, %v1839
    %v1843 = vld [vmem:[#allocation10] sm:$0xff]
    %v1844 = vld [vmem:[#allocation10 + $0x8] sm:$0xff]
    %v1845 = vld [vmem:[#allocation10 + $0x10] sm:$0xff]
    %v1846 = vld [vmem:[#allocation10 + $0x18] sm:$0xff]
    %v1847 = vld [vmem:[#allocation11] sm:$0x1]
    %v1849 = vlaneseq
    %v1850 = vshrl.u32 %v1849, 7
    %v1851 = vsub.s32 0, %v1850
    %v1852 = vrot.slane %v1847, %v1851
    %v1855 = vsel %vm220, %v1841, 0
    %v1858 = vsel %vm220, %v1842, 0
    %1860 = vmatprep.subr.mxu0 0.0
    %1861 = vmatpush1.msra.mxu0 %v1843
    %1862 = vmatprep.subr.mxu0 0.0
    %1863 = vmatpush1.msra.mxu0 %v1844
    %1864 = vmatprep.subr.mxu0 0.0
    %1865 = vmatpush1.msra.mxu0 %v1845
    %1866 = vmatprep.subr.mxu0 0.0
    %1867 = vmatpush1.msra.mxu0 %v1846
    %1868 = vmatprep.subr.mxu0 0.0
    %1869 = vmatpush1.msra.mxu0 0.0
    %1870 = vmatprep.subr.mxu0 0.0
    %1871 = vmatpush1.msra.mxu0 0.0
    %1872 = vmatprep.subr.mxu0 0.0
    %1873 = vmatpush1.msra.mxu0 0.0
    %1874 = vmatprep.subr.mxu0 0.0
    %1875 = vmatpush1.msra.mxu0 0.0
    %1876 = vmatprep.subr.mxu0 0.0
    %1877 = vmatpush1.msra.mxu0 0.0
    %1878 = vmatprep.subr.mxu0 0.0
    %1879 = vmatpush1.msra.mxu0 0.0
    %1880 = vmatprep.subr.mxu0 0.0
    %1881 = vmatpush1.msra.mxu0 0.0
    %1882 = vmatprep.subr.mxu0 0.0
    %1883 = vmatpush1.msra.mxu0 0.0
    %1884 = vmatprep.subr.mxu0 0.0
    %1885 = vmatpush1.msra.mxu0 0.0
    %1886 = vmatprep.subr.mxu0 0.0
    %1887 = vmatpush1.msra.mxu0 0.0
    %1888 = vmatprep.subr.mxu0 0.0
    %1889 = vmatpush1.msra.mxu0 0.0
    %1890 = vmatprep.subr.mxu0 0.0
    %1891 = vmatpush1.msra.mxu0 0.0
    %1892 = vmatprep.subr.mxu0 0.0
    %1893 = vmatpush1.msra.mxu0 0.0
    %1894 = vmatprep.subr.mxu0 0.0
    %1895 = vmatpush1.msra.mxu0 0.0
    %1896 = vmatprep.subr.mxu0 0.0
    %1897 = vmatpush1.msra.mxu0 0.0
    %1898 = vmatprep.subr.mxu0 0.0
    %1899 = vmatpush1.msra.mxu0 0.0
    %1900 = vmatprep.subr.mxu0 0.0
    %1901 = vmatpush1.msra.mxu0 0.0
    %1902 = vmatprep.subr.mxu0 0.0
    %1903 = vmatpush1.msra.mxu0 0.0
    %1904 = vmatprep.subr.mxu0 0.0
    %1905 = vmatpush1.msra.mxu0 0.0
    %1906 = vmatprep.subr.mxu0 0.0
    %1907 = vmatpush1.msra.mxu0 0.0
    %1908 = vmatprep.subr.mxu0 0.0
    %1909 = vmatpush1.msra.mxu0 0.0
    %1910 = vmatprep.subr.mxu0 0.0
    %1911 = vmatpush1.msra.mxu0 0.0
    %1912 = vmatprep.subr.mxu0 0.0
    %1913 = vmatpush1.msra.mxu0 0.0
    %1914 = vmatprep.subr.mxu0 0.0
    %1915 = vmatpush1.msra.mxu0 0.0
    %1916 = vmatprep.subr.mxu0 0.0
    %1917 = vmatpush1.msra.mxu0 0.0
    %1918 = vmatprep.subr.mxu0 0.0
    %1919 = vmatpush1.msra.mxu0 0.0
    %1920 = vmatprep.subr.mxu0 0.0
    %1921 = vmatpush1.msra.mxu0 0.0
    %1922 = vmatprep.subr.mxu0 0.0
    %1923 = vmatpush1.msra.mxu0 0.0
    %1924 = vmatprep.mubr.f32.mxu0 0.0
    %1925 = vmatmul.mubr.f32.gmra.mrb[0].mxu0 %v1855
    %v1926 = vpop.f32.mrb[0].mxu0
    %v1927 = vadd.f32 %v1852, %v1926
    %v1928 = vpop.f32.mrb[0].mxu0
    %1929 = vmatprep.mubr.f32.mxu0 0.0
    %1930 = vmatmul.mubr.f32.gmra.mrb[0].mxu0 %v1858
    %v1931 = vpop.f32.mrb[0].mxu0
    %v1932 = vadd.f32 %v1852, %v1931
    %v1933 = vpop.f32.mrb[0].mxu0
    %1934 = vdwg.mxu0
    %v1935 = vld [vmem:[%s1] sm:$0xff]
    %v1936 = vld [vmem:[%s1 + $0x8] sm:$0xff]
    %v1937 = vld [vmem:[%s1 + $0x10] sm:$0xff]
    %v1938 = vld [vmem:[%s1 + $0x18] sm:$0xff]
    %v1939 = vld [vmem:[#allocation13] sm:$0xff]
    %v1940 = vld [vmem:[#allocation13 + $0x8] sm:$0xff]
    %v1941 = vld [vmem:[#allocation13 + $0x10] sm:$0xff]
    %v1942 = vld [vmem:[#allocation13 + $0x18] sm:$0xff]
    %v1943 = vld [vmem:[#allocation14] sm:$0x1]
    %v1945 = vlaneseq
    %v1946 = vshrl.u32 %v1945, 7
    %v1947 = vsub.s32 0, %v1946
    %v1948 = vrot.slane %v1943, %v1947
    %v1951 = vsel %vm220, %v1935, 0
    %v1954 = vsel %vm220, %v1936, 0
    %v1957 = vsel %vm220, %v1937, 0
    %v1960 = vsel %vm220, %v1938, 0
    %1962 = vmatprep.subr.mxu0 0.0
    %1963 = vmatpush1.msra.mxu0 %v1939
    %1964 = vmatprep.subr.mxu0 0.0
    %1965 = vmatpush1.msra.mxu0 %v1940
    %1966 = vmatprep.subr.mxu0 0.0
    %1967 = vmatpush1.msra.mxu0 %v1941
    %1968 = vmatprep.subr.mxu0 0.0
    %1969 = vmatpush1.msra.mxu0 %v1942
    %1970 = vmatprep.subr.mxu0 0.0
    %1971 = vmatpush1.msra.mxu0 0.0
    %1972 = vmatprep.subr.mxu0 0.0
    %1973 = vmatpush1.msra.mxu0 0.0
    %1974 = vmatprep.subr.mxu0 0.0
    %1975 = vmatpush1.msra.mxu0 0.0
    %1976 = vmatprep.subr.mxu0 0.0
    %1977 = vmatpush1.msra.mxu0 0.0
    %1978 = vmatprep.subr.mxu0 0.0
    %1979 = vmatpush1.msra.mxu0 0.0
    %1980 = vmatprep.subr.mxu0 0.0
    %1981 = vmatpush1.msra.mxu0 0.0
    %1982 = vmatprep.subr.mxu0 0.0
    %1983 = vmatpush1.msra.mxu0 0.0
    %1984 = vmatprep.subr.mxu0 0.0
    %1985 = vmatpush1.msra.mxu0 0.0
    %1986 = vmatprep.subr.mxu0 0.0
    %1987 = vmatpush1.msra.mxu0 0.0
    %1988 = vmatprep.subr.mxu0 0.0
    %1989 = vmatpush1.msra.mxu0 0.0
    %1990 = vmatprep.subr.mxu0 0.0
    %1991 = vmatpush1.msra.mxu0 0.0
    %1992 = vmatprep.subr.mxu0 0.0
    %1993 = vmatpush1.msra.mxu0 0.0
    %1994 = vmatprep.subr.mxu0 0.0
    %1995 = vmatpush1.msra.mxu0 0.0
    %1996 = vmatprep.subr.mxu0 0.0
    %1997 = vmatpush1.msra.mxu0 0.0
    %1998 = vmatprep.subr.mxu0 0.0
    %1999 = vmatpush1.msra.mxu0 0.0
    %2000 = vmatprep.subr.mxu0 0.0
    %2001 = vmatpush1.msra.mxu0 0.0
    %2002 = vmatprep.subr.mxu0 0.0
    %2003 = vmatpush1.msra.mxu0 0.0
    %2004 = vmatprep.subr.mxu0 0.0
    %2005 = vmatpush1.msra.mxu0 0.0
    %2006 = vmatprep.subr.mxu0 0.0
    %2007 = vmatpush1.msra.mxu0 0.0
    %2008 = vmatprep.subr.mxu0 0.0
    %2009 = vmatpush1.msra.mxu0 0.0
    %2010 = vmatprep.subr.mxu0 0.0
    %2011 = vmatpush1.msra.mxu0 0.0
    %2012 = vmatprep.subr.mxu0 0.0
    %2013 = vmatpush1.msra.mxu0 0.0
    %2014 = vmatprep.subr.mxu0 0.0
    %2015 = vmatpush1.msra.mxu0 0.0
    %2016 = vmatprep.subr.mxu0 0.0
    %2017 = vmatpush1.msra.mxu0 0.0
    %2018 = vmatprep.subr.mxu0 0.0
    %2019 = vmatpush1.msra.mxu0 0.0
    %2020 = vmatprep.subr.mxu0 0.0
    %2021 = vmatpush1.msra.mxu0 0.0
    %2022 = vmatprep.subr.mxu0 0.0
    %2023 = vmatpush1.msra.mxu0 0.0
    %2024 = vmatprep.subr.mxu0 0.0
    %2025 = vmatpush1.msra.mxu0 0.0
    %2026 = vmatprep.mubr.f32.mxu0 0.0
    %2027 = vmatmul.mubr.f32.gmra.mrb[0].mxu0 %v1951
    %v2028 = vpop.f32.mrb[0].mxu0
    %v2029 = vadd.f32 %v1948, %v2028
    %v2030 = vpop.f32.mrb[0].mxu0
    %2031 = vmatprep.mubr.f32.mxu0 0.0
    %2032 = vmatmul.mubr.f32.gmra.mrb[0].mxu0 %v1954
    %v2033 = vpop.f32.mrb[0].mxu0
    %v2034 = vadd.f32 %v1948, %v2033
    %v2035 = vpop.f32.mrb[0].mxu0
    %2036 = vmatprep.mubr.f32.mxu0 0.0
    %2037 = vmatmul.mubr.f32.gmra.mrb[0].mxu0 %v1957
    %v2038 = vpop.f32.mrb[0].mxu0
    %v2039 = vadd.f32 %v1948, %v2038
    %v2040 = vpop.f32.mrb[0].mxu0
    %2041 = vmatprep.mubr.f32.mxu0 0.0
    %2042 = vmatmul.mubr.f32.gmra.mrb[0].mxu0 %v1960
    %v2043 = vpop.f32.mrb[0].mxu0
    %v2044 = vadd.f32 %v1948, %v2043
    %v2045 = vpop.f32.mrb[0].mxu0
    %2046 = vdwg.mxu0
    %v2047 = vld [vmem:[#allocation5] sm:$0x1]
    %v2048 = vld [vmem:[#allocation5 + $0x1] sm:$0x1]
    %v2049 = vmul.f32 %v1927, 0.35355338
    %v2050 = vmul.f32 %v1932, 0.35355338
    %2053 = vrot.lane.b32.xlu0 %v2049, 120
    %v2054 = vpop.permute.xlu0 %2053
    %2055 = vrot.lane.b32.xlu0 %v2050, 120
    %v2056 = vpop.permute.xlu0 %2055
    %2057 = vrot.lane.b32.xlu0 %v2049, 112
    %v2058 = vpop.permute.xlu0 %2057
    %2059 = vrot.lane.b32.xlu0 %v2050, 112
    %v2060 = vpop.permute.xlu0 %2059
    %2061 = vrot.lane.b32.xlu0 %v2049, 104
    %v2062 = vpop.permute.xlu0 %2061
    %2063 = vrot.lane.b32.xlu0 %v2050, 104
    %v2064 = vpop.permute.xlu0 %2063
    %2069 = vrot.lane.b32.xlu0 %v2029, 120
    %v2070 = vpop.permute.xlu0 %2069
    %2071 = vrot.lane.b32.xlu0 %v2034, 120
    %v2072 = vpop.permute.xlu0 %2071
    %2073 = vrot.lane.b32.xlu0 %v2039, 120
    %v2074 = vpop.permute.xlu0 %2073
    %2075 = vrot.lane.b32.xlu0 %v2044, 120
    %v2076 = vpop.permute.xlu0 %2075
    %2077 = vrot.lane.b32.xlu0 %v2029, 112
    %v2078 = vpop.permute.xlu0 %2077
    %2079 = vrot.lane.b32.xlu0 %v2034, 112
    %v2080 = vpop.permute.xlu0 %2079
    %2081 = vrot.lane.b32.xlu0 %v2039, 112
    %v2082 = vpop.permute.xlu0 %2081
    %2083 = vrot.lane.b32.xlu0 %v2044, 112
    %v2084 = vpop.permute.xlu0 %2083
    %2085 = vrot.lane.b32.xlu0 %v2029, 104
    %v2086 = vpop.permute.xlu0 %2085
    %2087 = vrot.lane.b32.xlu0 %v2034, 104
    %v2088 = vpop.permute.xlu0 %2087
    %2089 = vrot.lane.b32.xlu0 %v2039, 104
    %v2090 = vpop.permute.xlu0 %2089
    %2091 = vrot.lane.b32.xlu0 %v2044, 104
    %v2092 = vpop.permute.xlu0 %2091
    %vm2093 = vcmp.gt.f32.partialorder %v2047, 0.5
    %vm2094 = vcmp.gt.f32.partialorder %v2048, 0.5
    %v2095 = vsel %vm359, %v2049, 0
    %v2097 = vsel %vm359, %v2029, 0
    %v2099 = vsel %vm359, %v2034, 0
    %2101 = vmatprep.subr.mxu0 0.0
    %2102 = vmatpush1.xpose.msra.mxu0 %v2097
    %2103 = vmatprep.subr.mxu0 0.0
    %2104 = vmatpush1.xpose.msra.mxu0 %v2099
    %2105 = vmatprep.subr.mxu0 0.0
    %2106 = vmatpush1.xpose.msra.mxu0 0.0
    %2107 = vmatprep.subr.mxu0 0.0
    %2108 = vmatpush1.xpose.msra.mxu0 0.0
    %2109 = vmatprep.subr.mxu0 0.0
    %2110 = vmatpush1.xpose.msra.mxu0 0.0
    %2111 = vmatprep.subr.mxu0 0.0
    %2112 = vmatpush1.xpose.msra.mxu0 0.0
    %2113 = vmatprep.subr.mxu0 0.0
    %2114 = vmatpush1.xpose.msra.mxu0 0.0
    %2115 = vmatprep.subr.mxu0 0.0
    %2116 = vmatpush1.xpose.msra.mxu0 0.0
    %2117 = vmatprep.subr.mxu0 0.0
    %2118 = vmatpush1.xpose.msra.mxu0 0.0
    %2119 = vmatprep.subr.mxu0 0.0
    %2120 = vmatpush1.xpose.msra.mxu0 0.0
    %2121 = vmatprep.subr.mxu0 0.0
    %2122 = vmatpush1.xpose.msra.mxu0 0.0
    %2123 = vmatprep.subr.mxu0 0.0
    %2124 = vmatpush1.xpose.msra.mxu0 0.0
    %2125 = vmatprep.subr.mxu0 0.0
    %2126 = vmatpush1.xpose.msra.mxu0 0.0
    %2127 = vmatprep.subr.mxu0 0.0
    %2128 = vmatpush1.xpose.msra.mxu0 0.0
    %2129 = vmatprep.subr.mxu0 0.0
    %2130 = vmatpush1.xpose.msra.mxu0 0.0
    %2131 = vmatprep.subr.mxu0 0.0
    %2132 = vmatpush1.xpose.msra.mxu0 0.0
    %2133 = vmatprep.subr.mxu0 0.0
    %2134 = vmatpush1.xpose.msra.mxu0 0.0
    %2135 = vmatprep.subr.mxu0 0.0
    %2136 = vmatpush1.xpose.msra.mxu0 0.0
    %2137 = vmatprep.subr.mxu0 0.0
    %2138 = vmatpush1.xpose.msra.mxu0 0.0
    %2139 = vmatprep.subr.mxu0 0.0
    %2140 = vmatpush1.xpose.msra.mxu0 0.0
    %2141 = vmatprep.subr.mxu0 0.0
    %2142 = vmatpush1.xpose.msra.mxu0 0.0
    %2143 = vmatprep.subr.mxu0 0.0
    %2144 = vmatpush1.xpose.msra.mxu0 0.0
    %2145 = vmatprep.subr.mxu0 0.0
    %2146 = vmatpush1.xpose.msra.mxu0 0.0
    %2147 = vmatprep.subr.mxu0 0.0
    %2148 = vmatpush1.xpose.msra.mxu0 0.0
    %2149 = vmatprep.subr.mxu0 0.0
    %2150 = vmatpush1.xpose.msra.mxu0 0.0
    %2151 = vmatprep.subr.mxu0 0.0
    %2152 = vmatpush1.xpose.msra.mxu0 0.0
    %2153 = vmatprep.subr.mxu0 0.0
    %2154 = vmatpush1.xpose.msra.mxu0 0.0
    %2155 = vmatprep.subr.mxu0 0.0
    %2156 = vmatpush1.xpose.msra.mxu0 0.0
    %2157 = vmatprep.subr.mxu0 0.0
    %2158 = vmatpush1.xpose.msra.mxu0 0.0
    %2159 = vmatprep.subr.mxu0 0.0
    %2160 = vmatpush1.xpose.msra.mxu0 0.0
    %2161 = vmatprep.subr.mxu0 0.0
    %2162 = vmatpush1.xpose.msra.mxu0 0.0
    %2163 = vmatprep.subr.mxu0 0.0
    %2164 = vmatpush1.xpose.msra.mxu0 0.0
    %2165 = vmatprep.mubr.f32.mxu0 0.0
    %2166 = vmatmul.mubr.f32.gmra.mrb[0].mxu0 %v2095
    %v2167 = vpop.f32.mrb[0].mxu0
    %v2168 = vadd.f32 0.0, %v2167
    %v2169 = vpop.f32.mrb[0].mxu0
    %2170 = vdwg.mxu0
    %v2171 = vsel %vm359, %v2050, 0
    %v2173 = vsel %vm359, %v2039, 0
    %v2175 = vsel %vm359, %v2044, 0
    %2177 = vmatprep.subr.mxu0 0.0
    %2178 = vmatpush1.xpose.msra.mxu0 %v2173
    %2179 = vmatprep.subr.mxu0 0.0
    %2180 = vmatpush1.xpose.msra.mxu0 %v2175
    %2181 = vmatprep.subr.mxu0 0.0
    %2182 = vmatpush1.xpose.msra.mxu0 0.0
    %2183 = vmatprep.subr.mxu0 0.0
    %2184 = vmatpush1.xpose.msra.mxu0 0.0
    %2185 = vmatprep.subr.mxu0 0.0
    %2186 = vmatpush1.xpose.msra.mxu0 0.0
    %2187 = vmatprep.subr.mxu0 0.0
    %2188 = vmatpush1.xpose.msra.mxu0 0.0
    %2189 = vmatprep.subr.mxu0 0.0
    %2190 = vmatpush1.xpose.msra.mxu0 0.0
    %2191 = vmatprep.subr.mxu0 0.0
    %2192 = vmatpush1.xpose.msra.mxu0 0.0
    %2193 = vmatprep.subr.mxu0 0.0
    %2194 = vmatpush1.xpose.msra.mxu0 0.0
    %2195 = vmatprep.subr.mxu0 0.0
    %2196 = vmatpush1.xpose.msra.mxu0 0.0
    %2197 = vmatprep.subr.mxu0 0.0
    %2198 = vmatpush1.xpose.msra.mxu0 0.0
    %2199 = vmatprep.subr.mxu0 0.0
    %2200 = vmatpush1.xpose.msra.mxu0 0.0
    %2201 = vmatprep.subr.mxu0 0.0
    %2202 = vmatpush1.xpose.msra.mxu0 0.0
    %2203 = vmatprep.subr.mxu0 0.0
    %2204 = vmatpush1.xpose.msra.mxu0 0.0
    %2205 = vmatprep.subr.mxu0 0.0
    %2206 = vmatpush1.xpose.msra.mxu0 0.0
    %2207 = vmatprep.subr.mxu0 0.0
    %2208 = vmatpush1.xpose.msra.mxu0 0.0
    %2209 = vmatprep.subr.mxu0 0.0
    %2210 = vmatpush1.xpose.msra.mxu0 0.0
    %2211 = vmatprep.subr.mxu0 0.0
    %2212 = vmatpush1.xpose.msra.mxu0 0.0
    %2213 = vmatprep.subr.mxu0 0.0
    %2214 = vmatpush1.xpose.msra.mxu0 0.0
    %2215 = vmatprep.subr.mxu0 0.0
    %2216 = vmatpush1.xpose.msra.mxu0 0.0
    %2217 = vmatprep.subr.mxu0 0.0
    %2218 = vmatpush1.xpose.msra.mxu0 0.0
    %2219 = vmatprep.subr.mxu0 0.0
    %2220 = vmatpush1.xpose.msra.mxu0 0.0
    %2221 = vmatprep.subr.mxu0 0.0
    %2222 = vmatpush1.xpose.msra.mxu0 0.0
    %2223 = vmatprep.subr.mxu0 0.0
    %2224 = vmatpush1.xpose.msra.mxu0 0.0
    %2225 = vmatprep.subr.mxu0 0.0
    %2226 = vmatpush1.xpose.msra.mxu0 0.0
    %2227 = vmatprep.subr.mxu0 0.0
    %2228 = vmatpush1.xpose.msra.mxu0 0.0
    %2229 = vmatprep.subr.mxu0 0.0
    %2230 = vmatpush1.xpose.msra.mxu0 0.0
    %2231 = vmatprep.subr.mxu0 0.0
    %2232 = vmatpush1.xpose.msra.mxu0 0.0
    %2233 = vmatprep.subr.mxu0 0.0
    %2234 = vmatpush1.xpose.msra.mxu0 0.0
    %2235 = vmatprep.subr.mxu0 0.0
    %2236 = vmatpush1.xpose.msra.mxu0 0.0
    %2237 = vmatprep.subr.mxu0 0.0
    %2238 = vmatpush1.xpose.msra.mxu0 0.0
    %2239 = vmatprep.subr.mxu0 0.0
    %2240 = vmatpush1.xpose.msra.mxu0 0.0
    %2241 = vmatprep.mubr.f32.mxu0 0.0
    %2242 = vmatmul.mubr.f32.gmra.mrb[0].mxu0 %v2171
    %v2243 = vpop.f32.mrb[0].mxu0
    %v2244 = vadd.f32 0.0, %v2243
    %v2245 = vpop.f32.mrb[0].mxu0
    %2246 = vdwg.mxu0
    %v2247 = vsel %vm359, %v2054, 0
    %v2249 = vsel %vm359, %v2070, 0
    %v2251 = vsel %vm359, %v2072, 0
    %2253 = vmatprep.subr.mxu0 0.0
    %2254 = vmatpush1.xpose.msra.mxu0 %v2249
    %2255 = vmatprep.subr.mxu0 0.0
    %2256 = vmatpush1.xpose.msra.mxu0 %v2251
    %2257 = vmatprep.subr.mxu0 0.0
    %2258 = vmatpush1.xpose.msra.mxu0 0.0
    %2259 = vmatprep.subr.mxu0 0.0
    %2260 = vmatpush1.xpose.msra.mxu0 0.0
    %2261 = vmatprep.subr.mxu0 0.0
    %2262 = vmatpush1.xpose.msra.mxu0 0.0
    %2263 = vmatprep.subr.mxu0 0.0
    %2264 = vmatpush1.xpose.msra.mxu0 0.0
    %2265 = vmatprep.subr.mxu0 0.0
    %2266 = vmatpush1.xpose.msra.mxu0 0.0
    %2267 = vmatprep.subr.mxu0 0.0
    %2268 = vmatpush1.xpose.msra.mxu0 0.0
    %2269 = vmatprep.subr.mxu0 0.0
    %2270 = vmatpush1.xpose.msra.mxu0 0.0
    %2271 = vmatprep.subr.mxu0 0.0
    %2272 = vmatpush1.xpose.msra.mxu0 0.0
    %2273 = vmatprep.subr.mxu0 0.0
    %2274 = vmatpush1.xpose.msra.mxu0 0.0
    %2275 = vmatprep.subr.mxu0 0.0
    %2276 = vmatpush1.xpose.msra.mxu0 0.0
    %2277 = vmatprep.subr.mxu0 0.0
    %2278 = vmatpush1.xpose.msra.mxu0 0.0
    %2279 = vmatprep.subr.mxu0 0.0
    %2280 = vmatpush1.xpose.msra.mxu0 0.0
    %2281 = vmatprep.subr.mxu0 0.0
    %2282 = vmatpush1.xpose.msra.mxu0 0.0
    %2283 = vmatprep.subr.mxu0 0.0
    %2284 = vmatpush1.xpose.msra.mxu0 0.0
    %2285 = vmatprep.subr.mxu0 0.0
    %2286 = vmatpush1.xpose.msra.mxu0 0.0
    %2287 = vmatprep.subr.mxu0 0.0
    %2288 = vmatpush1.xpose.msra.mxu0 0.0
    %2289 = vmatprep.subr.mxu0 0.0
    %2290 = vmatpush1.xpose.msra.mxu0 0.0
    %2291 = vmatprep.subr.mxu0 0.0
    %2292 = vmatpush1.xpose.msra.mxu0 0.0
    %2293 = vmatprep.subr.mxu0 0.0
    %2294 = vmatpush1.xpose.msra.mxu0 0.0
    %2295 = vmatprep.subr.mxu0 0.0
    %2296 = vmatpush1.xpose.msra.mxu0 0.0
    %2297 = vmatprep.subr.mxu0 0.0
    %2298 = vmatpush1.xpose.msra.mxu0 0.0
    %2299 = vmatprep.subr.mxu0 0.0
    %2300 = vmatpush1.xpose.msra.mxu0 0.0
    %2301 = vmatprep.subr.mxu0 0.0
    %2302 = vmatpush1.xpose.msra.mxu0 0.0
    %2303 = vmatprep.subr.mxu0 0.0
    %2304 = vmatpush1.xpose.msra.mxu0 0.0
    %2305 = vmatprep.subr.mxu0 0.0
    %2306 = vmatpush1.xpose.msra.mxu0 0.0
    %2307 = vmatprep.subr.mxu0 0.0
    %2308 = vmatpush1.xpose.msra.mxu0 0.0
    %2309 = vmatprep.subr.mxu0 0.0
    %2310 = vmatpush1.xpose.msra.mxu0 0.0
    %2311 = vmatprep.subr.mxu0 0.0
    %2312 = vmatpush1.xpose.msra.mxu0 0.0
    %2313 = vmatprep.subr.mxu0 0.0
    %2314 = vmatpush1.xpose.msra.mxu0 0.0
    %2315 = vmatprep.subr.mxu0 0.0
    %2316 = vmatpush1.xpose.msra.mxu0 0.0
    %2317 = vmatprep.mubr.f32.mxu0 0.0
    %2318 = vmatmul.mubr.f32.gmra.mrb[0].mxu0 %v2247
    %v2319 = vpop.f32.mrb[0].mxu0
    %v2320 = vadd.f32 0.0, %v2319
    %v2321 = vpop.f32.mrb[0].mxu0
    %2322 = vdwg.mxu0
    %v2323 = vsel %vm359, %v2056, 0
    %v2325 = vsel %vm359, %v2074, 0
    %v2327 = vsel %vm359, %v2076, 0
    %2329 = vmatprep.subr.mxu0 0.0
    %2330 = vmatpush1.xpose.msra.mxu0 %v2325
    %2331 = vmatprep.subr.mxu0 0.0
    %2332 = vmatpush1.xpose.msra.mxu0 %v2327
    %2333 = vmatprep.subr.mxu0 0.0
    %2334 = vmatpush1.xpose.msra.mxu0 0.0
    %2335 = vmatprep.subr.mxu0 0.0
    %2336 = vmatpush1.xpose.msra.mxu0 0.0
    %2337 = vmatprep.subr.mxu0 0.0
    %2338 = vmatpush1.xpose.msra.mxu0 0.0
    %2339 = vmatprep.subr.mxu0 0.0
    %2340 = vmatpush1.xpose.msra.mxu0 0.0
    %2341 = vmatprep.subr.mxu0 0.0
    %2342 = vmatpush1.xpose.msra.mxu0 0.0
    %2343 = vmatprep.subr.mxu0 0.0
    %2344 = vmatpush1.xpose.msra.mxu0 0.0
    %2345 = vmatprep.subr.mxu0 0.0
    %2346 = vmatpush1.xpose.msra.mxu0 0.0
    %2347 = vmatprep.subr.mxu0 0.0
    %2348 = vmatpush1.xpose.msra.mxu0 0.0
    %2349 = vmatprep.subr.mxu0 0.0
    %2350 = vmatpush1.xpose.msra.mxu0 0.0
    %2351 = vmatprep.subr.mxu0 0.0
    %2352 = vmatpush1.xpose.msra.mxu0 0.0
    %2353 = vmatprep.subr.mxu0 0.0
    %2354 = vmatpush1.xpose.msra.mxu0 0.0
    %2355 = vmatprep.subr.mxu0 0.0
    %2356 = vmatpush1.xpose.msra.mxu0 0.0
    %2357 = vmatprep.subr.mxu0 0.0
    %2358 = vmatpush1.xpose.msra.mxu0 0.0
    %2359 = vmatprep.subr.mxu0 0.0
    %2360 = vmatpush1.xpose.msra.mxu0 0.0
    %2361 = vmatprep.subr.mxu0 0.0
    %2362 = vmatpush1.xpose.msra.mxu0 0.0
    %2363 = vmatprep.subr.mxu0 0.0
    %2364 = vmatpush1.xpose.msra.mxu0 0.0
    %2365 = vmatprep.subr.mxu0 0.0
    %2366 = vmatpush1.xpose.msra.mxu0 0.0
    %2367 = vmatprep.subr.mxu0 0.0
    %2368 = vmatpush1.xpose.msra.mxu0 0.0
    %2369 = vmatprep.subr.mxu0 0.0
    %2370 = vmatpush1.xpose.msra.mxu0 0.0
    %2371 = vmatprep.subr.mxu0 0.0
    %2372 = vmatpush1.xpose.msra.mxu0 0.0
    %2373 = vmatprep.subr.mxu0 0.0
    %2374 = vmatpush1.xpose.msra.mxu0 0.0
    %2375 = vmatprep.subr.mxu0 0.0
    %2376 = vmatpush1.xpose.msra.mxu0 0.0
    %2377 = vmatprep.subr.mxu0 0.0
    %2378 = vmatpush1.xpose.msra.mxu0 0.0
    %2379 = vmatprep.subr.mxu0 0.0
    %2380 = vmatpush1.xpose.msra.mxu0 0.0
    %2381 = vmatprep.subr.mxu0 0.0
    %2382 = vmatpush1.xpose.msra.mxu0 0.0
    %2383 = vmatprep.subr.mxu0 0.0
    %2384 = vmatpush1.xpose.msra.mxu0 0.0
    %2385 = vmatprep.subr.mxu0 0.0
    %2386 = vmatpush1.xpose.msra.mxu0 0.0
    %2387 = vmatprep.subr.mxu0 0.0
    %2388 = vmatpush1.xpose.msra.mxu0 0.0
    %2389 = vmatprep.subr.mxu0 0.0
    %2390 = vmatpush1.xpose.msra.mxu0 0.0
    %2391 = vmatprep.subr.mxu0 0.0
    %2392 = vmatpush1.xpose.msra.mxu0 0.0
    %2393 = vmatprep.mubr.f32.mxu0 0.0
    %2394 = vmatmul.mubr.f32.gmra.mrb[0].mxu0 %v2323
    %v2395 = vpop.f32.mrb[0].mxu0
    %v2396 = vadd.f32 0.0, %v2395
    %v2397 = vpop.f32.mrb[0].mxu0
    %2398 = vdwg.mxu0
    %v2399 = vsel %vm359, %v2058, 0
    %v2401 = vsel %vm359, %v2078, 0
    %v2403 = vsel %vm359, %v2080, 0
    %2405 = vmatprep.subr.mxu0 0.0
    %2406 = vmatpush1.xpose.msra.mxu0 %v2401
    %2407 = vmatprep.subr.mxu0 0.0
    %2408 = vmatpush1.xpose.msra.mxu0 %v2403
    %2409 = vmatprep.subr.mxu0 0.0
    %2410 = vmatpush1.xpose.msra.mxu0 0.0
    %2411 = vmatprep.subr.mxu0 0.0
    %2412 = vmatpush1.xpose.msra.mxu0 0.0
    %2413 = vmatprep.subr.mxu0 0.0
    %2414 = vmatpush1.xpose.msra.mxu0 0.0
    %2415 = vmatprep.subr.mxu0 0.0
    %2416 = vmatpush1.xpose.msra.mxu0 0.0
    %2417 = vmatprep.subr.mxu0 0.0
    %2418 = vmatpush1.xpose.msra.mxu0 0.0
    %2419 = vmatprep.subr.mxu0 0.0
    %2420 = vmatpush1.xpose.msra.mxu0 0.0
    %2421 = vmatprep.subr.mxu0 0.0
    %2422 = vmatpush1.xpose.msra.mxu0 0.0
    %2423 = vmatprep.subr.mxu0 0.0
    %2424 = vmatpush1.xpose.msra.mxu0 0.0
    %2425 = vmatprep.subr.mxu0 0.0
    %2426 = vmatpush1.xpose.msra.mxu0 0.0
    %2427 = vmatprep.subr.mxu0 0.0
    %2428 = vmatpush1.xpose.msra.mxu0 0.0
    %2429 = vmatprep.subr.mxu0 0.0
    %2430 = vmatpush1.xpose.msra.mxu0 0.0
    %2431 = vmatprep.subr.mxu0 0.0
    %2432 = vmatpush1.xpose.msra.mxu0 0.0
    %2433 = vmatprep.subr.mxu0 0.0
    %2434 = vmatpush1.xpose.msra.mxu0 0.0
    %2435 = vmatprep.subr.mxu0 0.0
    %2436 = vmatpush1.xpose.msra.mxu0 0.0
    %2437 = vmatprep.subr.mxu0 0.0
    %2438 = vmatpush1.xpose.msra.mxu0 0.0
    %2439 = vmatprep.subr.mxu0 0.0
    %2440 = vmatpush1.xpose.msra.mxu0 0.0
    %2441 = vmatprep.subr.mxu0 0.0
    %2442 = vmatpush1.xpose.msra.mxu0 0.0
    %2443 = vmatprep.subr.mxu0 0.0
    %2444 = vmatpush1.xpose.msra.mxu0 0.0
    %2445 = vmatprep.subr.mxu0 0.0
    %2446 = vmatpush1.xpose.msra.mxu0 0.0
    %2447 = vmatprep.subr.mxu0 0.0
    %2448 = vmatpush1.xpose.msra.mxu0 0.0
    %2449 = vmatprep.subr.mxu0 0.0
    %2450 = vmatpush1.xpose.msra.mxu0 0.0
    %2451 = vmatprep.subr.mxu0 0.0
    %2452 = vmatpush1.xpose.msra.mxu0 0.0
    %2453 = vmatprep.subr.mxu0 0.0
    %2454 = vmatpush1.xpose.msra.mxu0 0.0
    %2455 = vmatprep.subr.mxu0 0.0
    %2456 = vmatpush1.xpose.msra.mxu0 0.0
    %2457 = vmatprep.subr.mxu0 0.0
    %2458 = vmatpush1.xpose.msra.mxu0 0.0
    %2459 = vmatprep.subr.mxu0 0.0
    %2460 = vmatpush1.xpose.msra.mxu0 0.0
    %2461 = vmatprep.subr.mxu0 0.0
    %2462 = vmatpush1.xpose.msra.mxu0 0.0
    %2463 = vmatprep.subr.mxu0 0.0
    %2464 = vmatpush1.xpose.msra.mxu0 0.0
    %2465 = vmatprep.subr.mxu0 0.0
    %2466 = vmatpush1.xpose.msra.mxu0 0.0
    %2467 = vmatprep.subr.mxu0 0.0
    %2468 = vmatpush1.xpose.msra.mxu0 0.0
    %2469 = vmatprep.mubr.f32.mxu0 0.0
    %2470 = vmatmul.mubr.f32.gmra.mrb[0].mxu0 %v2399
    %v2471 = vpop.f32.mrb[0].mxu0
    %v2472 = vadd.f32 0.0, %v2471
    %v2473 = vpop.f32.mrb[0].mxu0
    %2474 = vdwg.mxu0
    %v2475 = vsel %vm359, %v2060, 0
    %v2477 = vsel %vm359, %v2082, 0
    %v2479 = vsel %vm359, %v2084, 0
    %2481 = vmatprep.subr.mxu0 0.0
    %2482 = vmatpush1.xpose.msra.mxu0 %v2477
    %2483 = vmatprep.subr.mxu0 0.0
    %2484 = vmatpush1.xpose.msra.mxu0 %v2479
    %2485 = vmatprep.subr.mxu0 0.0
    %2486 = vmatpush1.xpose.msra.mxu0 0.0
    %2487 = vmatprep.subr.mxu0 0.0
    %2488 = vmatpush1.xpose.msra.mxu0 0.0
    %2489 = vmatprep.subr.mxu0 0.0
    %2490 = vmatpush1.xpose.msra.mxu0 0.0
    %2491 = vmatprep.subr.mxu0 0.0
    %2492 = vmatpush1.xpose.msra.mxu0 0.0
    %2493 = vmatprep.subr.mxu0 0.0
    %2494 = vmatpush1.xpose.msra.mxu0 0.0
    %2495 = vmatprep.subr.mxu0 0.0
    %2496 = vmatpush1.xpose.msra.mxu0 0.0
    %2497 = vmatprep.subr.mxu0 0.0
    %2498 = vmatpush1.xpose.msra.mxu0 0.0
    %2499 = vmatprep.subr.mxu0 0.0
    %2500 = vmatpush1.xpose.msra.mxu0 0.0
    %2501 = vmatprep.subr.mxu0 0.0
    %2502 = vmatpush1.xpose.msra.mxu0 0.0
    %2503 = vmatprep.subr.mxu0 0.0
    %2504 = vmatpush1.xpose.msra.mxu0 0.0
    %2505 = vmatprep.subr.mxu0 0.0
    %2506 = vmatpush1.xpose.msra.mxu0 0.0
    %2507 = vmatprep.subr.mxu0 0.0
    %2508 = vmatpush1.xpose.msra.mxu0 0.0
    %2509 = vmatprep.subr.mxu0 0.0
    %2510 = vmatpush1.xpose.msra.mxu0 0.0
    %2511 = vmatprep.subr.mxu0 0.0
    %2512 = vmatpush1.xpose.msra.mxu0 0.0
    %2513 = vmatprep.subr.mxu0 0.0
    %2514 = vmatpush1.xpose.msra.mxu0 0.0
    %2515 = vmatprep.subr.mxu0 0.0
    %2516 = vmatpush1.xpose.msra.mxu0 0.0
    %2517 = vmatprep.subr.mxu0 0.0
    %2518 = vmatpush1.xpose.msra.mxu0 0.0
    %2519 = vmatprep.subr.mxu0 0.0
    %2520 = vmatpush1.xpose.msra.mxu0 0.0
    %2521 = vmatprep.subr.mxu0 0.0
    %2522 = vmatpush1.xpose.msra.mxu0 0.0
    %2523 = vmatprep.subr.mxu0 0.0
    %2524 = vmatpush1.xpose.msra.mxu0 0.0
    %2525 = vmatprep.subr.mxu0 0.0
    %2526 = vmatpush1.xpose.msra.mxu0 0.0
    %2527 = vmatprep.subr.mxu0 0.0
    %2528 = vmatpush1.xpose.msra.mxu0 0.0
    %2529 = vmatprep.subr.mxu0 0.0
    %2530 = vmatpush1.xpose.msra.mxu0 0.0
    %2531 = vmatprep.subr.mxu0 0.0
    %2532 = vmatpush1.xpose.msra.mxu0 0.0
    %2533 = vmatprep.subr.mxu0 0.0
    %2534 = vmatpush1.xpose.msra.mxu0 0.0
    %2535 = vmatprep.subr.mxu0 0.0
    %2536 = vmatpush1.xpose.msra.mxu0 0.0
    %2537 = vmatprep.subr.mxu0 0.0
    %2538 = vmatpush1.xpose.msra.mxu0 0.0
    %2539 = vmatprep.subr.mxu0 0.0
    %2540 = vmatpush1.xpose.msra.mxu0 0.0
    %2541 = vmatprep.subr.mxu0 0.0
    %2542 = vmatpush1.xpose.msra.mxu0 0.0
    %2543 = vmatprep.subr.mxu0 0.0
    %2544 = vmatpush1.xpose.msra.mxu0 0.0
    %2545 = vmatprep.mubr.f32.mxu0 0.0
    %2546 = vmatmul.mubr.f32.gmra.mrb[0].mxu0 %v2475
    %v2547 = vpop.f32.mrb[0].mxu0
    %v2548 = vadd.f32 0.0, %v2547
    %v2549 = vpop.f32.mrb[0].mxu0
    %2550 = vdwg.mxu0
    %v2551 = vsel %vm359, %v2062, 0
    %v2553 = vsel %vm359, %v2086, 0
    %v2555 = vsel %vm359, %v2088, 0
    %2557 = vmatprep.subr.mxu0 0.0
    %2558 = vmatpush1.xpose.msra.mxu0 %v2553
    %2559 = vmatprep.subr.mxu0 0.0
    %2560 = vmatpush1.xpose.msra.mxu0 %v2555
    %2561 = vmatprep.subr.mxu0 0.0
    %2562 = vmatpush1.xpose.msra.mxu0 0.0
    %2563 = vmatprep.subr.mxu0 0.0
    %2564 = vmatpush1.xpose.msra.mxu0 0.0
    %2565 = vmatprep.subr.mxu0 0.0
    %2566 = vmatpush1.xpose.msra.mxu0 0.0
    %2567 = vmatprep.subr.mxu0 0.0
    %2568 = vmatpush1.xpose.msra.mxu0 0.0
    %2569 = vmatprep.subr.mxu0 0.0
    %2570 = vmatpush1.xpose.msra.mxu0 0.0
    %2571 = vmatprep.subr.mxu0 0.0
    %2572 = vmatpush1.xpose.msra.mxu0 0.0
    %2573 = vmatprep.subr.mxu0 0.0
    %2574 = vmatpush1.xpose.msra.mxu0 0.0
    %2575 = vmatprep.subr.mxu0 0.0
    %2576 = vmatpush1.xpose.msra.mxu0 0.0
    %2577 = vmatprep.subr.mxu0 0.0
    %2578 = vmatpush1.xpose.msra.mxu0 0.0
    %2579 = vmatprep.subr.mxu0 0.0
    %2580 = vmatpush1.xpose.msra.mxu0 0.0
    %2581 = vmatprep.subr.mxu0 0.0
    %2582 = vmatpush1.xpose.msra.mxu0 0.0
    %2583 = vmatprep.subr.mxu0 0.0
    %2584 = vmatpush1.xpose.msra.mxu0 0.0
    %2585 = vmatprep.subr.mxu0 0.0
    %2586 = vmatpush1.xpose.msra.mxu0 0.0
    %2587 = vmatprep.subr.mxu0 0.0
    %2588 = vmatpush1.xpose.msra.mxu0 0.0
    %2589 = vmatprep.subr.mxu0 0.0
    %2590 = vmatpush1.xpose.msra.mxu0 0.0
    %2591 = vmatprep.subr.mxu0 0.0
    %2592 = vmatpush1.xpose.msra.mxu0 0.0
    %2593 = vmatprep.subr.mxu0 0.0
    %2594 = vmatpush1.xpose.msra.mxu0 0.0
    %2595 = vmatprep.subr.mxu0 0.0
    %2596 = vmatpush1.xpose.msra.mxu0 0.0
    %2597 = vmatprep.subr.mxu0 0.0
    %2598 = vmatpush1.xpose.msra.mxu0 0.0
    %2599 = vmatprep.subr.mxu0 0.0
    %2600 = vmatpush1.xpose.msra.mxu0 0.0
    %2601 = vmatprep.subr.mxu0 0.0
    %2602 = vmatpush1.xpose.msra.mxu0 0.0
    %2603 = vmatprep.subr.mxu0 0.0
    %2604 = vmatpush1.xpose.msra.mxu0 0.0
    %2605 = vmatprep.subr.mxu0 0.0
    %2606 = vmatpush1.xpose.msra.mxu0 0.0
    %2607 = vmatprep.subr.mxu0 0.0
    %2608 = vmatpush1.xpose.msra.mxu0 0.0
    %2609 = vmatprep.subr.mxu0 0.0
    %2610 = vmatpush1.xpose.msra.mxu0 0.0
    %2611 = vmatprep.subr.mxu0 0.0
    %2612 = vmatpush1.xpose.msra.mxu0 0.0
    %2613 = vmatprep.subr.mxu0 0.0
    %2614 = vmatpush1.xpose.msra.mxu0 0.0
    %2615 = vmatprep.subr.mxu0 0.0
    %2616 = vmatpush1.xpose.msra.mxu0 0.0
    %2617 = vmatprep.subr.mxu0 0.0
    %2618 = vmatpush1.xpose.msra.mxu0 0.0
    %2619 = vmatprep.subr.mxu0 0.0
    %2620 = vmatpush1.xpose.msra.mxu0 0.0
    %2621 = vmatprep.mubr.f32.mxu0 0.0
    %2622 = vmatmul.mubr.f32.gmra.mrb[0].mxu0 %v2551
    %v2623 = vpop.f32.mrb[0].mxu0
    %v2624 = vadd.f32 0.0, %v2623
    %v2625 = vpop.f32.mrb[0].mxu0
    %2626 = vdwg.mxu0
    %v2627 = vsel %vm359, %v2064, 0
    %v2629 = vsel %vm359, %v2090, 0
    %v2631 = vsel %vm359, %v2092, 0
    %2633 = vmatprep.subr.mxu0 0.0
    %2634 = vmatpush1.xpose.msra.mxu0 %v2629
    %2635 = vmatprep.subr.mxu0 0.0
    %2636 = vmatpush1.xpose.msra.mxu0 %v2631
    %2637 = vmatprep.subr.mxu0 0.0
    %2638 = vmatpush1.xpose.msra.mxu0 0.0
    %2639 = vmatprep.subr.mxu0 0.0
    %2640 = vmatpush1.xpose.msra.mxu0 0.0
    %2641 = vmatprep.subr.mxu0 0.0
    %2642 = vmatpush1.xpose.msra.mxu0 0.0
    %2643 = vmatprep.subr.mxu0 0.0
    %2644 = vmatpush1.xpose.msra.mxu0 0.0
    %2645 = vmatprep.subr.mxu0 0.0
    %2646 = vmatpush1.xpose.msra.mxu0 0.0
    %2647 = vmatprep.subr.mxu0 0.0
    %2648 = vmatpush1.xpose.msra.mxu0 0.0
    %2649 = vmatprep.subr.mxu0 0.0
    %2650 = vmatpush1.xpose.msra.mxu0 0.0
    %2651 = vmatprep.subr.mxu0 0.0
    %2652 = vmatpush1.xpose.msra.mxu0 0.0
    %2653 = vmatprep.subr.mxu0 0.0
    %2654 = vmatpush1.xpose.msra.mxu0 0.0
    %2655 = vmatprep.subr.mxu0 0.0
    %2656 = vmatpush1.xpose.msra.mxu0 0.0
    %2657 = vmatprep.subr.mxu0 0.0
    %2658 = vmatpush1.xpose.msra.mxu0 0.0
    %2659 = vmatprep.subr.mxu0 0.0
    %2660 = vmatpush1.xpose.msra.mxu0 0.0
    %2661 = vmatprep.subr.mxu0 0.0
    %2662 = vmatpush1.xpose.msra.mxu0 0.0
    %2663 = vmatprep.subr.mxu0 0.0
    %2664 = vmatpush1.xpose.msra.mxu0 0.0
    %2665 = vmatprep.subr.mxu0 0.0
    %2666 = vmatpush1.xpose.msra.mxu0 0.0
    %2667 = vmatprep.subr.mxu0 0.0
    %2668 = vmatpush1.xpose.msra.mxu0 0.0
    %2669 = vmatprep.subr.mxu0 0.0
    %2670 = vmatpush1.xpose.msra.mxu0 0.0
    %2671 = vmatprep.subr.mxu0 0.0
    %2672 = vmatpush1.xpose.msra.mxu0 0.0
    %2673 = vmatprep.subr.mxu0 0.0
    %2674 = vmatpush1.xpose.msra.mxu0 0.0
    %2675 = vmatprep.subr.mxu0 0.0
    %2676 = vmatpush1.xpose.msra.mxu0 0.0
    %2677 = vmatprep.subr.mxu0 0.0
    %2678 = vmatpush1.xpose.msra.mxu0 0.0
    %2679 = vmatprep.subr.mxu0 0.0
    %2680 = vmatpush1.xpose.msra.mxu0 0.0
    %2681 = vmatprep.subr.mxu0 0.0
    %2682 = vmatpush1.xpose.msra.mxu0 0.0
    %2683 = vmatprep.subr.mxu0 0.0
    %2684 = vmatpush1.xpose.msra.mxu0 0.0
    %2685 = vmatprep.subr.mxu0 0.0
    %2686 = vmatpush1.xpose.msra.mxu0 0.0
    %2687 = vmatprep.subr.mxu0 0.0
    %2688 = vmatpush1.xpose.msra.mxu0 0.0
    %2689 = vmatprep.subr.mxu0 0.0
    %2690 = vmatpush1.xpose.msra.mxu0 0.0
    %2691 = vmatprep.subr.mxu0 0.0
    %2692 = vmatpush1.xpose.msra.mxu0 0.0
    %2693 = vmatprep.subr.mxu0 0.0
    %2694 = vmatpush1.xpose.msra.mxu0 0.0
    %2695 = vmatprep.subr.mxu0 0.0
    %2696 = vmatpush1.xpose.msra.mxu0 0.0
    %2697 = vmatprep.mubr.f32.mxu0 0.0
    %2698 = vmatmul.mubr.f32.gmra.mrb[0].mxu0 %v2627
    %v2699 = vpop.f32.mrb[0].mxu0
    %v2700 = vadd.f32 0.0, %v2699
    %v2701 = vpop.f32.mrb[0].mxu0
    %2702 = vdwg.mxu0
    %v2703 = vsel %vm2093, 1, 0
    %v2704 = vsel %vm2094, 1, 0
    %v2705 = vlaneseq
    %v2706 = vshrl.u32 %v2705, 7
    %v2707 = vsub.s32 0, %v2706
    %v2708 = vrot.slane %v2703, %v2707
    %v2709 = vlaneseq
    %v2710 = vshrl.u32 %v2709, 7
    %v2711 = vsub.s32 0, %v2710
    %v2712 = vrot.slane %v2704, %v2711
    %vm2713 = vcmp.eq.s32.totalorder %v2708, 1
    %vm2714 = vcmp.eq.s32.totalorder %v2712, 1
    %v2715 = vsel %vm2713, %v2168, -1e+09
    %v2716 = vsel %vm2714, %v2244, -1e+09
    %v2717 = vsel %vm2713, %v2320, -1e+09
    %v2718 = vsel %vm2714, %v2396, -1e+09
    %v2719 = vsel %vm2713, %v2472, -1e+09
    %v2720 = vsel %vm2714, %v2548, -1e+09
    %v2721 = vsel %vm2713, %v2624, -1e+09
    %v2722 = vsel %vm2714, %v2700, -1e+09
    %v2723 = vsel %vm1696, %v2715, -inf
    %2724 = vmax.xlane.f32.xlu0 %v2723
    %v2725 = vpop.xlane.xlu0 %2724
    %v2726 = vsel %vm1696, %v2716, -inf
    %2727 = vmax.xlane.f32.xlu0 %v2726
    %v2728 = vpop.xlane.xlu0 %2727
    %v2729 = vsel %vm1696, %v2717, -inf
    %2730 = vmax.xlane.f32.xlu0 %v2729
    %v2731 = vpop.xlane.xlu0 %2730
    %v2732 = vsel %vm1696, %v2718, -inf
    %2733 = vmax.xlane.f32.xlu0 %v2732
    %v2734 = vpop.xlane.xlu0 %2733
    %v2735 = vsel %vm1696, %v2719, -inf
    %2736 = vmax.xlane.f32.xlu0 %v2735
    %v2737 = vpop.xlane.xlu0 %2736
    %v2738 = vsel %vm1696, %v2720, -inf
    %2739 = vmax.xlane.f32.xlu0 %v2738
    %v2740 = vpop.xlane.xlu0 %2739
    %v2741 = vsel %vm1696, %v2721, -inf
    %2742 = vmax.xlane.f32.xlu0 %v2741
    %v2743 = vpop.xlane.xlu0 %2742
    %v2744 = vsel %vm1696, %v2722, -inf
    %2745 = vmax.xlane.f32.xlu0 %v2744
    %v2746 = vpop.xlane.xlu0 %2745
    %v2747 = vsub.f32 %v2715, %v2725
    %v2748 = vsub.f32 %v2716, %v2728
    %v2749 = vsub.f32 %v2717, %v2731
    %v2750 = vsub.f32 %v2718, %v2734
    %v2751 = vsub.f32 %v2719, %v2737
    %v2752 = vsub.f32 %v2720, %v2740
    %v2753 = vsub.f32 %v2721, %v2743
    %v2754 = vsub.f32 %v2722, %v2746
    %v2755 = vmul.f32 %v2747, 1.442695
    %v2756 = vpow.pop %v2755
    %v2757 = vmul.f32 %v2748, 1.442695
    %v2758 = vpow.pop %v2757
    %v2759 = vmul.f32 %v2749, 1.442695
    %v2760 = vpow.pop %v2759
    %v2761 = vmul.f32 %v2750, 1.442695
    %v2762 = vpow.pop %v2761
    %v2763 = vmul.f32 %v2751, 1.442695
    %v2764 = vpow.pop %v2763
    %v2765 = vmul.f32 %v2752, 1.442695
    %v2766 = vpow.pop %v2765
    %v2767 = vmul.f32 %v2753, 1.442695
    %v2768 = vpow.pop %v2767
    %v2769 = vmul.f32 %v2754, 1.442695
    %v2770 = vpow.pop %v2769
    %v2771 = vsel %vm1696, %v2756, 0.0
    %2772 = vadd.xlane.f32.xlu0 %v2771
    %v2773 = vpop.xlane.xlu0 %2772
    %v2774 = vsel %vm1696, %v2758, 0.0
    %2775 = vadd.xlane.f32.xlu0 %v2774
    %v2776 = vpop.xlane.xlu0 %2775
    %v2777 = vsel %vm1696, %v2760, 0.0
    %2778 = vadd.xlane.f32.xlu0 %v2777
    %v2779 = vpop.xlane.xlu0 %2778
    %v2780 = vsel %vm1696, %v2762, 0.0
    %2781 = vadd.xlane.f32.xlu0 %v2780
    %v2782 = vpop.xlane.xlu0 %2781
    %v2783 = vsel %vm1696, %v2764, 0.0
    %2784 = vadd.xlane.f32.xlu0 %v2783
    %v2785 = vpop.xlane.xlu0 %2784
    %v2786 = vsel %vm1696, %v2766, 0.0
    %2787 = vadd.xlane.f32.xlu0 %v2786
    %v2788 = vpop.xlane.xlu0 %2787
    %v2789 = vsel %vm1696, %v2768, 0.0
    %2790 = vadd.xlane.f32.xlu0 %v2789
    %v2791 = vpop.xlane.xlu0 %2790
    %v2792 = vsel %vm1696, %v2770, 0.0
    %2793 = vadd.xlane.f32.xlu0 %v2792
    %v2794 = vpop.xlane.xlu0 %2793
    %v2795 = vrcp.pop %v2773
    %v2796 = vrcp.pop %v2776
    %v2797 = vrcp.pop %v2779
    %v2798 = vrcp.pop %v2782
    %v2799 = vrcp.pop %v2785
    %v2800 = vrcp.pop %v2788
    %v2801 = vrcp.pop %v2791
    %v2802 = vrcp.pop %v2794
    %v2803 = vmul.f32 %v2756, %v2795
    %v2804 = vmul.f32 %v2758, %v2796
    %v2805 = vmul.f32 %v2760, %v2797
    %v2806 = vmul.f32 %v2762, %v2798
    %v2807 = vmul.f32 %v2764, %v2799
    %v2808 = vmul.f32 %v2766, %v2800
    %v2809 = vmul.f32 %v2768, %v2801
    %v2810 = vmul.f32 %v2770, %v2802
    %2811 = vrot.lane.b32.xlu0 %v2029, 96
    %v2812 = vpop.permute.xlu0 %2811
    %2813 = vrot.lane.b32.xlu0 %v2034, 96
    %v2814 = vpop.permute.xlu0 %2813
    %v2818 = vsel %vm1696, %v2803, 0
    %2820 = vmatprep.subr.mxu0 0.0
    %2821 = vmatpush1.msra.mxu0 %v2812
    %2822 = vmatprep.subr.mxu0 0.0
    %2823 = vmatpush1.msra.mxu0 %v2814
    %2824 = vmatprep.subr.mxu0 0.0
    %2825 = vmatpush1.msra.mxu0 0.0
    %2826 = vmatprep.subr.mxu0 0.0
    %2827 = vmatpush1.msra.mxu0 0.0
    %2828 = vmatprep.subr.mxu0 0.0
    %2829 = vmatpush1.msra.mxu0 0.0
    %2830 = vmatprep.subr.mxu0 0.0
    %2831 = vmatpush1.msra.mxu0 0.0
    %2832 = vmatprep.subr.mxu0 0.0
    %2833 = vmatpush1.msra.mxu0 0.0
    %2834 = vmatprep.subr.mxu0 0.0
    %2835 = vmatpush1.msra.mxu0 0.0
    %2836 = vmatprep.subr.mxu0 0.0
    %2837 = vmatpush1.msra.mxu0 0.0
    %2838 = vmatprep.subr.mxu0 0.0
    %2839 = vmatpush1.msra.mxu0 0.0
    %2840 = vmatprep.subr.mxu0 0.0
    %2841 = vmatpush1.msra.mxu0 0.0
    %2842 = vmatprep.subr.mxu0 0.0
    %2843 = vmatpush1.msra.mxu0 0.0
    %2844 = vmatprep.subr.mxu0 0.0
    %2845 = vmatpush1.msra.mxu0 0.0
    %2846 = vmatprep.subr.mxu0 0.0
    %2847 = vmatpush1.msra.mxu0 0.0
    %2848 = vmatprep.subr.mxu0 0.0
    %2849 = vmatpush1.msra.mxu0 0.0
    %2850 = vmatprep.subr.mxu0 0.0
    %2851 = vmatpush1.msra.mxu0 0.0
    %2852 = vmatprep.subr.mxu0 0.0
    %2853 = vmatpush1.msra.mxu0 0.0
    %2854 = vmatprep.subr.mxu0 0.0
    %2855 = vmatpush1.msra.mxu0 0.0
    %2856 = vmatprep.subr.mxu0 0.0
    %2857 = vmatpush1.msra.mxu0 0.0
    %2858 = vmatprep.subr.mxu0 0.0
    %2859 = vmatpush1.msra.mxu0 0.0
    %2860 = vmatprep.subr.mxu0 0.0
    %2861 = vmatpush1.msra.mxu0 0.0
    %2862 = vmatprep.subr.mxu0 0.0
    %2863 = vmatpush1.msra.mxu0 0.0
    %2864 = vmatprep.subr.mxu0 0.0
    %2865 = vmatpush1.msra.mxu0 0.0
    %2866 = vmatprep.subr.mxu0 0.0
    %2867 = vmatpush1.msra.mxu0 0.0
    %2868 = vmatprep.subr.mxu0 0.0
    %2869 = vmatpush1.msra.mxu0 0.0
    %2870 = vmatprep.subr.mxu0 0.0
    %2871 = vmatpush1.msra.mxu0 0.0
    %2872 = vmatprep.subr.mxu0 0.0
    %2873 = vmatpush1.msra.mxu0 0.0
    %2874 = vmatprep.subr.mxu0 0.0
    %2875 = vmatpush1.msra.mxu0 0.0
    %2876 = vmatprep.subr.mxu0 0.0
    %2877 = vmatpush1.msra.mxu0 0.0
    %2878 = vmatprep.subr.mxu0 0.0
    %2879 = vmatpush1.msra.mxu0 0.0
    %2880 = vmatprep.subr.mxu0 0.0
    %2881 = vmatpush1.msra.mxu0 0.0
    %2882 = vmatprep.subr.mxu0 0.0
    %2883 = vmatpush1.msra.mxu0 0.0
    %2884 = vmatprep.mubr.f32.mxu0 0.0
    %2885 = vmatmul.mubr.f32.gmra.mrb[0].mxu0 %v2818
    %v2886 = vpop.f32.mrb[0].mxu0
    %v2887 = vadd.f32 0.0, %v2886
    %v2888 = vpop.f32.mrb[0].mxu0
    %2889 = vdwg.mxu0
    %2890 = vrot.lane.b32.xlu0 %v2039, 96
    %v2891 = vpop.permute.xlu0 %2890
    %2892 = vrot.lane.b32.xlu0 %v2044, 96
    %v2893 = vpop.permute.xlu0 %2892
    %v2897 = vsel %vm1696, %v2804, 0
    %2899 = vmatprep.subr.mxu0 0.0
    %2900 = vmatpush1.msra.mxu0 %v2891
    %2901 = vmatprep.subr.mxu0 0.0
    %2902 = vmatpush1.msra.mxu0 %v2893
    %2903 = vmatprep.subr.mxu0 0.0
    %2904 = vmatpush1.msra.mxu0 0.0
    %2905 = vmatprep.subr.mxu0 0.0
    %2906 = vmatpush1.msra.mxu0 0.0
    %2907 = vmatprep.subr.mxu0 0.0
    %2908 = vmatpush1.msra.mxu0 0.0
    %2909 = vmatprep.subr.mxu0 0.0
    %2910 = vmatpush1.msra.mxu0 0.0
    %2911 = vmatprep.subr.mxu0 0.0
    %2912 = vmatpush1.msra.mxu0 0.0
    %2913 = vmatprep.subr.mxu0 0.0
    %2914 = vmatpush1.msra.mxu0 0.0
    %2915 = vmatprep.subr.mxu0 0.0
    %2916 = vmatpush1.msra.mxu0 0.0
    %2917 = vmatprep.subr.mxu0 0.0
    %2918 = vmatpush1.msra.mxu0 0.0
    %2919 = vmatprep.subr.mxu0 0.0
    %2920 = vmatpush1.msra.mxu0 0.0
    %2921 = vmatprep.subr.mxu0 0.0
    %2922 = vmatpush1.msra.mxu0 0.0
    %2923 = vmatprep.subr.mxu0 0.0
    %2924 = vmatpush1.msra.mxu0 0.0
    %2925 = vmatprep.subr.mxu0 0.0
    %2926 = vmatpush1.msra.mxu0 0.0
    %2927 = vmatprep.subr.mxu0 0.0
    %2928 = vmatpush1.msra.mxu0 0.0
    %2929 = vmatprep.subr.mxu0 0.0
    %2930 = vmatpush1.msra.mxu0 0.0
    %2931 = vmatprep.subr.mxu0 0.0
    %2932 = vmatpush1.msra.mxu0 0.0
    %2933 = vmatprep.subr.mxu0 0.0
    %2934 = vmatpush1.msra.mxu0 0.0
    %2935 = vmatprep.subr.mxu0 0.0
    %2936 = vmatpush1.msra.mxu0 0.0
    %2937 = vmatprep.subr.mxu0 0.0
    %2938 = vmatpush1.msra.mxu0 0.0
    %2939 = vmatprep.subr.mxu0 0.0
    %2940 = vmatpush1.msra.mxu0 0.0
    %2941 = vmatprep.subr.mxu0 0.0
    %2942 = vmatpush1.msra.mxu0 0.0
    %2943 = vmatprep.subr.mxu0 0.0
    %2944 = vmatpush1.msra.mxu0 0.0
    %2945 = vmatprep.subr.mxu0 0.0
    %2946 = vmatpush1.msra.mxu0 0.0
    %2947 = vmatprep.subr.mxu0 0.0
    %2948 = vmatpush1.msra.mxu0 0.0
    %2949 = vmatprep.subr.mxu0 0.0
    %2950 = vmatpush1.msra.mxu0 0.0
    %2951 = vmatprep.subr.mxu0 0.0
    %2952 = vmatpush1.msra.mxu0 0.0
    %2953 = vmatprep.subr.mxu0 0.0
    %2954 = vmatpush1.msra.mxu0 0.0
    %2955 = vmatprep.subr.mxu0 0.0
    %2956 = vmatpush1.msra.mxu0 0.0
    %2957 = vmatprep.subr.mxu0 0.0
    %2958 = vmatpush1.msra.mxu0 0.0
    %2959 = vmatprep.subr.mxu0 0.0
    %2960 = vmatpush1.msra.mxu0 0.0
    %2961 = vmatprep.subr.mxu0 0.0
    %2962 = vmatpush1.msra.mxu0 0.0
    %2963 = vmatprep.mubr.f32.mxu0 0.0
    %2964 = vmatmul.mubr.f32.gmra.mrb[0].mxu0 %v2897
    %v2965 = vpop.f32.mrb[0].mxu0
    %v2966 = vadd.f32 0.0, %v2965
    %v2967 = vpop.f32.mrb[0].mxu0
    %2968 = vdwg.mxu0
    %2969 = vrot.lane.b32.xlu0 %v2070, 96
    %v2970 = vpop.permute.xlu0 %2969
    %2971 = vrot.lane.b32.xlu0 %v2072, 96
    %v2972 = vpop.permute.xlu0 %2971
    %v2976 = vsel %vm1696, %v2805, 0
    %2978 = vmatprep.subr.mxu0 0.0
    %2979 = vmatpush1.msra.mxu0 %v2970
    %2980 = vmatprep.subr.mxu0 0.0
    %2981 = vmatpush1.msra.mxu0 %v2972
    %2982 = vmatprep.subr.mxu0 0.0
    %2983 = vmatpush1.msra.mxu0 0.0
    %2984 = vmatprep.subr.mxu0 0.0
    %2985 = vmatpush1.msra.mxu0 0.0
    %2986 = vmatprep.subr.mxu0 0.0
    %2987 = vmatpush1.msra.mxu0 0.0
    %2988 = vmatprep.subr.mxu0 0.0
    %2989 = vmatpush1.msra.mxu0 0.0
    %2990 = vmatprep.subr.mxu0 0.0
    %2991 = vmatpush1.msra.mxu0 0.0
    %2992 = vmatprep.subr.mxu0 0.0
    %2993 = vmatpush1.msra.mxu0 0.0
    %2994 = vmatprep.subr.mxu0 0.0
    %2995 = vmatpush1.msra.mxu0 0.0
    %2996 = vmatprep.subr.mxu0 0.0
    %2997 = vmatpush1.msra.mxu0 0.0
    %2998 = vmatprep.subr.mxu0 0.0
    %2999 = vmatpush1.msra.mxu0 0.0
    %3000 = vmatprep.subr.mxu0 0.0
    %3001 = vmatpush1.msra.mxu0 0.0
    %3002 = vmatprep.subr.mxu0 0.0
    %3003 = vmatpush1.msra.mxu0 0.0
    %3004 = vmatprep.subr.mxu0 0.0
    %3005 = vmatpush1.msra.mxu0 0.0
    %3006 = vmatprep.subr.mxu0 0.0
    %3007 = vmatpush1.msra.mxu0 0.0
    %3008 = vmatprep.subr.mxu0 0.0
    %3009 = vmatpush1.msra.mxu0 0.0
    %3010 = vmatprep.subr.mxu0 0.0
    %3011 = vmatpush1.msra.mxu0 0.0
    %3012 = vmatprep.subr.mxu0 0.0
    %3013 = vmatpush1.msra.mxu0 0.0
    %3014 = vmatprep.subr.mxu0 0.0
    %3015 = vmatpush1.msra.mxu0 0.0
    %3016 = vmatprep.subr.mxu0 0.0
    %3017 = vmatpush1.msra.mxu0 0.0
    %3018 = vmatprep.subr.mxu0 0.0
    %3019 = vmatpush1.msra.mxu0 0.0
    %3020 = vmatprep.subr.mxu0 0.0
    %3021 = vmatpush1.msra.mxu0 0.0
    %3022 = vmatprep.subr.mxu0 0.0
    %3023 = vmatpush1.msra.mxu0 0.0
    %3024 = vmatprep.subr.mxu0 0.0
    %3025 = vmatpush1.msra.mxu0 0.0
    %3026 = vmatprep.subr.mxu0 0.0
    %3027 = vmatpush1.msra.mxu0 0.0
    %3028 = vmatprep.subr.mxu0 0.0
    %3029 = vmatpush1.msra.mxu0 0.0
    %3030 = vmatprep.subr.mxu0 0.0
    %3031 = vmatpush1.msra.mxu0 0.0
    %3032 = vmatprep.subr.mxu0 0.0
    %3033 = vmatpush1.msra.mxu0 0.0
    %3034 = vmatprep.subr.mxu0 0.0
    %3035 = vmatpush1.msra.mxu0 0.0
    %3036 = vmatprep.subr.mxu0 0.0
    %3037 = vmatpush1.msra.mxu0 0.0
    %3038 = vmatprep.subr.mxu0 0.0
    %3039 = vmatpush1.msra.mxu0 0.0
    %3040 = vmatprep.subr.mxu0 0.0
    %3041 = vmatpush1.msra.mxu0 0.0
    %3042 = vmatprep.mubr.f32.mxu0 0.0
    %3043 = vmatmul.mubr.f32.gmra.mrb[0].mxu0 %v2976
    %v3044 = vpop.f32.mrb[0].mxu0
    %v3045 = vadd.f32 0.0, %v3044
    %v3046 = vpop.f32.mrb[0].mxu0
    %3047 = vdwg.mxu0
    %3048 = vrot.lane.b32.xlu0 %v2074, 96
    %v3049 = vpop.permute.xlu0 %3048
    %3050 = vrot.lane.b32.xlu0 %v2076, 96
    %v3051 = vpop.permute.xlu0 %3050
    %v3055 = vsel %vm1696, %v2806, 0
    %3057 = vmatprep.subr.mxu0 0.0
    %3058 = vmatpush1.msra.mxu0 %v3049
    %3059 = vmatprep.subr.mxu0 0.0
    %3060 = vmatpush1.msra.mxu0 %v3051
    %3061 = vmatprep.subr.mxu0 0.0
    %3062 = vmatpush1.msra.mxu0 0.0
    %3063 = vmatprep.subr.mxu0 0.0
    %3064 = vmatpush1.msra.mxu0 0.0
    %3065 = vmatprep.subr.mxu0 0.0
    %3066 = vmatpush1.msra.mxu0 0.0
    %3067 = vmatprep.subr.mxu0 0.0
    %3068 = vmatpush1.msra.mxu0 0.0
    %3069 = vmatprep.subr.mxu0 0.0
    %3070 = vmatpush1.msra.mxu0 0.0
    %3071 = vmatprep.subr.mxu0 0.0
    %3072 = vmatpush1.msra.mxu0 0.0
    %3073 = vmatprep.subr.mxu0 0.0
    %3074 = vmatpush1.msra.mxu0 0.0
    %3075 = vmatprep.subr.mxu0 0.0
    %3076 = vmatpush1.msra.mxu0 0.0
    %3077 = vmatprep.subr.mxu0 0.0
    %3078 = vmatpush1.msra.mxu0 0.0
    %3079 = vmatprep.subr.mxu0 0.0
    %3080 = vmatpush1.msra.mxu0 0.0
    %3081 = vmatprep.subr.mxu0 0.0
    %3082 = vmatpush1.msra.mxu0 0.0
    %3083 = vmatprep.subr.mxu0 0.0
    %3084 = vmatpush1.msra.mxu0 0.0
    %3085 = vmatprep.subr.mxu0 0.0
    %3086 = vmatpush1.msra.mxu0 0.0
    %3087 = vmatprep.subr.mxu0 0.0
    %3088 = vmatpush1.msra.mxu0 0.0
    %3089 = vmatprep.subr.mxu0 0.0
    %3090 = vmatpush1.msra.mxu0 0.0
    %3091 = vmatprep.subr.mxu0 0.0
    %3092 = vmatpush1.msra.mxu0 0.0
    %3093 = vmatprep.subr.mxu0 0.0
    %3094 = vmatpush1.msra.mxu0 0.0
    %3095 = vmatprep.subr.mxu0 0.0
    %3096 = vmatpush1.msra.mxu0 0.0
    %3097 = vmatprep.subr.mxu0 0.0
    %3098 = vmatpush1.msra.mxu0 0.0
    %3099 = vmatprep.subr.mxu0 0.0
    %3100 = vmatpush1.msra.mxu0 0.0
    %3101 = vmatprep.subr.mxu0 0.0
    %3102 = vmatpush1.msra.mxu0 0.0
    %3103 = vmatprep.subr.mxu0 0.0
    %3104 = vmatpush1.msra.mxu0 0.0
    %3105 = vmatprep.subr.mxu0 0.0
    %3106 = vmatpush1.msra.mxu0 0.0
    %3107 = vmatprep.subr.mxu0 0.0
    %3108 = vmatpush1.msra.mxu0 0.0
    %3109 = vmatprep.subr.mxu0 0.0
    %3110 = vmatpush1.msra.mxu0 0.0
    %3111 = vmatprep.subr.mxu0 0.0
    %3112 = vmatpush1.msra.mxu0 0.0
    %3113 = vmatprep.subr.mxu0 0.0
    %3114 = vmatpush1.msra.mxu0 0.0
    %3115 = vmatprep.subr.mxu0 0.0
    %3116 = vmatpush1.msra.mxu0 0.0
    %3117 = vmatprep.subr.mxu0 0.0
    %3118 = vmatpush1.msra.mxu0 0.0
    %3119 = vmatprep.subr.mxu0 0.0
    %3120 = vmatpush1.msra.mxu0 0.0
    %3121 = vmatprep.mubr.f32.mxu0 0.0
    %3122 = vmatmul.mubr.f32.gmra.mrb[0].mxu0 %v3055
    %v3123 = vpop.f32.mrb[0].mxu0
    %v3124 = vadd.f32 0.0, %v3123
    %v3125 = vpop.f32.mrb[0].mxu0
    %3126 = vdwg.mxu0
    %3127 = vrot.lane.b32.xlu0 %v2078, 96
    %v3128 = vpop.permute.xlu0 %3127
    %3129 = vrot.lane.b32.xlu0 %v2080, 96
    %v3130 = vpop.permute.xlu0 %3129
    %v3134 = vsel %vm1696, %v2807, 0
    %3136 = vmatprep.subr.mxu0 0.0
    %3137 = vmatpush1.msra.mxu0 %v3128
    %3138 = vmatprep.subr.mxu0 0.0
    %3139 = vmatpush1.msra.mxu0 %v3130
    %3140 = vmatprep.subr.mxu0 0.0
    %3141 = vmatpush1.msra.mxu0 0.0
    %3142 = vmatprep.subr.mxu0 0.0
    %3143 = vmatpush1.msra.mxu0 0.0
    %3144 = vmatprep.subr.mxu0 0.0
    %3145 = vmatpush1.msra.mxu0 0.0
    %3146 = vmatprep.subr.mxu0 0.0
    %3147 = vmatpush1.msra.mxu0 0.0
    %3148 = vmatprep.subr.mxu0 0.0
    %3149 = vmatpush1.msra.mxu0 0.0
    %3150 = vmatprep.subr.mxu0 0.0
    %3151 = vmatpush1.msra.mxu0 0.0
    %3152 = vmatprep.subr.mxu0 0.0
    %3153 = vmatpush1.msra.mxu0 0.0
    %3154 = vmatprep.subr.mxu0 0.0
    %3155 = vmatpush1.msra.mxu0 0.0
    %3156 = vmatprep.subr.mxu0 0.0
    %3157 = vmatpush1.msra.mxu0 0.0
    %3158 = vmatprep.subr.mxu0 0.0
    %3159 = vmatpush1.msra.mxu0 0.0
    %3160 = vmatprep.subr.mxu0 0.0
    %3161 = vmatpush1.msra.mxu0 0.0
    %3162 = vmatprep.subr.mxu0 0.0
    %3163 = vmatpush1.msra.mxu0 0.0
    %3164 = vmatprep.subr.mxu0 0.0
    %3165 = vmatpush1.msra.mxu0 0.0
    %3166 = vmatprep.subr.mxu0 0.0
    %3167 = vmatpush1.msra.mxu0 0.0
    %3168 = vmatprep.subr.mxu0 0.0
    %3169 = vmatpush1.msra.mxu0 0.0
    %3170 = vmatprep.subr.mxu0 0.0
    %3171 = vmatpush1.msra.mxu0 0.0
    %3172 = vmatprep.subr.mxu0 0.0
    %3173 = vmatpush1.msra.mxu0 0.0
    %3174 = vmatprep.subr.mxu0 0.0
    %3175 = vmatpush1.msra.mxu0 0.0
    %3176 = vmatprep.subr.mxu0 0.0
    %3177 = vmatpush1.msra.mxu0 0.0
    %3178 = vmatprep.subr.mxu0 0.0
    %3179 = vmatpush1.msra.mxu0 0.0
    %3180 = vmatprep.subr.mxu0 0.0
    %3181 = vmatpush1.msra.mxu0 0.0
    %3182 = vmatprep.subr.mxu0 0.0
    %3183 = vmatpush1.msra.mxu0 0.0
    %3184 = vmatprep.subr.mxu0 0.0
    %3185 = vmatpush1.msra.mxu0 0.0
    %3186 = vmatprep.subr.mxu0 0.0
    %3187 = vmatpush1.msra.mxu0 0.0
    %3188 = vmatprep.subr.mxu0 0.0
    %3189 = vmatpush1.msra.mxu0 0.0
    %3190 = vmatprep.subr.mxu0 0.0
    %3191 = vmatpush1.msra.mxu0 0.0
    %3192 = vmatprep.subr.mxu0 0.0
    %3193 = vmatpush1.msra.mxu0 0.0
    %3194 = vmatprep.subr.mxu0 0.0
    %3195 = vmatpush1.msra.mxu0 0.0
    %3196 = vmatprep.subr.mxu0 0.0
    %3197 = vmatpush1.msra.mxu0 0.0
    %3198 = vmatprep.subr.mxu0 0.0
    %3199 = vmatpush1.msra.mxu0 0.0
    %3200 = vmatprep.mubr.f32.mxu0 0.0
    %3201 = vmatmul.mubr.f32.gmra.mrb[0].mxu0 %v3134
    %v3202 = vpop.f32.mrb[0].mxu0
    %v3203 = vadd.f32 0.0, %v3202
    %v3204 = vpop.f32.mrb[0].mxu0
    %3205 = vdwg.mxu0
    %3206 = vrot.lane.b32.xlu0 %v2082, 96
    %v3207 = vpop.permute.xlu0 %3206
    %3208 = vrot.lane.b32.xlu0 %v2084, 96
    %v3209 = vpop.permute.xlu0 %3208
    %v3213 = vsel %vm1696, %v2808, 0
    %3215 = vmatprep.subr.mxu0 0.0
    %3216 = vmatpush1.msra.mxu0 %v3207
    %3217 = vmatprep.subr.mxu0 0.0
    %3218 = vmatpush1.msra.mxu0 %v3209
    %3219 = vmatprep.subr.mxu0 0.0
    %3220 = vmatpush1.msra.mxu0 0.0
    %3221 = vmatprep.subr.mxu0 0.0
    %3222 = vmatpush1.msra.mxu0 0.0
    %3223 = vmatprep.subr.mxu0 0.0
    %3224 = vmatpush1.msra.mxu0 0.0
    %3225 = vmatprep.subr.mxu0 0.0
    %3226 = vmatpush1.msra.mxu0 0.0
    %3227 = vmatprep.subr.mxu0 0.0
    %3228 = vmatpush1.msra.mxu0 0.0
    %3229 = vmatprep.subr.mxu0 0.0
    %3230 = vmatpush1.msra.mxu0 0.0
    %3231 = vmatprep.subr.mxu0 0.0
    %3232 = vmatpush1.msra.mxu0 0.0
    %3233 = vmatprep.subr.mxu0 0.0
    %3234 = vmatpush1.msra.mxu0 0.0
    %3235 = vmatprep.subr.mxu0 0.0
    %3236 = vmatpush1.msra.mxu0 0.0
    %3237 = vmatprep.subr.mxu0 0.0
    %3238 = vmatpush1.msra.mxu0 0.0
    %3239 = vmatprep.subr.mxu0 0.0
    %3240 = vmatpush1.msra.mxu0 0.0
    %3241 = vmatprep.subr.mxu0 0.0
    %3242 = vmatpush1.msra.mxu0 0.0
    %3243 = vmatprep.subr.mxu0 0.0
    %3244 = vmatpush1.msra.mxu0 0.0
    %3245 = vmatprep.subr.mxu0 0.0
    %3246 = vmatpush1.msra.mxu0 0.0
    %3247 = vmatprep.subr.mxu0 0.0
    %3248 = vmatpush1.msra.mxu0 0.0
    %3249 = vmatprep.subr.mxu0 0.0
    %3250 = vmatpush1.msra.mxu0 0.0
    %3251 = vmatprep.subr.mxu0 0.0
    %3252 = vmatpush1.msra.mxu0 0.0
    %3253 = vmatprep.subr.mxu0 0.0
    %3254 = vmatpush1.msra.mxu0 0.0
    %3255 = vmatprep.subr.mxu0 0.0
    %3256 = vmatpush1.msra.mxu0 0.0
    %3257 = vmatprep.subr.mxu0 0.0
    %3258 = vmatpush1.msra.mxu0 0.0
    %3259 = vmatprep.subr.mxu0 0.0
    %3260 = vmatpush1.msra.mxu0 0.0
    %3261 = vmatprep.subr.mxu0 0.0
    %3262 = vmatpush1.msra.mxu0 0.0
    %3263 = vmatprep.subr.mxu0 0.0
    %3264 = vmatpush1.msra.mxu0 0.0
    %3265 = vmatprep.subr.mxu0 0.0
    %3266 = vmatpush1.msra.mxu0 0.0
    %3267 = vmatprep.subr.mxu0 0.0
    %3268 = vmatpush1.msra.mxu0 0.0
    %3269 = vmatprep.subr.mxu0 0.0
    %3270 = vmatpush1.msra.mxu0 0.0
    %3271 = vmatprep.subr.mxu0 0.0
    %3272 = vmatpush1.msra.mxu0 0.0
    %3273 = vmatprep.subr.mxu0 0.0
    %3274 = vmatpush1.msra.mxu0 0.0
    %3275 = vmatprep.subr.mxu0 0.0
    %3276 = vmatpush1.msra.mxu0 0.0
    %3277 = vmatprep.subr.mxu0 0.0
    %3278 = vmatpush1.msra.mxu0 0.0
    %3279 = vmatprep.mubr.f32.mxu0 0.0
    %3280 = vmatmul.mubr.f32.gmra.mrb[0].mxu0 %v3213
    %v3281 = vpop.f32.mrb[0].mxu0
    %v3282 = vadd.f32 0.0, %v3281
    %v3283 = vpop.f32.mrb[0].mxu0
    %3284 = vdwg.mxu0
    %3285 = vrot.lane.b32.xlu0 %v2086, 96
    %v3286 = vpop.permute.xlu0 %3285
    %3287 = vrot.lane.b32.xlu0 %v2088, 96
    %v3288 = vpop.permute.xlu0 %3287
    %v3292 = vsel %vm1696, %v2809, 0
    %3294 = vmatprep.subr.mxu0 0.0
    %3295 = vmatpush1.msra.mxu0 %v3286
    %3296 = vmatprep.subr.mxu0 0.0
    %3297 = vmatpush1.msra.mxu0 %v3288
    %3298 = vmatprep.subr.mxu0 0.0
    %3299 = vmatpush1.msra.mxu0 0.0
    %3300 = vmatprep.subr.mxu0 0.0
    %3301 = vmatpush1.msra.mxu0 0.0
    %3302 = vmatprep.subr.mxu0 0.0
    %3303 = vmatpush1.msra.mxu0 0.0
    %3304 = vmatprep.subr.mxu0 0.0
    %3305 = vmatpush1.msra.mxu0 0.0
    %3306 = vmatprep.subr.mxu0 0.0
    %3307 = vmatpush1.msra.mxu0 0.0
    %3308 = vmatprep.subr.mxu0 0.0
    %3309 = vmatpush1.msra.mxu0 0.0
    %3310 = vmatprep.subr.mxu0 0.0
    %3311 = vmatpush1.msra.mxu0 0.0
    %3312 = vmatprep.subr.mxu0 0.0
    %3313 = vmatpush1.msra.mxu0 0.0
    %3314 = vmatprep.subr.mxu0 0.0
    %3315 = vmatpush1.msra.mxu0 0.0
    %3316 = vmatprep.subr.mxu0 0.0
    %3317 = vmatpush1.msra.mxu0 0.0
    %3318 = vmatprep.subr.mxu0 0.0
    %3319 = vmatpush1.msra.mxu0 0.0
    %3320 = vmatprep.subr.mxu0 0.0
    %3321 = vmatpush1.msra.mxu0 0.0
    %3322 = vmatprep.subr.mxu0 0.0
    %3323 = vmatpush1.msra.mxu0 0.0
    %3324 = vmatprep.subr.mxu0 0.0
    %3325 = vmatpush1.msra.mxu0 0.0
    %3326 = vmatprep.subr.mxu0 0.0
    %3327 = vmatpush1.msra.mxu0 0.0
    %3328 = vmatprep.subr.mxu0 0.0
    %3329 = vmatpush1.msra.mxu0 0.0
    %3330 = vmatprep.subr.mxu0 0.0
    %3331 = vmatpush1.msra.mxu0 0.0
    %3332 = vmatprep.subr.mxu0 0.0
    %3333 = vmatpush1.msra.mxu0 0.0
    %3334 = vmatprep.subr.mxu0 0.0
    %3335 = vmatpush1.msra.mxu0 0.0
    %3336 = vmatprep.subr.mxu0 0.0
    %3337 = vmatpush1.msra.mxu0 0.0
    %3338 = vmatprep.subr.mxu0 0.0
    %3339 = vmatpush1.msra.mxu0 0.0
    %3340 = vmatprep.subr.mxu0 0.0
    %3341 = vmatpush1.msra.mxu0 0.0
    %3342 = vmatprep.subr.mxu0 0.0
    %3343 = vmatpush1.msra.mxu0 0.0
    %3344 = vmatprep.subr.mxu0 0.0
    %3345 = vmatpush1.msra.mxu0 0.0
    %3346 = vmatprep.subr.mxu0 0.0
    %3347 = vmatpush1.msra.mxu0 0.0
    %3348 = vmatprep.subr.mxu0 0.0
    %3349 = vmatpush1.msra.mxu0 0.0
    %3350 = vmatprep.subr.mxu0 0.0
    %3351 = vmatpush1.msra.mxu0 0.0
    %3352 = vmatprep.subr.mxu0 0.0
    %3353 = vmatpush1.msra.mxu0 0.0
    %3354 = vmatprep.subr.mxu0 0.0
    %3355 = vmatpush1.msra.mxu0 0.0
    %3356 = vmatprep.subr.mxu0 0.0
    %3357 = vmatpush1.msra.mxu0 0.0
    %3358 = vmatprep.mubr.f32.mxu0 0.0
    %3359 = vmatmul.mubr.f32.gmra.mrb[0].mxu0 %v3292
    %v3360 = vpop.f32.mrb[0].mxu0
    %v3361 = vadd.f32 0.0, %v3360
    %v3362 = vpop.f32.mrb[0].mxu0
    %3363 = vdwg.mxu0
    %3364 = vrot.lane.b32.xlu0 %v2090, 96
    %v3365 = vpop.permute.xlu0 %3364
    %3366 = vrot.lane.b32.xlu0 %v2092, 96
    %v3367 = vpop.permute.xlu0 %3366
    %v3371 = vsel %vm1696, %v2810, 0
    %3373 = vmatprep.subr.mxu0 0.0
    %3374 = vmatpush1.msra.mxu0 %v3365
    %3375 = vmatprep.subr.mxu0 0.0
    %3376 = vmatpush1.msra.mxu0 %v3367
    %3377 = vmatprep.subr.mxu0 0.0
    %3378 = vmatpush1.msra.mxu0 0.0
    %3379 = vmatprep.subr.mxu0 0.0
    %3380 = vmatpush1.msra.mxu0 0.0
    %3381 = vmatprep.subr.mxu0 0.0
    %3382 = vmatpush1.msra.mxu0 0.0
    %3383 = vmatprep.subr.mxu0 0.0
    %3384 = vmatpush1.msra.mxu0 0.0
    %3385 = vmatprep.subr.mxu0 0.0
    %3386 = vmatpush1.msra.mxu0 0.0
    %3387 = vmatprep.subr.mxu0 0.0
    %3388 = vmatpush1.msra.mxu0 0.0
    %3389 = vmatprep.subr.mxu0 0.0
    %3390 = vmatpush1.msra.mxu0 0.0
    %3391 = vmatprep.subr.mxu0 0.0
    %3392 = vmatpush1.msra.mxu0 0.0
    %3393 = vmatprep.subr.mxu0 0.0
    %3394 = vmatpush1.msra.mxu0 0.0
    %3395 = vmatprep.subr.mxu0 0.0
    %3396 = vmatpush1.msra.mxu0 0.0
    %3397 = vmatprep.subr.mxu0 0.0
    %3398 = vmatpush1.msra.mxu0 0.0
    %3399 = vmatprep.subr.mxu0 0.0
    %3400 = vmatpush1.msra.mxu0 0.0
    %3401 = vmatprep.subr.mxu0 0.0
    %3402 = vmatpush1.msra.mxu0 0.0
    %3403 = vmatprep.subr.mxu0 0.0
    %3404 = vmatpush1.msra.mxu0 0.0
    %3405 = vmatprep.subr.mxu0 0.0
    %3406 = vmatpush1.msra.mxu0 0.0
    %3407 = vmatprep.subr.mxu0 0.0
    %3408 = vmatpush1.msra.mxu0 0.0
    %3409 = vmatprep.subr.mxu0 0.0
    %3410 = vmatpush1.msra.mxu0 0.0
    %3411 = vmatprep.subr.mxu0 0.0
    %3412 = vmatpush1.msra.mxu0 0.0
    %3413 = vmatprep.subr.mxu0 0.0
    %3414 = vmatpush1.msra.mxu0 0.0
    %3415 = vmatprep.subr.mxu0 0.0
    %3416 = vmatpush1.msra.mxu0 0.0
    %3417 = vmatprep.subr.mxu0 0.0
    %3418 = vmatpush1.msra.mxu0 0.0
    %3419 = vmatprep.subr.mxu0 0.0
    %3420 = vmatpush1.msra.mxu0 0.0
    %3421 = vmatprep.subr.mxu0 0.0
    %3422 = vmatpush1.msra.mxu0 0.0
    %3423 = vmatprep.subr.mxu0 0.0
    %3424 = vmatpush1.msra.mxu0 0.0
    %3425 = vmatprep.subr.mxu0 0.0
    %3426 = vmatpush1.msra.mxu0 0.0
    %3427 = vmatprep.subr.mxu0 0.0
    %3428 = vmatpush1.msra.mxu0 0.0
    %3429 = vmatprep.subr.mxu0 0.0
    %3430 = vmatpush1.msra.mxu0 0.0
    %3431 = vmatprep.subr.mxu0 0.0
    %3432 = vmatpush1.msra.mxu0 0.0
    %3433 = vmatprep.subr.mxu0 0.0
    %3434 = vmatpush1.msra.mxu0 0.0
    %3435 = vmatprep.subr.mxu0 0.0
    %3436 = vmatpush1.msra.mxu0 0.0
    %3437 = vmatprep.mubr.f32.mxu0 0.0
    %3438 = vmatmul.mubr.f32.gmra.mrb[0].mxu0 %v3371
    %v3439 = vpop.f32.mrb[0].mxu0
    %v3440 = vadd.f32 0.0, %v3439
    %v3441 = vpop.f32.mrb[0].mxu0
    %3442 = vdwg.mxu0
    %3445 = vrot.lane.b32.xlu0 %v3045, 8
    %v3446 = vpop.permute.xlu0 %3445
    %3447 = vrot.lane.b32.xlu0 %v3124, 8
    %v3448 = vpop.permute.xlu0 %3447
    %3453 = vrot.lane.b32.xlu0 %v3203, 16
    %v3454 = vpop.permute.xlu0 %3453
    %3455 = vrot.lane.b32.xlu0 %v3282, 16
    %v3456 = vpop.permute.xlu0 %3455
    %3461 = vrot.lane.b32.xlu0 %v3361, 24
    %v3462 = vpop.permute.xlu0 %3461
    %3463 = vrot.lane.b32.xlu0 %v3440, 24
    %v3464 = vpop.permute.xlu0 %3463
    %v3467 = vsel %vm359, %v2887, %v3446
    %v3468 = vsel %vm359, %v2966, %v3448
    %v3469 = vsel %vm1696, %v3467, %v3454
    %v3470 = vsel %vm1696, %v3468, %v3456
    %v3471 = vsel %vm1699, %v3469, %v3462
    %v3472 = vsel %vm1699, %v3470, %v3464
    %v3473 = vld [vmem:[%s13] sm:$0xff]
    %v3474 = vld [vmem:[%s13 + $0x8] sm:$0xff]
    %v3475 = vld [vmem:[%s13 + $0x10] sm:$0xff]
    %v3476 = vld [vmem:[%s13 + $0x18] sm:$0xff]
    %v3477 = vld [vmem:[#allocation16] sm:$0x1]
    %v3479 = vlaneseq
    %v3480 = vshrl.u32 %v3479, 7
    %v3481 = vsub.s32 0, %v3480
    %v3482 = vrot.slane %v3477, %v3481
    %v3485 = vsel %vm220, %v3471, 0
    %v3488 = vsel %vm220, %v3472, 0
    %3490 = vmatprep.subr.mxu0 0.0
    %3491 = vmatpush1.msra.mxu0 %v3473
    %3492 = vmatprep.subr.mxu0 0.0
    %3493 = vmatpush1.msra.mxu0 %v3474
    %3494 = vmatprep.subr.mxu0 0.0
    %3495 = vmatpush1.msra.mxu0 %v3475
    %3496 = vmatprep.subr.mxu0 0.0
    %3497 = vmatpush1.msra.mxu0 %v3476
    %3498 = vmatprep.subr.mxu0 0.0
    %3499 = vmatpush1.msra.mxu0 0.0
    %3500 = vmatprep.subr.mxu0 0.0
    %3501 = vmatpush1.msra.mxu0 0.0
    %3502 = vmatprep.subr.mxu0 0.0
    %3503 = vmatpush1.msra.mxu0 0.0
    %3504 = vmatprep.subr.mxu0 0.0
    %3505 = vmatpush1.msra.mxu0 0.0
    %3506 = vmatprep.subr.mxu0 0.0
    %3507 = vmatpush1.msra.mxu0 0.0
    %3508 = vmatprep.subr.mxu0 0.0
    %3509 = vmatpush1.msra.mxu0 0.0
    %3510 = vmatprep.subr.mxu0 0.0
    %3511 = vmatpush1.msra.mxu0 0.0
    %3512 = vmatprep.subr.mxu0 0.0
    %3513 = vmatpush1.msra.mxu0 0.0
    %3514 = vmatprep.subr.mxu0 0.0
    %3515 = vmatpush1.msra.mxu0 0.0
    %3516 = vmatprep.subr.mxu0 0.0
    %3517 = vmatpush1.msra.mxu0 0.0
    %3518 = vmatprep.subr.mxu0 0.0
    %3519 = vmatpush1.msra.mxu0 0.0
    %3520 = vmatprep.subr.mxu0 0.0
    %3521 = vmatpush1.msra.mxu0 0.0
    %3522 = vmatprep.subr.mxu0 0.0
    %3523 = vmatpush1.msra.mxu0 0.0
    %3524 = vmatprep.subr.mxu0 0.0
    %3525 = vmatpush1.msra.mxu0 0.0
    %3526 = vmatprep.subr.mxu0 0.0
    %3527 = vmatpush1.msra.mxu0 0.0
    %3528 = vmatprep.subr.mxu0 0.0
    %3529 = vmatpush1.msra.mxu0 0.0
    %3530 = vmatprep.subr.mxu0 0.0
    %3531 = vmatpush1.msra.mxu0 0.0
    %3532 = vmatprep.subr.mxu0 0.0
    %3533 = vmatpush1.msra.mxu0 0.0
    %3534 = vmatprep.subr.mxu0 0.0
    %3535 = vmatpush1.msra.mxu0 0.0
    %3536 = vmatprep.subr.mxu0 0.0
    %3537 = vmatpush1.msra.mxu0 0.0
    %3538 = vmatprep.subr.mxu0 0.0
    %3539 = vmatpush1.msra.mxu0 0.0
    %3540 = vmatprep.subr.mxu0 0.0
    %3541 = vmatpush1.msra.mxu0 0.0
    %3542 = vmatprep.subr.mxu0 0.0
    %3543 = vmatpush1.msra.mxu0 0.0
    %3544 = vmatprep.subr.mxu0 0.0
    %3545 = vmatpush1.msra.mxu0 0.0
    %3546 = vmatprep.subr.mxu0 0.0
    %3547 = vmatpush1.msra.mxu0 0.0
    %3548 = vmatprep.subr.mxu0 0.0
    %3549 = vmatpush1.msra.mxu0 0.0
    %3550 = vmatprep.subr.mxu0 0.0
    %3551 = vmatpush1.msra.mxu0 0.0
    %3552 = vmatprep.subr.mxu0 0.0
    %3553 = vmatpush1.msra.mxu0 0.0
    %3554 = vmatprep.mubr.f32.mxu0 0.0
    %3555 = vmatmul.mubr.f32.gmra.mrb[0].mxu0 %v3485
    %v3556 = vpop.f32.mrb[0].mxu0
    %v3557 = vadd.f32 %v3482, %v3556
    %v3558 = vpop.f32.mrb[0].mxu0
    %3559 = vmatprep.mubr.f32.mxu0 0.0
    %3560 = vmatmul.mubr.f32.gmra.mrb[0].mxu0 %v3488
    %v3561 = vpop.f32.mrb[0].mxu0
    %v3562 = vadd.f32 %v3482, %v3561
    %v3563 = vpop.f32.mrb[0].mxu0
    %3564 = vdwg.mxu0
    %v3565 = vmul.f32 %v3557, %v202
    %v3566 = vmul.f32 %v3562, %v207
    %v3567 = vadd.f32 %v3565, %v1841
    %v3568 = vadd.f32 %v3566, %v1842
    %s3569 = scalar_lea.vmem %s19, 1
    %v3570 = vld [vmem:[%s3569] sm:$0x1]
    %s3571 = scalar_lea.vmem %s20, 1
    %v3572 = vld [vmem:[%s3571] sm:$0x1]
    %v3573 = vsel %vm220, %v3567, 0.0
    %3574 = vadd.xlane.f32.xlu0 %v3573
    %v3575 = vpop.xlane.xlu0 %3574
    %v3576 = vsel %vm220, %v3568, 0.0
    %3577 = vadd.xlane.f32.xlu0 %v3576
    %v3578 = vpop.xlane.xlu0 %3577
    %v3579 = vmul.f32 %v3575, %v1806
    %v3580 = vmul.f32 %v3578, %v1806
    %v3581 = vsub.f32 %v3567, %v3579
    %v3582 = vsub.f32 %v3568, %v3580
    %v3583 = vmul.f32 %v3581, %v3581
    %v3584 = vmul.f32 %v3582, %v3582
    %v3585 = vsel %vm220, %v3583, 0.0
    %3586 = vadd.xlane.f32.xlu0 %v3585
    %v3587 = vpop.xlane.xlu0 %3586
    %v3588 = vsel %vm220, %v3584, 0.0
    %3589 = vadd.xlane.f32.xlu0 %v3588
    %v3590 = vpop.xlane.xlu0 %3589
    %v3591 = vmul.f32 %v3587, %v1806
    %v3592 = vmul.f32 %v3590, %v1806
    %v3593 = vadd.f32 %v3591, 1e-05
    %v3594 = vadd.f32 %v3592, 1e-05
    %v3595 = vrsqrt.pop %v3593
    %v3596 = vrsqrt.pop %v3594
    %v3597 = vmul.f32 %v3581, %v3595
    %v3598 = vmul.f32 %v3582, %v3596
    %v3600 = vlaneseq
    %v3601 = vshrl.u32 %v3600, 7
    %v3602 = vsub.s32 0, %v3601
    %v3603 = vrot.slane %v3570, %v3602
    %v3605 = vmul.f32 %v3597, %v3603
    %v3606 = vmul.f32 %v3598, %v3603
    %v3608 = vlaneseq
    %v3609 = vshrl.u32 %v3608, 7
    %v3610 = vsub.s32 0, %v3609
    %v3611 = vrot.slane %v3572, %v3610
    %v3613 = vadd.f32 %v3605, %v3611
    %v3614 = vadd.f32 %v3606, %v3611
    %v3615 = vld [vmem:[#allocation17] sm:$0xff]
    %v3616 = vld [vmem:[#allocation17 + $0x8] sm:$0xff]
    %v3617 = vld [vmem:[#allocation17 + $0x10] sm:$0xff]
    %v3618 = vld [vmem:[#allocation17 + $0x18] sm:$0xff]
    %v3619 = vld [vmem:[%s16] sm:$0x1]
    %v3621 = vlaneseq
    %v3622 = vshrl.u32 %v3621, 7
    %v3623 = vsub.s32 0, %v3622
    %v3624 = vrot.slane %v3619, %v3623
    %v3627 = vsel %vm220, %v3613, 0
    %v3630 = vsel %vm220, %v3614, 0
    %3632 = vmatprep.subr.mxu0 0.0
    %3633 = vmatpush1.msra.mxu0 %v3615
    %3634 = vmatprep.subr.mxu0 0.0
    %3635 = vmatpush1.msra.mxu0 %v3616
    %3636 = vmatprep.subr.mxu0 0.0
    %3637 = vmatpush1.msra.mxu0 %v3617
    %3638 = vmatprep.subr.mxu0 0.0
    %3639 = vmatpush1.msra.mxu0 %v3618
    %3640 = vmatprep.subr.mxu0 0.0
    %3641 = vmatpush1.msra.mxu0 0.0
    %3642 = vmatprep.subr.mxu0 0.0
    %3643 = vmatpush1.msra.mxu0 0.0
    %3644 = vmatprep.subr.mxu0 0.0
    %3645 = vmatpush1.msra.mxu0 0.0
    %3646 = vmatprep.subr.mxu0 0.0
    %3647 = vmatpush1.msra.mxu0 0.0
    %3648 = vmatprep.subr.mxu0 0.0
    %3649 = vmatpush1.msra.mxu0 0.0
    %3650 = vmatprep.subr.mxu0 0.0
    %3651 = vmatpush1.msra.mxu0 0.0
    %3652 = vmatprep.subr.mxu0 0.0
    %3653 = vmatpush1.msra.mxu0 0.0
    %3654 = vmatprep.subr.mxu0 0.0
    %3655 = vmatpush1.msra.mxu0 0.0
    %3656 = vmatprep.subr.mxu0 0.0
    %3657 = vmatpush1.msra.mxu0 0.0
    %3658 = vmatprep.subr.mxu0 0.0
    %3659 = vmatpush1.msra.mxu0 0.0
    %3660 = vmatprep.subr.mxu0 0.0
    %3661 = vmatpush1.msra.mxu0 0.0
    %3662 = vmatprep.subr.mxu0 0.0
    %3663 = vmatpush1.msra.mxu0 0.0
    %3664 = vmatprep.subr.mxu0 0.0
    %3665 = vmatpush1.msra.mxu0 0.0
    %3666 = vmatprep.subr.mxu0 0.0
    %3667 = vmatpush1.msra.mxu0 0.0
    %3668 = vmatprep.subr.mxu0 0.0
    %3669 = vmatpush1.msra.mxu0 0.0
    %3670 = vmatprep.subr.mxu0 0.0
    %3671 = vmatpush1.msra.mxu0 0.0
    %3672 = vmatprep.subr.mxu0 0.0
    %3673 = vmatpush1.msra.mxu0 0.0
    %3674 = vmatprep.subr.mxu0 0.0
    %3675 = vmatpush1.msra.mxu0 0.0
    %3676 = vmatprep.subr.mxu0 0.0
    %3677 = vmatpush1.msra.mxu0 0.0
    %3678 = vmatprep.subr.mxu0 0.0
    %3679 = vmatpush1.msra.mxu0 0.0
    %3680 = vmatprep.subr.mxu0 0.0
    %3681 = vmatpush1.msra.mxu0 0.0
    %3682 = vmatprep.subr.mxu0 0.0
    %3683 = vmatpush1.msra.mxu0 0.0
    %3684 = vmatprep.subr.mxu0 0.0
    %3685 = vmatpush1.msra.mxu0 0.0
    %3686 = vmatprep.subr.mxu0 0.0
    %3687 = vmatpush1.msra.mxu0 0.0
    %3688 = vmatprep.subr.mxu0 0.0
    %3689 = vmatpush1.msra.mxu0 0.0
    %3690 = vmatprep.subr.mxu0 0.0
    %3691 = vmatpush1.msra.mxu0 0.0
    %3692 = vmatprep.subr.mxu0 0.0
    %3693 = vmatpush1.msra.mxu0 0.0
    %3694 = vmatprep.subr.mxu0 0.0
    %3695 = vmatpush1.msra.mxu0 0.0
    %3696 = vmatprep.mubr.f32.mxu0 0.0
    %3697 = vmatmul.mubr.f32.gmra.mrb[0].mxu0 %v3627
    %v3698 = vpop.f32.mrb[0].mxu0
    %v3699 = vadd.f32 %v3624, %v3698
    %v3700 = vpop.f32.mrb[0].mxu0
    %3701 = vmatprep.mubr.f32.mxu0 0.0
    %3702 = vmatmul.mubr.f32.gmra.mrb[0].mxu0 %v3630
    %v3703 = vpop.f32.mrb[0].mxu0
    %v3704 = vadd.f32 %v3624, %v3703
    %v3705 = vpop.f32.mrb[0].mxu0
    %3706 = vdwg.mxu0
    %v3707 = vmax.f32 %v3699, 0.0
    %v3708 = vmax.f32 %v3704, 0.0
    %v3709 = vld [vmem:[%s17] sm:$0xff]
    %v3710 = vld [vmem:[%s17 + $0x8] sm:$0xff]
    %v3711 = vld [vmem:[%s17 + $0x10] sm:$0xff]
    %v3712 = vld [vmem:[%s17 + $0x18] sm:$0xff]
    %v3713 = vld [vmem:[%s17 + $0x20] sm:$0xff]
    %v3714 = vld [vmem:[%s17 + $0x28] sm:$0xff]
    %v3715 = vld [vmem:[%s17 + $0x30] sm:$0xff]
    %v3716 = vld [vmem:[%s17 + $0x38] sm:$0xff]
    %v3717 = vld [vmem:[%s18] sm:$0x1]
    %v3719 = vlaneseq
    %v3720 = vshrl.u32 %v3719, 7
    %v3721 = vsub.s32 0, %v3720
    %v3722 = vrot.slane %v3717, %v3721
    %vm3724 = vcmask 523264
    %v3726 = vsel %vm3724, %v3707, 0
    %v3729 = vsel %vm3724, %v3708, 0
    %3731 = vmatprep.subr.mxu0 0.0
    %3732 = vmatpush1.msra.mxu0 %v3709
    %3733 = vmatprep.subr.mxu0 0.0
    %3734 = vmatpush1.msra.mxu0 %v3710
    %3735 = vmatprep.subr.mxu0 0.0
    %3736 = vmatpush1.msra.mxu0 %v3711
    %3737 = vmatprep.subr.mxu0 0.0
    %3738 = vmatpush1.msra.mxu0 %v3712
    %3739 = vmatprep.subr.mxu0 0.0
    %3740 = vmatpush1.msra.mxu0 %v3713
    %3741 = vmatprep.subr.mxu0 0.0
    %3742 = vmatpush1.msra.mxu0 %v3714
    %3743 = vmatprep.subr.mxu0 0.0
    %3744 = vmatpush1.msra.mxu0 %v3715
    %3745 = vmatprep.subr.mxu0 0.0
    %3746 = vmatpush1.msra.mxu0 %v3716
    %3747 = vmatprep.subr.mxu0 0.0
    %3748 = vmatpush1.msra.mxu0 0.0
    %3749 = vmatprep.subr.mxu0 0.0
    %3750 = vmatpush1.msra.mxu0 0.0
    %3751 = vmatprep.subr.mxu0 0.0
    %3752 = vmatpush1.msra.mxu0 0.0
    %3753 = vmatprep.subr.mxu0 0.0
    %3754 = vmatpush1.msra.mxu0 0.0
    %3755 = vmatprep.subr.mxu0 0.0
    %3756 = vmatpush1.msra.mxu0 0.0
    %3757 = vmatprep.subr.mxu0 0.0
    %3758 = vmatpush1.msra.mxu0 0.0
    %3759 = vmatprep.subr.mxu0 0.0
    %3760 = vmatpush1.msra.mxu0 0.0
    %3761 = vmatprep.subr.mxu0 0.0
    %3762 = vmatpush1.msra.mxu0 0.0
    %3763 = vmatprep.subr.mxu0 0.0
    %3764 = vmatpush1.msra.mxu0 0.0
    %3765 = vmatprep.subr.mxu0 0.0
    %3766 = vmatpush1.msra.mxu0 0.0
    %3767 = vmatprep.subr.mxu0 0.0
    %3768 = vmatpush1.msra.mxu0 0.0
    %3769 = vmatprep.subr.mxu0 0.0
    %3770 = vmatpush1.msra.mxu0 0.0
    %3771 = vmatprep.subr.mxu0 0.0
    %3772 = vmatpush1.msra.mxu0 0.0
    %3773 = vmatprep.subr.mxu0 0.0
    %3774 = vmatpush1.msra.mxu0 0.0
    %3775 = vmatprep.subr.mxu0 0.0
    %3776 = vmatpush1.msra.mxu0 0.0
    %3777 = vmatprep.subr.mxu0 0.0
    %3778 = vmatpush1.msra.mxu0 0.0
    %3779 = vmatprep.subr.mxu0 0.0
    %3780 = vmatpush1.msra.mxu0 0.0
    %3781 = vmatprep.subr.mxu0 0.0
    %3782 = vmatpush1.msra.mxu0 0.0
    %3783 = vmatprep.subr.mxu0 0.0
    %3784 = vmatpush1.msra.mxu0 0.0
    %3785 = vmatprep.subr.mxu0 0.0
    %3786 = vmatpush1.msra.mxu0 0.0
    %3787 = vmatprep.subr.mxu0 0.0
    %3788 = vmatpush1.msra.mxu0 0.0
    %3789 = vmatprep.subr.mxu0 0.0
    %3790 = vmatpush1.msra.mxu0 0.0
    %3791 = vmatprep.subr.mxu0 0.0
    %3792 = vmatpush1.msra.mxu0 0.0
    %3793 = vmatprep.subr.mxu0 0.0
    %3794 = vmatpush1.msra.mxu0 0.0
    %3795 = vmatprep.mubr.f32.mxu0 0.0
    %3796 = vmatmul.mubr.f32.gmra.mrb[0].mxu0 %v3726
    %v3797 = vpop.f32.mrb[0].mxu0
    %v3798 = vadd.f32 %v3722, %v3797
    %v3799 = vpop.f32.mrb[0].mxu0
    %3800 = vmatprep.mubr.f32.mxu0 0.0
    %3801 = vmatmul.mubr.f32.gmra.mrb[0].mxu0 %v3729
    %v3802 = vpop.f32.mrb[0].mxu0
    %v3803 = vadd.f32 %v3722, %v3802
    %v3804 = vpop.f32.mrb[0].mxu0
    %3805 = vdwg.mxu0
    %v3806 = vmul.f32 %v3798, %v202
    %v3807 = vmul.f32 %v3803, %v207
    %v3808 = vadd.f32 %v3806, %v3613
    %v3809 = vadd.f32 %v3807, %v3614
    %s3810 = scalar_lea.vmem %s19, 2
    %v3811 = vld [vmem:[%s3810] sm:$0x1]
    %s3812 = scalar_lea.vmem %s20, 2
    %v3813 = vld [vmem:[%s3812] sm:$0x1]
    %v3814 = vsel %vm220, %v3808, 0.0
    %3815 = vadd.xlane.f32.xlu0 %v3814
    %v3816 = vpop.xlane.xlu0 %3815
    %v3817 = vsel %vm220, %v3809, 0.0
    %3818 = vadd.xlane.f32.xlu0 %v3817
    %v3819 = vpop.xlane.xlu0 %3818
    %v3820 = vmul.f32 %v3816, %v1806
    %v3821 = vmul.f32 %v3819, %v1806
    %v3822 = vsub.f32 %v3808, %v3820
    %v3823 = vsub.f32 %v3809, %v3821
    %v3824 = vmul.f32 %v3822, %v3822
    %v3825 = vmul.f32 %v3823, %v3823
    %v3826 = vsel %vm220, %v3824, 0.0
    %3827 = vadd.xlane.f32.xlu0 %v3826
    %v3828 = vpop.xlane.xlu0 %3827
    %v3829 = vsel %vm220, %v3825, 0.0
    %3830 = vadd.xlane.f32.xlu0 %v3829
    %v3831 = vpop.xlane.xlu0 %3830
    %v3832 = vmul.f32 %v3828, %v1806
    %v3833 = vmul.f32 %v3831, %v1806
    %v3834 = vadd.f32 %v3832, 1e-05
    %v3835 = vadd.f32 %v3833, 1e-05
    %v3836 = vrsqrt.pop %v3834
    %v3837 = vrsqrt.pop %v3835
    %v3838 = vmul.f32 %v3822, %v3836
    %v3839 = vmul.f32 %v3823, %v3837
    %v3841 = vlaneseq
    %v3842 = vshrl.u32 %v3841, 7
    %v3843 = vsub.s32 0, %v3842
    %v3844 = vrot.slane %v3811, %v3843
    %v3846 = vmul.f32 %v3838, %v3844
    %v3847 = vmul.f32 %v3839, %v3844
    %v3849 = vlaneseq
    %v3850 = vshrl.u32 %v3849, 7
    %v3851 = vsub.s32 0, %v3850
    %v3852 = vrot.slane %v3813, %v3851
    %v3854 = vadd.f32 %v3846, %v3852
    %v3855 = vadd.f32 %v3847, %v3852
    %v3856 = vmul.f32 %v3854, %v202
    %v3857 = vmul.f32 %v3855, %v207
    %3858 = vst.msk [vmem:[#allocation19] sm:$0xff] %vm220, %v3856
    %3859 = vst.msk [vmem:[#allocation19 + $0x8] sm:$0xff] %vm220, %v3857
    // Predicated region
    $region126: #{tpu_custom_call.1} parent=1 // pred_check
      _
    $region127: #{tpu_custom_call.1} parent=1 // pred_check_branch
      %3861 = sbr.rel (0) target = $region129
    $region128: #{tpu_custom_call.1} parent=1 // pred_region
      %s3863 = ssub.s32 256, 256
      %3864 = vsyncadd [#allocation4], %s3863
      %s3865 = sshll.u32 [#allocation19], 4
      %s3866 = int_to_ptr.vmem [resolvable:$true] %s3865
      %3871 = dma.vmem_to_hbm [thread:$0]  %s3866, 256, %s21, [#allocation4], 128, 128, 8
    $region129: #{tpu_custom_call.1} parent=1 // pred_fallthru
      _
    // Predicated region
    $region130: #{tpu_custom_call.1} parent=1 // pred_check
      _
    $region131: #{tpu_custom_call.1} parent=1 // pred_check_branch
      %3873 = sbr.rel (0) target = $region133
    $region132: #{tpu_custom_call.1} parent=1 // pred_region
      %3874 = dma.done [#allocation4], 256
    $region133: #{tpu_custom_call.1} parent=1 // pred_fallthru
      _
    %3875 = vsyncpa [#allocation3], 1
    %3876 = vsyncpa [#allocation6], 1
    %3877 = vsyncpa [#allocation9], 1
    %3878 = vsyncpa [#allocation12], 1
    %3879 = vsyncpa [#allocation15], 1
    %3880 = vsyncpa [#allocation18], 1
    %3881 = vsyncpa [#allocation4], 1

</llo_original>
